<compile_context>
chip_gen: v7x
topology: tpu7x:2x2x1
jax: 0.10.0
libtpu: 0.0.40
codegen_flags: <defaults>
</compile_context>

<pallas_src>
import math

import jax
import jax.numpy as jnp
from jax.experimental import pallas as pl
from jax.experimental.pallas import tpu as pltpu

ACT_DTYPE = jnp.bfloat16    # activations / weights (f32 also works)
_LC_TARGET = 512            # lanes per in-kernel chunk


def _round_up(x, m):
    return ((x + m - 1) // m) * m


def _pick_row_tiles(ho, wph, batch):
    """Output rows per grid step.  Whole image when small; otherwise row tiles
    with th % 16 == 0 (so th*wph % 128 == 0 given wph % 8 == 0) and ~2-4K
    lanes per tile so input DMAs stay small and well pipelined.  With batch==1
    the whole-image threshold is lowered so both TensorCores get work."""
    thresh = 2048 if batch == 1 else 4096
    if ho * wph <= thresh:
        return 1, ho
    th = (max(2048 // wph, 16) // 16) * 16
    th = max(th, 16)
    if th >= ho:
        return 1, ho
    return pl.cdiv(ho, th), th


# ----------------------------------------------------------------------------
# Pallas kernel: tap-stacked conv + BN-affine (+ReLU) (+LayerNorm)
# ----------------------------------------------------------------------------
def _make_conv_kernel(*, k, s, wph, cin_p, cout_true, chunks, qmax,
                      relu, ln, ln_eps):
    # Static per-plane tap structure of the stride-phase decomposition.
    plane_taps = []
    for ph in range(s):
        for pw in range(s):
            n_qh = len(range(ph, k, s))
            n_qw = len(range(pw, k, s))
            plane_taps.append((ph, pw, n_qh, n_qw))

    def kernel(x_ref, w_ref, scale_ref, shift_ref, gamma_ref, beta_ref,
               o_ref, rhs_ref):
        # x_ref:   (s*s, cin_p, th_in*wph)  one row tile (+halo) of one image
        # w_ref:   (cout_p, k*k*cin_p)      tap-stacked weights (resident)
        # scale/shift/gamma/beta: (cout_p, 1) f32
        # o_ref:   (cout_p, th*wph)
        # rhs_ref: (k*k*cin_p, Lc)          stacked-tap RHS scratch (VMEM)
        scale = scale_ref[...]
        shift = shift_ref[...]
        for base, lc in chunks:                       # static, unrolled
            # ---- build the stacked RHS: one slab load per (plane, tap-row);
            #      kw taps via static lane sub-slices (XLU shifts) ----
            for plane_idx, (ph, pw, n_qh, n_qw) in enumerate(plane_taps):
                for qh in range(n_qh):
                    slab = x_ref[plane_idx, :, pl.ds(base + qh * wph, lc + qmax)]
                    for qw in range(n_qw):
                        kh = qh * s + ph
                        kw = qw * s + pw
                        tap = kh * k + kw
                        rhs_ref[tap * cin_p:(tap + 1) * cin_p, :lc] = (
                            slab[:, qw:qw + lc])
            # ---- one large-K MXU matmul per chunk; acc written once ----
            acc = jnp.dot(w_ref[...], rhs_ref[:, :lc],
                          preferred_element_type=jnp.float32)
            y = acc * scale + shift
            if relu:
                y = jnp.maximum(y, 0.0)
            if ln:
                # LayerNorm over the (true) channel dim, per token (column).
                # Padded channels are exactly 0, so sums over cout_p rows are
                # sums over the true channels.
                inv_n = 1.0 / float(cout_true)
                mu = jnp.sum(y, axis=0, keepdims=True) * inv_n
                ex2 = jnp.sum(y * y, axis=0, keepdims=True) * inv_n
                var = ex2 - mu * mu
                y = (y - mu) * jax.lax.rsqrt(var + ln_eps)
                y = y * gamma_ref[...] + beta_ref[...]
            o_ref[:, base:base + lc] = y.astype(o_ref.dtype)

    return kernel


# ----------------------------------------------------------------------------
# Wrapper: pad + stride-phase decomposition + halo row-tiling + pallas_call
# ----------------------------------------------------------------------------
def conv2d_bn_act(x, w_oihw, scale, shift, *, stride, pad, relu,
                  ln_gamma=None, ln_beta=None, ln_eps=1e-5, out_dtype=None):
    """Fused Conv2d + per-channel affine (+ReLU) (+LayerNorm).

    x: (B, Cin, H, W) channel-major activations.  Returns (B, Cout, Ho, Wo).
    """
    B, Cin, H, W = x.shape
    Cout, _, k, _ = w_oihw.shape
    s = stride
    ln = ln_gamma is not None
    out_dtype = ACT_DTYPE if out_dtype is None else out_dtype

    # bf16 sublane tile is (16, 128): round both channel dims up to 16.
    cin_p = _round_up(Cin, 16)
    cout_p = _round_up(Cout, 16)

    ho = (H + 2 * pad - k) // s + 1
    wo = (W + 2 * pad - k) // s + 1
    qmax = (k - 1) // s                         # max tap offset inside a plane
    wph = _round_up(wo + qmax, 8)               # phase-plane width
    n_tiles, th = _pick_row_tiles(ho, wph, B)
    ho_pad = n_tiles * th
    th_in = th + qmax + 1                       # +1 zero row: edge taps in-bounds
    hph = ho_pad + qmax + 1
    Hp, Wp = s * hph, s * wph
    pb, pr = Hp - H - pad, Wp - W - pad
    assert pb >= 0 and pr >= 0, "stem conv padding geometry violated"

    # Channel pad + conv zero-padding + geometry slack, then stride-phase
    # decomposition: plane (ph,pw) holds padded pixel (s*i+ph, s*j+pw), so
    # every conv tap becomes a contiguous stride-1 slice inside the kernel.
    xpad = jnp.pad(x, ((0, 0), (0, cin_p - Cin), (pad, pb), (pad, pr)))
    xph = xpad.reshape(B, cin_p, hph, s, wph, s)
    xph = jnp.transpose(xph, (0, 3, 5, 1, 2, 4)).reshape(B, s * s, cin_p, hph, wph)

    # Row-tile with halo so the per-step VMEM block is O(tile), not O(image).
    if n_tiles == 1:
        x_tiled = xph.reshape(B, s * s, cin_p, th_in * wph)
    else:
        rows = jnp.arange(n_tiles)[:, None] * th + jnp.arange(th_in)[None, :]
        x_tiled = jnp.transpose(xph[:, :, :, rows, :], (0, 3, 1, 2, 4, 5))
        x_tiled = x_tiled.reshape(B * n_tiles, s * s, cin_p, th_in * wph)
    x_tiled = x_tiled.astype(ACT_DTYPE)

    # Tap-stacked weights: (Cout, Cin, kh, kw) -> (cout_p, k*k*cin_p), columns
    # ordered (kh, kw, cin) to match the stacked RHS rows.
    wp = jnp.pad(w_oihw, ((0, cout_p - Cout), (0, cin_p - Cin), (0, 0), (0, 0)))
    KK = k * k * cin_p
    w_stacked = jnp.transpose(wp, (0, 2, 3, 1)).reshape(cout_p, KK).astype(ACT_DTYPE)

    def col(v):
        v = v.reshape(-1).astype(jnp.float32)
        v = jnp.pad(v, (0, cout_p - Cout))      # padded channels stay exactly 0
        return v.reshape(cout_p, 1)

    scale2, shift2 = col(scale), col(shift)
    gamma2 = col(ln_gamma) if ln else jnp.ones((cout_p, 1), jnp.float32)
    beta2 = col(ln_beta) if ln else jnp.zeros((cout_p, 1), jnp.float32)

    # In-kernel chunking of the flattened lane dim (ragged last chunk OK).
    L = th * wph
    chunks, off = [], 0
    while off < L:
        cur = min(_LC_TARGET, L - off)
        chunks.append((off, cur))
        off += cur
    lc_max = max(c for _, c in chunks)

    kernel = _make_conv_kernel(k=k, s=s, wph=wph, cin_p=cin_p, cout_true=Cout,
                               chunks=tuple(chunks), qmax=qmax,
                               relu=relu, ln=ln, ln_eps=ln_eps)

    # Explicit scoped-VMEM budget from the actual block sizes.
    ab = jnp.dtype(ACT_DTYPE).itemsize
    ob = jnp.dtype(out_dtype).itemsize
    need = (2 * s * s * cin_p * th_in * wph * ab      # input tile, double-buffered
            + 2 * cout_p * KK * ab                    # stacked weights
            + 2 * cout_p * L * ob                     # output tile
            + KK * lc_max * ab                        # RHS scratch
            + 8 * cout_p * lc_max * 4)                # f32 acc / epilogue temps
    vmem_limit = int(min(112 << 20, max(32 << 20, 2 * need)))

    out = pl.pallas_call(
        kernel,
        out_shape=jax.ShapeDtypeStruct((B, cout_p, n_tiles * L), out_dtype),
        grid=(B, n_tiles),
        in_specs=[
            pl.BlockSpec((None, s * s, cin_p, th_in * wph),
                         lambda b, t: (b * n_tiles + t, 0, 0, 0)),
            pl.BlockSpec((cout_p, KK), lambda b, t: (0, 0)),
            pl.BlockSpec((cout_p, 1), lambda b, t: (0, 0)),
            pl.BlockSpec((cout_p, 1), lambda b, t: (0, 0)),
            pl.BlockSpec((cout_p, 1), lambda b, t: (0, 0)),
            pl.BlockSpec((cout_p, 1), lambda b, t: (0, 0)),
        ],
        out_specs=pl.BlockSpec((None, cout_p, L), lambda b, t: (b, 0, t)),
        scratch_shapes=[pltpu.VMEM((KK, lc_max), ACT_DTYPE)],
        compiler_params=pltpu.CompilerParams(
            dimension_semantics=("parallel", "parallel"),
            vmem_limit_bytes=vmem_limit),
    )(x_tiled, w_stacked, scale2, shift2, gamma2, beta2)

    # Crop padded channels / rows / columns.
    out = out.reshape(B, cout_p, ho_pad, wph)[:, :Cout, :ho, :wo]
    return out


# ----------------------------------------------------------------------------
# Parameters (deterministic, matches the PyTorch module's shapes / init)
# ----------------------------------------------------------------------------
def make_stem_params(key, in_channels, hidden_dim, out_channels):
    keys = jax.random.split(key, 16)
    ki = iter(range(16))

    def conv_w(k, cout, cin, ksize):
        fan_out = ksize * ksize * cout
        std = math.sqrt(2.0 / fan_out)
        return std * jax.random.normal(k, (cout, cin, ksize, ksize), jnp.float32)

    def bn(k, c):
        k1, k2, k3, k4 = jax.random.split(k, 4)
        gamma = 1.0 + 0.1 * jax.random.normal(k1, (c,), jnp.float32)
        beta = 0.1 * jax.random.normal(k2, (c,), jnp.float32)
        rmean = 0.1 * jax.random.normal(k3, (c,), jnp.float32)
        rvar = jax.random.uniform(k4, (c,), jnp.float32, 0.5, 1.5)
        eps = 1e-5
        scale = gamma / jnp.sqrt(rvar + eps)
        shift = beta - rmean * scale
        return scale, shift

    p = {}
    p["w1"] = conv_w(keys[next(ki)], hidden_dim, in_channels, 7)
    p["bn1_scale"], p["bn1_shift"] = bn(keys[next(ki)], hidden_dim)
    p["w2"] = conv_w(keys[next(ki)], hidden_dim, hidden_dim, 3)
    p["bn2_scale"], p["bn2_shift"] = bn(keys[next(ki)], hidden_dim)
    p["w3"] = conv_w(keys[next(ki)], hidden_dim, hidden_dim, 3)
    p["bn3_scale"], p["bn3_shift"] = bn(keys[next(ki)], hidden_dim)
    p["wproj"] = conv_w(keys[next(ki)], out_channels, hidden_dim, 3)
    p["bproj"] = jnp.zeros((out_channels,), jnp.float32)     # Conv2d bias zero-init
    p["ln_gamma"] = jnp.ones((out_channels,), jnp.float32)   # LayerNorm init
    p["ln_beta"] = jnp.zeros((out_channels,), jnp.float32)
    return p


def stem_forward(x_nchw, p):
    """Matches Stem.forward: returns (tokens (B, H*W, Cout), H, W)."""
    x = conv2d_bn_act(x_nchw, p["w1"], p["bn1_scale"], p["bn1_shift"],
                      stride=2, pad=3, relu=True)
    x = conv2d_bn_act(x, p["w2"], p["bn2_scale"], p["bn2_shift"],
                      stride=1, pad=1, relu=True)
    x = conv2d_bn_act(x, p["w3"], p["bn3_scale"], p["bn3_shift"],
                      stride=1, pad=1, relu=True)
    # proj: conv with bias, no BN/ReLU; token LayerNorm fused as epilogue.
    x = conv2d_bn_act(x, p["wproj"], jnp.ones_like(p["bproj"]), p["bproj"],
                      stride=2, pad=1, relu=False,
                      ln_gamma=p["ln_gamma"], ln_beta=p["ln_beta"],
                      out_dtype=jnp.float32)
    B, C, H, W = x.shape
    tokens = jnp.transpose(x.reshape(B, C, H * W), (0, 2, 1))  # flatten(2).transpose(1,2)
    return tokens, H, W


# ----------------------------------------------------------------------------
# Pure-XLA reference (same dtype policy) for a self-check
# ----------------------------------------------------------------------------
def _ref_conv(x, w, scale, shift, *, stride, pad, relu, out_dtype):
    y = jax.lax.conv_general_dilated(
        x.astype(ACT_DTYPE), w.astype(ACT_DTYPE),
        window_strides=(stride, stride),
        padding=((pad, pad), (pad, pad)),
        dimension_numbers=("NCHW", "OIHW", "NCHW"),
        preferred_element_type=jnp.float32)
    y = y * scale.reshape(1, -1, 1, 1) + shift.reshape(1, -1, 1, 1)
    if relu:
        y = jnp.maximum(y, 0.0)
    return y.astype(out_dtype)


def stem_forward_ref(x, p):
    y = _ref_conv(x, p["w1"], p["bn1_scale"], p["bn1_shift"], stride=2, pad=3,
                  relu=True, out_dtype=ACT_DTYPE)
    y = _ref_conv(y, p["w2"], p["bn2_scale"], p["bn2_shift"], stride=1, pad=1,
                  relu=True, out_dtype=ACT_DTYPE)
    y = _ref_conv(y, p["w3"], p["bn3_scale"], p["bn3_shift"], stride=1, pad=1,
                  relu=True, out_dtype=ACT_DTYPE)
    y = _ref_conv(y, p["wproj"], jnp.ones_like(p["bproj"]), p["bproj"],
                  stride=2, pad=1, relu=False, out_dtype=jnp.float32)
    B, C, H, W = y.shape
    tok = jnp.transpose(y.reshape(B, C, H * W), (0, 2, 1))
    mu = jnp.mean(tok, axis=-1, keepdims=True)
    var = jnp.mean(jnp.square(tok - mu), axis=-1, keepdims=True)
    tok = (tok - mu) * jax.lax.rsqrt(var + 1e-5)
    tok = tok * p["ln_gamma"] + p["ln_beta"]
    return tok, H, W


if __name__ == "__main__":
    key = jax.random.PRNGKey(0)
    k_x, k_p = jax.random.split(key)

    B, Cin, Himg, Wimg = 2, 4, 16, 16
    hidden_dim, out_channels = 32, 32

    x = jax.random.normal(k_x, (B, Cin, Himg, Wimg), jnp.float32)
    params = make_stem_params(k_p, Cin, hidden_dim, out_channels)

    fwd = jax.jit(stem_forward)
    tokens, H, W = fwd(x, params)
    tokens = jax.block_until_ready(tokens)
    H, W = int(H), int(W)

    assert tokens.shape == (B, H * W, out_channels), tokens.shape
    assert (H, W) == (4, 4)
    assert bool(jnp.all(jnp.isfinite(tokens)))

    ref_tokens, Hr, Wr = stem_forward_ref(x, params)
    assert (int(Hr), int(Wr)) == (H, W)
    err = float(jnp.max(jnp.abs(tokens - jnp.asarray(ref_tokens, jnp.float32))))
    assert err < 5e-2, f"max |pallas - ref| = {err}"

    print("KERNEL_OK")
</pallas_src>

<mosaic_0001>
module attributes {stable_mosaic.version = 11 : i64} {
  func.func @kernel(%arg0: i32, %arg1: i32, %arg2: memref<1x4x16x192xbf16, #tpu.memory_space<vmem>>, %arg3: memref<32x784xbf16, #tpu.memory_space<vmem>>, %arg4: memref<32x1xf32, #tpu.memory_space<vmem>>, %arg5: memref<32x1xf32, #tpu.memory_space<vmem>>, %arg6: memref<32x1xf32, #tpu.memory_space<vmem>>, %arg7: memref<32x1xf32, #tpu.memory_space<vmem>>, %arg8: memref<1x32x128xbf16, #tpu.memory_space<vmem>>, %arg9: memref<784x128xbf16, #tpu.memory_space<vmem>>) attributes {dimension_semantics = [#tpu.dimension_semantics<parallel>, #tpu.dimension_semantics<parallel>], iteration_bounds = array<i64: 2, 1>, scalar_prefetch = 0 : i64, scratch_operands = 1 : i64, tpu.core_type = #tpu.core_type<tc>, window_params = [{transform_indices = @transform_0, window_bounds = array<i64: 1, 4, 16, 192>}, {pipeline_mode = #tpu.pipeline_mode<synchronous>, transform_indices = @transform_1, window_bounds = array<i64: 32, 784>}, {pipeline_mode = #tpu.pipeline_mode<synchronous>, transform_indices = @transform_2, window_bounds = array<i64: 32, 1>}, {pipeline_mode = #tpu.pipeline_mode<synchronous>, transform_indices = @transform_3, window_bounds = array<i64: 32, 1>}, {pipeline_mode = #tpu.pipeline_mode<synchronous>, transform_indices = @transform_4, window_bounds = array<i64: 32, 1>}, {pipeline_mode = #tpu.pipeline_mode<synchronous>, transform_indices = @transform_5, window_bounds = array<i64: 32, 1>}, {transform_indices = @transform_6, window_bounds = array<i64: 1, 32, 128>}]} {
    %c0 = arith.constant 0 : index
    %c0_0 = arith.constant 0 : index
    %0 = vector.load %arg4[%c0, %c0_0] : memref<32x1xf32, #tpu.memory_space<vmem>>, vector<32x1xf32>
    %c0_1 = arith.constant 0 : index
    %c0_2 = arith.constant 0 : index
    %1 = vector.load %arg5[%c0_1, %c0_2] : memref<32x1xf32, #tpu.memory_space<vmem>>, vector<32x1xf32>
    %c0_3 = arith.constant 0 : index
    %c0_4 = arith.constant 0 : index
    %c0_5 = arith.constant 0 : index
    %c0_6 = arith.constant 0 : index
    %2 = vector.load %arg2[%c0_3, %c0_4, %c0_5, %c0_6] : memref<1x4x16x192xbf16, #tpu.memory_space<vmem>>, vector<1x1x16x131xbf16>
    %3 = vector.shape_cast %2 : vector<1x1x16x131xbf16> to vector<16x131xbf16>
    %4 = vector.extract_strided_slice %3 {offsets = [0, 0], sizes = [16, 128], strides = [1, 1]} : vector<16x131xbf16> to vector<16x128xbf16>
    %c0_7 = arith.constant 0 : index
    %c0_8 = arith.constant 0 : index
    %5 = vector.load %arg9[%c0_7, %c0_8] : memref<784x128xbf16, #tpu.memory_space<vmem>>, vector<16x128xbf16>
    tpu.vector_store %arg9[%c0_7, %c0_8], %4 {strides = array<i32>} : memref<784x128xbf16, #tpu.memory_space<vmem>>, vector<16x128xbf16>,
    %6 = vector.extract_strided_slice %3 {offsets = [0, 1], sizes = [16, 128], strides = [1, 1]} : vector<16x131xbf16> to vector<16x128xbf16>
    %c32 = arith.constant 32 : index
    %c0_9 = arith.constant 0 : index
    %7 = vector.load %arg9[%c32, %c0_9] : memref<784x128xbf16, #tpu.memory_space<vmem>>, vector<16x128xbf16>
    tpu.vector_store %arg9[%c32, %c0_9], %6 {strides = array<i32>} : memref<784x128xbf16, #tpu.memory_space<vmem>>, vector<16x128xbf16>,
    %8 = vector.extract_strided_slice %3 {offsets = [0, 2], sizes = [16, 128], strides = [1, 1]} : vector<16x131xbf16> to vector<16x128xbf16>
    %c64 = arith.constant 64 : index
    %c0_10 = arith.constant 0 : index
    %9 = vector.load %arg9[%c64, %c0_10] : memref<784x128xbf16, #tpu.memory_space<vmem>>, vector<16x128xbf16>
    tpu.vector_store %arg9[%c64, %c0_10], %8 {strides = array<i32>} : memref<784x128xbf16, #tpu.memory_space<vmem>>, vector<16x128xbf16>,
    %10 = vector.extract_strided_slice %3 {offsets = [0, 3], sizes = [16, 128], strides = [1, 1]} : vector<16x131xbf16> to vector<16x128xbf16>
    %c96 = arith.constant 96 : index
    %c0_11 = arith.constant 0 : index
    %11 = vector.load %arg9[%c96, %c0_11] : memref<784x128xbf16, #tpu.memory_space<vmem>>, vector<16x128xbf16>
    tpu.vector_store %arg9[%c96, %c0_11], %10 {strides = array<i32>} : memref<784x128xbf16, #tpu.memory_space<vmem>>, vector<16x128xbf16>,
    %c0_12 = arith.constant 0 : index
    %c0_13 = arith.constant 0 : index
    %c0_14 = arith.constant 0 : index
    %c16 = arith.constant 16 : index
    %12 = vector.load %arg2[%c0_12, %c0_13, %c0_14, %c16] : memref<1x4x16x192xbf16, #tpu.memory_space<vmem>>, vector<1x1x16x131xbf16>
    %13 = vector.shape_cast %12 : vector<1x1x16x131xbf16> to vector<16x131xbf16>
    %14 = vector.extract_strided_slice %13 {offsets = [0, 0], sizes = [16, 128], strides = [1, 1]} : vector<16x131xbf16> to vector<16x128xbf16>
    %c224 = arith.constant 224 : index
    %c0_15 = arith.constant 0 : index
    %15 = vector.load %arg9[%c224, %c0_15] : memref<784x128xbf16, #tpu.memory_space<vmem>>, vector<16x128xbf16>
    tpu.vector_store %arg9[%c224, %c0_15], %14 {strides = array<i32>} : memref<784x128xbf16, #tpu.memory_space<vmem>>, vector<16x128xbf16>,
    %16 = vector.extract_strided_slice %13 {offsets = [0, 1], sizes = [16, 128], strides = [1, 1]} : vector<16x131xbf16> to vector<16x128xbf16>
    %c256 = arith.constant 256 : index
    %c0_16 = arith.constant 0 : index
    %17 = vector.load %arg9[%c256, %c0_16] : memref<784x128xbf16, #tpu.memory_space<vmem>>, vector<16x128xbf16>
    tpu.vector_store %arg9[%c256, %c0_16], %16 {strides = array<i32>} : memref<784x128xbf16, #tpu.memory_space<vmem>>, vector<16x128xbf16>,
    %18 = vector.extract_strided_slice %13 {offsets = [0, 2], sizes = [16, 128], strides = [1, 1]} : vector<16x131xbf16> to vector<16x128xbf16>
    %c288 = arith.constant 288 : index
    %c0_17 = arith.constant 0 : index
    %19 = vector.load %arg9[%c288, %c0_17] : memref<784x128xbf16, #tpu.memory_space<vmem>>, vector<16x128xbf16>
    tpu.vector_store %arg9[%c288, %c0_17], %18 {strides = array<i32>} : memref<784x128xbf16, #tpu.memory_space<vmem>>, vector<16x128xbf16>,
    %20 = vector.extract_strided_slice %13 {offsets = [0, 3], sizes = [16, 128], strides = [1, 1]} : vector<16x131xbf16> to vector<16x128xbf16>
    %c320 = arith.constant 320 : index
    %c0_18 = arith.constant 0 : index
    %21 = vector.load %arg9[%c320, %c0_18] : memref<784x128xbf16, #tpu.memory_space<vmem>>, vector<16x128xbf16>
    tpu.vector_store %arg9[%c320, %c0_18], %20 {strides = array<i32>} : memref<784x128xbf16, #tpu.memory_space<vmem>>, vector<16x128xbf16>,
    %c0_19 = arith.constant 0 : index
    %c0_20 = arith.constant 0 : index
    %c0_21 = arith.constant 0 : index
    %c32_22 = arith.constant 32 : index
    %22 = vector.load %arg2[%c0_19, %c0_20, %c0_21, %c32_22] : memref<1x4x16x192xbf16, #tpu.memory_space<vmem>>, vector<1x1x16x131xbf16>
    %23 = vector.shape_cast %22 : vector<1x1x16x131xbf16> to vector<16x131xbf16>
    %24 = vector.extract_strided_slice %23 {offsets = [0, 0], sizes = [16, 128], strides = [1, 1]} : vector<16x131xbf16> to vector<16x128xbf16>
    %c448 = arith.constant 448 : index
    %c0_23 = arith.constant 0 : index
    %25 = vector.load %arg9[%c448, %c0_23] : memref<784x128xbf16, #tpu.memory_space<vmem>>, vector<16x128xbf16>
    tpu.vector_store %arg9[%c448, %c0_23], %24 {strides = array<i32>} : memref<784x128xbf16, #tpu.memory_space<vmem>>, vector<16x128xbf16>,
    %26 = vector.extract_strided_slice %23 {offsets = [0, 1], sizes = [16, 128], strides = [1, 1]} : vector<16x131xbf16> to vector<16x128xbf16>
    %c480 = arith.constant 480 : index
    %c0_24 = arith.constant 0 : index
    %27 = vector.load %arg9[%c480, %c0_24] : memref<784x128xbf16, #tpu.memory_space<vmem>>, vector<16x128xbf16>
    tpu.vector_store %arg9[%c480, %c0_24], %26 {strides = array<i32>} : memref<784x128xbf16, #tpu.memory_space<vmem>>, vector<16x128xbf16>,
    %28 = vector.extract_strided_slice %23 {offsets = [0, 2], sizes = [16, 128], strides = [1, 1]} : vector<16x131xbf16> to vector<16x128xbf16>
    %c512 = arith.constant 512 : index
    %c0_25 = arith.constant 0 : index
    %29 = vector.load %arg9[%c512, %c0_25] : memref<784x128xbf16, #tpu.memory_space<vmem>>, vector<16x128xbf16>
    tpu.vector_store %arg9[%c512, %c0_25], %28 {strides = array<i32>} : memref<784x128xbf16, #tpu.memory_space<vmem>>, vector<16x128xbf16>,
    %30 = vector.extract_strided_slice %23 {offsets = [0, 3], sizes = [16, 128], strides = [1, 1]} : vector<16x131xbf16> to vector<16x128xbf16>
    %c544 = arith.constant 544 : index
    %c0_26 = arith.constant 0 : index
    %31 = vector.load %arg9[%c544, %c0_26] : memref<784x128xbf16, #tpu.memory_space<vmem>>, vector<16x128xbf16>
    tpu.vector_store %arg9[%c544, %c0_26], %30 {strides = array<i32>} : memref<784x128xbf16, #tpu.memory_space<vmem>>, vector<16x128xbf16>,
    %c0_27 = arith.constant 0 : index
    %c0_28 = arith.constant 0 : index
    %c0_29 = arith.constant 0 : index
    %c48 = arith.constant 48 : index
    %32 = vector.load %arg2[%c0_27, %c0_28, %c0_29, %c48] : memref<1x4x16x192xbf16, #tpu.memory_space<vmem>>, vector<1x1x16x131xbf16>
    %33 = vector.shape_cast %32 : vector<1x1x16x131xbf16> to vector<16x131xbf16>
    %34 = vector.extract_strided_slice %33 {offsets = [0, 0], sizes = [16, 128], strides = [1, 1]} : vector<16x131xbf16> to vector<16x128xbf16>
    %c672 = arith.constant 672 : index
    %c0_30 = arith.constant 0 : index
    %35 = vector.load %arg9[%c672, %c0_30] : memref<784x128xbf16, #tpu.memory_space<vmem>>, vector<16x128xbf16>
    tpu.vector_store %arg9[%c672, %c0_30], %34 {strides = array<i32>} : memref<784x128xbf16, #tpu.memory_space<vmem>>, vector<16x128xbf16>,
    %36 = vector.extract_strided_slice %33 {offsets = [0, 1], sizes = [16, 128], strides = [1, 1]} : vector<16x131xbf16> to vector<16x128xbf16>
    %c704 = arith.constant 704 : index
    %c0_31 = arith.constant 0 : index
    %37 = vector.load %arg9[%c704, %c0_31] : memref<784x128xbf16, #tpu.memory_space<vmem>>, vector<16x128xbf16>
    tpu.vector_store %arg9[%c704, %c0_31], %36 {strides = array<i32>} : memref<784x128xbf16, #tpu.memory_space<vmem>>, vector<16x128xbf16>,
    %38 = vector.extract_strided_slice %33 {offsets = [0, 2], sizes = [16, 128], strides = [1, 1]} : vector<16x131xbf16> to vector<16x128xbf16>
    %c736 = arith.constant 736 : index
    %c0_32 = arith.constant 0 : index
    %39 = vector.load %arg9[%c736, %c0_32] : memref<784x128xbf16, #tpu.memory_space<vmem>>, vector<16x128xbf16>
    tpu.vector_store %arg9[%c736, %c0_32], %38 {strides = array<i32>} : memref<784x128xbf16, #tpu.memory_space<vmem>>, vector<16x128xbf16>,
    %40 = vector.extract_strided_slice %33 {offsets = [0, 3], sizes = [16, 128], strides = [1, 1]} : vector<16x131xbf16> to vector<16x128xbf16>
    %c768 = arith.constant 768 : index
    %c0_33 = arith.constant 0 : index
    %41 = vector.load %arg9[%c768, %c0_33] : memref<784x128xbf16, #tpu.memory_space<vmem>>, vector<16x128xbf16>
    tpu.vector_store %arg9[%c768, %c0_33], %40 {strides = array<i32>} : memref<784x128xbf16, #tpu.memory_space<vmem>>, vector<16x128xbf16>,
    %c0_34 = arith.constant 0 : index
    %c1 = arith.constant 1 : index
    %c0_35 = arith.constant 0 : index
    %c0_36 = arith.constant 0 : index
    %42 = vector.load %arg2[%c0_34, %c1, %c0_35, %c0_36] : memref<1x4x16x192xbf16, #tpu.memory_space<vmem>>, vector<1x1x16x131xbf16>
    %43 = vector.shape_cast %42 : vector<1x1x16x131xbf16> to vector<16x131xbf16>
    %44 = vector.extract_strided_slice %43 {offsets = [0, 0], sizes = [16, 128], strides = [1, 1]} : vector<16x131xbf16> to vector<16x128xbf16>
    %c16_37 = arith.constant 16 : index
    %c0_38 = arith.constant 0 : index
    %45 = vector.load %arg9[%c16_37, %c0_38] : memref<784x128xbf16, #tpu.memory_space<vmem>>, vector<16x128xbf16>
    tpu.vector_store %arg9[%c16_37, %c0_38], %44 {strides = array<i32>} : memref<784x128xbf16, #tpu.memory_space<vmem>>, vector<16x128xbf16>,
    %46 = vector.extract_strided_slice %43 {offsets = [0, 1], sizes = [16, 128], strides = [1, 1]} : vector<16x131xbf16> to vector<16x128xbf16>
    %c48_39 = arith.constant 48 : index
    %c0_40 = arith.constant 0 : index
    %47 = vector.load %arg9[%c48_39, %c0_40] : memref<784x128xbf16, #tpu.memory_space<vmem>>, vector<16x128xbf16>
    tpu.vector_store %arg9[%c48_39, %c0_40], %46 {strides = array<i32>} : memref<784x128xbf16, #tpu.memory_space<vmem>>, vector<16x128xbf16>,
    %48 = vector.extract_strided_slice %43 {offsets = [0, 2], sizes = [16, 128], strides = [1, 1]} : vector<16x131xbf16> to vector<16x128xbf16>
    %c80 = arith.constant 80 : index
    %c0_41 = arith.constant 0 : index
    %49 = vector.load %arg9[%c80, %c0_41] : memref<784x128xbf16, #tpu.memory_space<vmem>>, vector<16x128xbf16>
    tpu.vector_store %arg9[%c80, %c0_41], %48 {strides = array<i32>} : memref<784x128xbf16, #tpu.memory_space<vmem>>, vector<16x128xbf16>,
    %c0_42 = arith.constant 0 : index
    %c1_43 = arith.constant 1 : index
    %c0_44 = arith.constant 0 : index
    %c16_45 = arith.constant 16 : index
    %50 = vector.load %arg2[%c0_42, %c1_43, %c0_44, %c16_45] : memref<1x4x16x192xbf16, #tpu.memory_space<vmem>>, vector<1x1x16x131xbf16>
    %51 = vector.shape_cast %50 : vector<1x1x16x131xbf16> to vector<16x131xbf16>
    %52 = vector.extract_strided_slice %51 {offsets = [0, 0], sizes = [16, 128], strides = [1, 1]} : vector<16x131xbf16> to vector<16x128xbf16>
    %c240 = arith.constant 240 : index
    %c0_46 = arith.constant 0 : index
    %53 = vector.load %arg9[%c240, %c0_46] : memref<784x128xbf16, #tpu.memory_space<vmem>>, vector<16x128xbf16>
    tpu.vector_store %arg9[%c240, %c0_46], %52 {strides = array<i32>} : memref<784x128xbf16, #tpu.memory_space<vmem>>, vector<16x128xbf16>,
    %54 = vector.extract_strided_slice %51 {offsets = [0, 1], sizes = [16, 128], strides = [1, 1]} : vector<16x131xbf16> to vector<16x128xbf16>
    %c272 = arith.constant 272 : index
    %c0_47 = arith.constant 0 : index
    %55 = vector.load %arg9[%c272, %c0_47] : memref<784x128xbf16, #tpu.memory_space<vmem>>, vector<16x128xbf16>
    tpu.vector_store %arg9[%c272, %c0_47], %54 {strides = array<i32>} : memref<784x128xbf16, #tpu.memory_space<vmem>>, vector<16x128xbf16>,
    %56 = vector.extract_strided_slice %51 {offsets = [0, 2], sizes = [16, 128], strides = [1, 1]} : vector<16x131xbf16> to vector<16x128xbf16>
    %c304 = arith.constant 304 : index
    %c0_48 = arith.constant 0 : index
    %57 = vector.load %arg9[%c304, %c0_48] : memref<784x128xbf16, #tpu.memory_space<vmem>>, vector<16x128xbf16>
    tpu.vector_store %arg9[%c304, %c0_48], %56 {strides = array<i32>} : memref<784x128xbf16, #tpu.memory_space<vmem>>, vector<16x128xbf16>,
    %c0_49 = arith.constant 0 : index
    %c1_50 = arith.constant 1 : index
    %c0_51 = arith.constant 0 : index
    %c32_52 = arith.constant 32 : index
    %58 = vector.load %arg2[%c0_49, %c1_50, %c0_51, %c32_52] : memref<1x4x16x192xbf16, #tpu.memory_space<vmem>>, vector<1x1x16x131xbf16>
    %59 = vector.shape_cast %58 : vector<1x1x16x131xbf16> to vector<16x131xbf16>
    %60 = vector.extract_strided_slice %59 {offsets = [0, 0], sizes = [16, 128], strides = [1, 1]} : vector<16x131xbf16> to vector<16x128xbf16>
    %c464 = arith.constant 464 : index
    %c0_53 = arith.constant 0 : index
    %61 = vector.load %arg9[%c464, %c0_53] : memref<784x128xbf16, #tpu.memory_space<vmem>>, vector<16x128xbf16>
    tpu.vector_store %arg9[%c464, %c0_53], %60 {strides = array<i32>} : memref<784x128xbf16, #tpu.memory_space<vmem>>, vector<16x128xbf16>,
    %62 = vector.extract_strided_slice %59 {offsets = [0, 1], sizes = [16, 128], strides = [1, 1]} : vector<16x131xbf16> to vector<16x128xbf16>
    %c496 = arith.constant 496 : index
    %c0_54 = arith.constant 0 : index
    %63 = vector.load %arg9[%c496, %c0_54] : memref<784x128xbf16, #tpu.memory_space<vmem>>, vector<16x128xbf16>
    tpu.vector_store %arg9[%c496, %c0_54], %62 {strides = array<i32>} : memref<784x128xbf16, #tpu.memory_space<vmem>>, vector<16x128xbf16>,
    %64 = vector.extract_strided_slice %59 {offsets = [0, 2], sizes = [16, 128], strides = [1, 1]} : vector<16x131xbf16> to vector<16x128xbf16>
    %c528 = arith.constant 528 : index
    %c0_55 = arith.constant 0 : index
    %65 = vector.load %arg9[%c528, %c0_55] : memref<784x128xbf16, #tpu.memory_space<vmem>>, vector<16x128xbf16>
    tpu.vector_store %arg9[%c528, %c0_55], %64 {strides = array<i32>} : memref<784x128xbf16, #tpu.memory_space<vmem>>, vector<16x128xbf16>,
    %c0_56 = arith.constant 0 : index
    %c1_57 = arith.constant 1 : index
    %c0_58 = arith.constant 0 : index
    %c48_59 = arith.constant 48 : index
    %66 = vector.load %arg2[%c0_56, %c1_57, %c0_58, %c48_59] : memref<1x4x16x192xbf16, #tpu.memory_space<vmem>>, vector<1x1x16x131xbf16>
    %67 = vector.shape_cast %66 : vector<1x1x16x131xbf16> to vector<16x131xbf16>
    %68 = vector.extract_strided_slice %67 {offsets = [0, 0], sizes = [16, 128], strides = [1, 1]} : vector<16x131xbf16> to vector<16x128xbf16>
    %c688 = arith.constant 688 : index
    %c0_60 = arith.constant 0 : index
    %69 = vector.load %arg9[%c688, %c0_60] : memref<784x128xbf16, #tpu.memory_space<vmem>>, vector<16x128xbf16>
    tpu.vector_store %arg9[%c688, %c0_60], %68 {strides = array<i32>} : memref<784x128xbf16, #tpu.memory_space<vmem>>, vector<16x128xbf16>,
    %70 = vector.extract_strided_slice %67 {offsets = [0, 1], sizes = [16, 128], strides = [1, 1]} : vector<16x131xbf16> to vector<16x128xbf16>
    %c720 = arith.constant 720 : index
    %c0_61 = arith.constant 0 : index
    %71 = vector.load %arg9[%c720, %c0_61] : memref<784x128xbf16, #tpu.memory_space<vmem>>, vector<16x128xbf16>
    tpu.vector_store %arg9[%c720, %c0_61], %70 {strides = array<i32>} : memref<784x128xbf16, #tpu.memory_space<vmem>>, vector<16x128xbf16>,
    %72 = vector.extract_strided_slice %67 {offsets = [0, 2], sizes = [16, 128], strides = [1, 1]} : vector<16x131xbf16> to vector<16x128xbf16>
    %c752 = arith.constant 752 : index
    %c0_62 = arith.constant 0 : index
    %73 = vector.load %arg9[%c752, %c0_62] : memref<784x128xbf16, #tpu.memory_space<vmem>>, vector<16x128xbf16>
    tpu.vector_store %arg9[%c752, %c0_62], %72 {strides = array<i32>} : memref<784x128xbf16, #tpu.memory_space<vmem>>, vector<16x128xbf16>,
    %c0_63 = arith.constant 0 : index
    %c2 = arith.constant 2 : index
    %c0_64 = arith.constant 0 : index
    %c0_65 = arith.constant 0 : index
    %74 = vector.load %arg2[%c0_63, %c2, %c0_64, %c0_65] : memref<1x4x16x192xbf16, #tpu.memory_space<vmem>>, vector<1x1x16x131xbf16>
    %75 = vector.shape_cast %74 : vector<1x1x16x131xbf16> to vector<16x131xbf16>
    %76 = vector.extract_strided_slice %75 {offsets = [0, 0], sizes = [16, 128], strides = [1, 1]} : vector<16x131xbf16> to vector<16x128xbf16>
    %c112 = arith.constant 112 : index
    %c0_66 = arith.constant 0 : index
    %77 = vector.load %arg9[%c112, %c0_66] : memref<784x128xbf16, #tpu.memory_space<vmem>>, vector<16x128xbf16>
    tpu.vector_store %arg9[%c112, %c0_66], %76 {strides = array<i32>} : memref<784x128xbf16, #tpu.memory_space<vmem>>, vector<16x128xbf16>,
    %78 = vector.extract_strided_slice %75 {offsets = [0, 1], sizes = [16, 128], strides = [1, 1]} : vector<16x131xbf16> to vector<16x128xbf16>
    %c144 = arith.constant 144 : index
    %c0_67 = arith.constant 0 : index
    %79 = vector.load %arg9[%c144, %c0_67] : memref<784x128xbf16, #tpu.memory_space<vmem>>, vector<16x128xbf16>
    tpu.vector_store %arg9[%c144, %c0_67], %78 {strides = array<i32>} : memref<784x128xbf16, #tpu.memory_space<vmem>>, vector<16x128xbf16>,
    %80 = vector.extract_strided_slice %75 {offsets = [0, 2], sizes = [16, 128], strides = [1, 1]} : vector<16x131xbf16> to vector<16x128xbf16>
    %c176 = arith.constant 176 : index
    %c0_68 = arith.constant 0 : index
    %81 = vector.load %arg9[%c176, %c0_68] : memref<784x128xbf16, #tpu.memory_space<vmem>>, vector<16x128xbf16>
    tpu.vector_store %arg9[%c176, %c0_68], %80 {strides = array<i32>} : memref<784x128xbf16, #tpu.memory_space<vmem>>, vector<16x128xbf16>,
    %82 = vector.extract_strided_slice %75 {offsets = [0, 3], sizes = [16, 128], strides = [1, 1]} : vector<16x131xbf16> to vector<16x128xbf16>
    %c208 = arith.constant 208 : index
    %c0_69 = arith.constant 0 : index
    %83 = vector.load %arg9[%c208, %c0_69] : memref<784x128xbf16, #tpu.memory_space<vmem>>, vector<16x128xbf16>
    tpu.vector_store %arg9[%c208, %c0_69], %82 {strides = array<i32>} : memref<784x128xbf16, #tpu.memory_space<vmem>>, vector<16x128xbf16>,
    %c0_70 = arith.constant 0 : index
    %c2_71 = arith.constant 2 : index
    %c0_72 = arith.constant 0 : index
    %c16_73 = arith.constant 16 : index
    %84 = vector.load %arg2[%c0_70, %c2_71, %c0_72, %c16_73] : memref<1x4x16x192xbf16, #tpu.memory_space<vmem>>, vector<1x1x16x131xbf16>
    %85 = vector.shape_cast %84 : vector<1x1x16x131xbf16> to vector<16x131xbf16>
    %86 = vector.extract_strided_slice %85 {offsets = [0, 0], sizes = [16, 128], strides = [1, 1]} : vector<16x131xbf16> to vector<16x128xbf16>
    %c336 = arith.constant 336 : index
    %c0_74 = arith.constant 0 : index
    %87 = vector.load %arg9[%c336, %c0_74] : memref<784x128xbf16, #tpu.memory_space<vmem>>, vector<16x128xbf16>
    tpu.vector_store %arg9[%c336, %c0_74], %86 {strides = array<i32>} : memref<784x128xbf16, #tpu.memory_space<vmem>>, vector<16x128xbf16>,
    %88 = vector.extract_strided_slice %85 {offsets = [0, 1], sizes = [16, 128], strides = [1, 1]} : vector<16x131xbf16> to vector<16x128xbf16>
    %c368 = arith.constant 368 : index
    %c0_75 = arith.constant 0 : index
    %89 = vector.load %arg9[%c368, %c0_75] : memref<784x128xbf16, #tpu.memory_space<vmem>>, vector<16x128xbf16>
    tpu.vector_store %arg9[%c368, %c0_75], %88 {strides = array<i32>} : memref<784x128xbf16, #tpu.memory_space<vmem>>, vector<16x128xbf16>,
    %90 = vector.extract_strided_slice %85 {offsets = [0, 2], sizes = [16, 128], strides = [1, 1]} : vector<16x131xbf16> to vector<16x128xbf16>
    %c400 = arith.constant 400 : index
    %c0_76 = arith.constant 0 : index
    %91 = vector.load %arg9[%c400, %c0_76] : memref<784x128xbf16, #tpu.memory_space<vmem>>, vector<16x128xbf16>
    tpu.vector_store %arg9[%c400, %c0_76], %90 {strides = array<i32>} : memref<784x128xbf16, #tpu.memory_space<vmem>>, vector<16x128xbf16>,
    %92 = vector.extract_strided_slice %85 {offsets = [0, 3], sizes = [16, 128], strides = [1, 1]} : vector<16x131xbf16> to vector<16x128xbf16>
    %c432 = arith.constant 432 : index
    %c0_77 = arith.constant 0 : index
    %93 = vector.load %arg9[%c432, %c0_77] : memref<784x128xbf16, #tpu.memory_space<vmem>>, vector<16x128xbf16>
    tpu.vector_store %arg9[%c432, %c0_77], %92 {strides = array<i32>} : memref<784x128xbf16, #tpu.memory_space<vmem>>, vector<16x128xbf16>,
    %c0_78 = arith.constant 0 : index
    %c2_79 = arith.constant 2 : index
    %c0_80 = arith.constant 0 : index
    %c32_81 = arith.constant 32 : index
    %94 = vector.load %arg2[%c0_78, %c2_79, %c0_80, %c32_81] : memref<1x4x16x192xbf16, #tpu.memory_space<vmem>>, vector<1x1x16x131xbf16>
    %95 = vector.shape_cast %94 : vector<1x1x16x131xbf16> to vector<16x131xbf16>
    %96 = vector.extract_strided_slice %95 {offsets = [0, 0], sizes = [16, 128], strides = [1, 1]} : vector<16x131xbf16> to vector<16x128xbf16>
    %c560 = arith.constant 560 : index
    %c0_82 = arith.constant 0 : index
    %97 = vector.load %arg9[%c560, %c0_82] : memref<784x128xbf16, #tpu.memory_space<vmem>>, vector<16x128xbf16>
    tpu.vector_store %arg9[%c560, %c0_82], %96 {strides = array<i32>} : memref<784x128xbf16, #tpu.memory_space<vmem>>, vector<16x128xbf16>,
    %98 = vector.extract_strided_slice %95 {offsets = [0, 1], sizes = [16, 128], strides = [1, 1]} : vector<16x131xbf16> to vector<16x128xbf16>
    %c592 = arith.constant 592 : index
    %c0_83 = arith.constant 0 : index
    %99 = vector.load %arg9[%c592, %c0_83] : memref<784x128xbf16, #tpu.memory_space<vmem>>, vector<16x128xbf16>
    tpu.vector_store %arg9[%c592, %c0_83], %98 {strides = array<i32>} : memref<784x128xbf16, #tpu.memory_space<vmem>>, vector<16x128xbf16>,
    %100 = vector.extract_strided_slice %95 {offsets = [0, 2], sizes = [16, 128], strides = [1, 1]} : vector<16x131xbf16> to vector<16x128xbf16>
    %c624 = arith.constant 624 : index
    %c0_84 = arith.constant 0 : index
    %101 = vector.load %arg9[%c624, %c0_84] : memref<784x128xbf16, #tpu.memory_space<vmem>>, vector<16x128xbf16>
    tpu.vector_store %arg9[%c624, %c0_84], %100 {strides = array<i32>} : memref<784x128xbf16, #tpu.memory_space<vmem>>, vector<16x128xbf16>,
    %102 = vector.extract_strided_slice %95 {offsets = [0, 3], sizes = [16, 128], strides = [1, 1]} : vector<16x131xbf16> to vector<16x128xbf16>
    %c656 = arith.constant 656 : index
    %c0_85 = arith.constant 0 : index
    %103 = vector.load %arg9[%c656, %c0_85] : memref<784x128xbf16, #tpu.memory_space<vmem>>, vector<16x128xbf16>
    tpu.vector_store %arg9[%c656, %c0_85], %102 {strides = array<i32>} : memref<784x128xbf16, #tpu.memory_space<vmem>>, vector<16x128xbf16>,
    %c0_86 = arith.constant 0 : index
    %c3 = arith.constant 3 : index
    %c0_87 = arith.constant 0 : index
    %c0_88 = arith.constant 0 : index
    %104 = vector.load %arg2[%c0_86, %c3, %c0_87, %c0_88] : memref<1x4x16x192xbf16, #tpu.memory_space<vmem>>, vector<1x1x16x131xbf16>
    %105 = vector.shape_cast %104 : vector<1x1x16x131xbf16> to vector<16x131xbf16>
    %106 = vector.extract_strided_slice %105 {offsets = [0, 0], sizes = [16, 128], strides = [1, 1]} : vector<16x131xbf16> to vector<16x128xbf16>
    %c128 = arith.constant 128 : index
    %c0_89 = arith.constant 0 : index
    %107 = vector.load %arg9[%c128, %c0_89] : memref<784x128xbf16, #tpu.memory_space<vmem>>, vector<16x128xbf16>
    tpu.vector_store %arg9[%c128, %c0_89], %106 {strides = array<i32>} : memref<784x128xbf16, #tpu.memory_space<vmem>>, vector<16x128xbf16>,
    %108 = vector.extract_strided_slice %105 {offsets = [0, 1], sizes = [16, 128], strides = [1, 1]} : vector<16x131xbf16> to vector<16x128xbf16>
    %c160 = arith.constant 160 : index
    %c0_90 = arith.constant 0 : index
    %109 = vector.load %arg9[%c160, %c0_90] : memref<784x128xbf16, #tpu.memory_space<vmem>>, vector<16x128xbf16>
    tpu.vector_store %arg9[%c160, %c0_90], %108 {strides = array<i32>} : memref<784x128xbf16, #tpu.memory_space<vmem>>, vector<16x128xbf16>,
    %110 = vector.extract_strided_slice %105 {offsets = [0, 2], sizes = [16, 128], strides = [1, 1]} : vector<16x131xbf16> to vector<16x128xbf16>
    %c192 = arith.constant 192 : index
    %c0_91 = arith.constant 0 : index
    %111 = vector.load %arg9[%c192, %c0_91] : memref<784x128xbf16, #tpu.memory_space<vmem>>, vector<16x128xbf16>
    tpu.vector_store %arg9[%c192, %c0_91], %110 {strides = array<i32>} : memref<784x128xbf16, #tpu.memory_space<vmem>>, vector<16x128xbf16>,
    %c0_92 = arith.constant 0 : index
    %c3_93 = arith.constant 3 : index
    %c0_94 = arith.constant 0 : index
    %c16_95 = arith.constant 16 : index
    %112 = vector.load %arg2[%c0_92, %c3_93, %c0_94, %c16_95] : memref<1x4x16x192xbf16, #tpu.memory_space<vmem>>, vector<1x1x16x131xbf16>
    %113 = vector.shape_cast %112 : vector<1x1x16x131xbf16> to vector<16x131xbf16>
    %114 = vector.extract_strided_slice %113 {offsets = [0, 0], sizes = [16, 128], strides = [1, 1]} : vector<16x131xbf16> to vector<16x128xbf16>
    %c352 = arith.constant 352 : index
    %c0_96 = arith.constant 0 : index
    %115 = vector.load %arg9[%c352, %c0_96] : memref<784x128xbf16, #tpu.memory_space<vmem>>, vector<16x128xbf16>
    tpu.vector_store %arg9[%c352, %c0_96], %114 {strides = array<i32>} : memref<784x128xbf16, #tpu.memory_space<vmem>>, vector<16x128xbf16>,
    %116 = vector.extract_strided_slice %113 {offsets = [0, 1], sizes = [16, 128], strides = [1, 1]} : vector<16x131xbf16> to vector<16x128xbf16>
    %c384 = arith.constant 384 : index
    %c0_97 = arith.constant 0 : index
    %117 = vector.load %arg9[%c384, %c0_97] : memref<784x128xbf16, #tpu.memory_space<vmem>>, vector<16x128xbf16>
    tpu.vector_store %arg9[%c384, %c0_97], %116 {strides = array<i32>} : memref<784x128xbf16, #tpu.memory_space<vmem>>, vector<16x128xbf16>,
    %118 = vector.extract_strided_slice %113 {offsets = [0, 2], sizes = [16, 128], strides = [1, 1]} : vector<16x131xbf16> to vector<16x128xbf16>
    %c416 = arith.constant 416 : index
    %c0_98 = arith.constant 0 : index
    %119 = vector.load %arg9[%c416, %c0_98] : memref<784x128xbf16, #tpu.memory_space<vmem>>, vector<16x128xbf16>
    tpu.vector_store %arg9[%c416, %c0_98], %118 {strides = array<i32>} : memref<784x128xbf16, #tpu.memory_space<vmem>>, vector<16x128xbf16>,
    %c0_99 = arith.constant 0 : index
    %c3_100 = arith.constant 3 : index
    %c0_101 = arith.constant 0 : index
    %c32_102 = arith.constant 32 : index
    %120 = vector.load %arg2[%c0_99, %c3_100, %c0_101, %c32_102] : memref<1x4x16x192xbf16, #tpu.memory_space<vmem>>, vector<1x1x16x131xbf16>
    %121 = vector.shape_cast %120 : vector<1x1x16x131xbf16> to vector<16x131xbf16>
    %122 = vector.extract_strided_slice %121 {offsets = [0, 0], sizes = [16, 128], strides = [1, 1]} : vector<16x131xbf16> to vector<16x128xbf16>
    %c576 = arith.constant 576 : index
    %c0_103 = arith.constant 0 : index
    %123 = vector.load %arg9[%c576, %c0_103] : memref<784x128xbf16, #tpu.memory_space<vmem>>, vector<16x128xbf16>
    tpu.vector_store %arg9[%c576, %c0_103], %122 {strides = array<i32>} : memref<784x128xbf16, #tpu.memory_space<vmem>>, vector<16x128xbf16>,
    %124 = vector.extract_strided_slice %121 {offsets = [0, 1], sizes = [16, 128], strides = [1, 1]} : vector<16x131xbf16> to vector<16x128xbf16>
    %c608 = arith.constant 608 : index
    %c0_104 = arith.constant 0 : index
    %125 = vector.load %arg9[%c608, %c0_104] : memref<784x128xbf16, #tpu.memory_space<vmem>>, vector<16x128xbf16>
    tpu.vector_store %arg9[%c608, %c0_104], %124 {strides = array<i32>} : memref<784x128xbf16, #tpu.memory_space<vmem>>, vector<16x128xbf16>,
    %126 = vector.extract_strided_slice %121 {offsets = [0, 2], sizes = [16, 128], strides = [1, 1]} : vector<16x131xbf16> to vector<16x128xbf16>
    %c640 = arith.constant 640 : index
    %c0_105 = arith.constant 0 : index
    %127 = vector.load %arg9[%c640, %c0_105] : memref<784x128xbf16, #tpu.memory_space<vmem>>, vector<16x128xbf16>
    tpu.vector_store %arg9[%c640, %c0_105], %126 {strides = array<i32>} : memref<784x128xbf16, #tpu.memory_space<vmem>>, vector<16x128xbf16>,
    %c0_106 = arith.constant 0 : index
    %c0_107 = arith.constant 0 : index
    %128 = vector.load %arg3[%c0_106, %c0_107] : memref<32x784xbf16, #tpu.memory_space<vmem>>, vector<32x784xbf16>
    %c0_108 = arith.constant 0 : index
    %c0_109 = arith.constant 0 : index
    %129 = vector.load %arg9[%c0_108, %c0_109] : memref<784x128xbf16, #tpu.memory_space<vmem>>, vector<784x128xbf16>
    %cst = arith.constant dense<0.000000e+00> : vector<32x128xf32>
    %130 = tpu.matmul %128, %129, %cst {dimension_numbers = #tpu.dot_dimension_numbers<[1], [0], [0], [1], [0, 0, 1, 1], [], []>} : vector<32x784xbf16>, vector<784x128xbf16>, vector<32x128xf32> -> vector<32x128xf32>
    %131 = vector.broadcast %0 : vector<32x1xf32> to vector<32x128xf32>
    %132 = arith.mulf %130, %131 : vector<32x128xf32>
    %133 = vector.broadcast %1 : vector<32x1xf32> to vector<32x128xf32>
    %134 = arith.addf %132, %133 : vector<32x128xf32>
    %cst_110 = arith.constant 0.000000e+00 : f32
    %135 = vector.broadcast %cst_110 : f32 to vector<32x128xf32>
    %136 = arith.maximumf %134, %135 : vector<32x128xf32>
    %137 = arith.truncf %136 : vector<32x128xf32> to vector<32x128xbf16>
    %c0_111 = arith.constant 0 : index
    %c0_112 = arith.constant 0 : index
    %c0_113 = arith.constant 0 : index
    %138 = vector.load %arg8[%c0_111, %c0_112, %c0_113] : memref<1x32x128xbf16, #tpu.memory_space<vmem>>, vector<1x32x128xbf16>
    %139 = vector.shape_cast %138 : vector<1x32x128xbf16> to vector<32x128xbf16>
    %140 = vector.shape_cast %137 : vector<32x128xbf16> to vector<1x32x128xbf16>
    tpu.vector_store %arg8[%c0_111, %c0_112, %c0_113], %140 {strides = array<i32>} : memref<1x32x128xbf16, #tpu.memory_space<vmem>>, vector<1x32x128xbf16>,
    return
  }
  func.func @transform_0(%arg0: i32, %arg1: i32) -> (i32, i32, i32, i32) {
    %c1_i32 = arith.constant 1 : i32
    %0 = arith.muli %arg0, %c1_i32 : i32
    %1 = arith.addi %0, %arg1 : i32
    %c0_i32 = arith.constant 0 : i32
    %c0_i32_0 = arith.constant 0 : i32
    %c0_i32_1 = arith.constant 0 : i32
    %c0_i32_2 = arith.constant 0 : i32
    return %1, %c0_i32, %c0_i32_0, %c0_i32_1 : i32, i32, i32, i32
  }
  func.func @transform_1(%arg0: i32, %arg1: i32) -> (i32, i32) {
    %c0_i32 = arith.constant 0 : i32
    %c0_i32_0 = arith.constant 0 : i32
    %c0_i32_1 = arith.constant 0 : i32
    return %c0_i32, %c0_i32_0 : i32, i32
  }
  func.func @transform_2(%arg0: i32, %arg1: i32) -> (i32, i32) {
    %c0_i32 = arith.constant 0 : i32
    %c0_i32_0 = arith.constant 0 : i32
    %c0_i32_1 = arith.constant 0 : i32
    return %c0_i32, %c0_i32_0 : i32, i32
  }
  func.func @transform_3(%arg0: i32, %arg1: i32) -> (i32, i32) {
    %c0_i32 = arith.constant 0 : i32
    %c0_i32_0 = arith.constant 0 : i32
    %c0_i32_1 = arith.constant 0 : i32
    return %c0_i32, %c0_i32_0 : i32, i32
  }
  func.func @transform_4(%arg0: i32, %arg1: i32) -> (i32, i32) {
    %c0_i32 = arith.constant 0 : i32
    %c0_i32_0 = arith.constant 0 : i32
    %c0_i32_1 = arith.constant 0 : i32
    return %c0_i32, %c0_i32_0 : i32, i32
  }
  func.func @transform_5(%arg0: i32, %arg1: i32) -> (i32, i32) {
    %c0_i32 = arith.constant 0 : i32
    %c0_i32_0 = arith.constant 0 : i32
    %c0_i32_1 = arith.constant 0 : i32
    return %c0_i32, %c0_i32_0 : i32, i32
  }
  func.func @transform_6(%arg0: i32, %arg1: i32) -> (i32, i32, i32) {
    %c0_i32 = arith.constant 0 : i32
    %c0_i32_0 = arith.constant 0 : i32
    return %arg0, %c0_i32, %arg1 : i32, i32, i32
  }
}

module attributes {stable_mosaic.version = 11 : i64} {
  func.func @kernel(%arg0: i32, %arg1: i32, %arg2: memref<1x1x32x176xbf16, #tpu.memory_space<vmem>>, %arg3: memref<32x288xbf16, #tpu.memory_space<vmem>>, %arg4: memref<32x1xf32, #tpu.memory_space<vmem>>, %arg5: memref<32x1xf32, #tpu.memory_space<vmem>>, %arg6: memref<32x1xf32, #tpu.memory_space<vmem>>, %arg7: memref<32x1xf32, #tpu.memory_space<vmem>>, %arg8: memref<1x32x128xbf16, #tpu.memory_space<vmem>>, %arg9: memref<288x128xbf16, #tpu.memory_space<vmem>>) attributes {dimension_semantics = [#tpu.dimension_semantics<parallel>, #tpu.dimension_semantics<parallel>], iteration_bounds = array<i64: 2, 1>, scalar_prefetch = 0 : i64, scratch_operands = 1 : i64, tpu.core_type = #tpu.core_type<tc>, window_params = [{transform_indices = @transform_0, window_bounds = array<i64: 1, 1, 32, 176>}, {pipeline_mode = #tpu.pipeline_mode<synchronous>, transform_indices = @transform_1, window_bounds = array<i64: 32, 288>}, {pipeline_mode = #tpu.pipeline_mode<synchronous>, transform_indices = @transform_2, window_bounds = array<i64: 32, 1>}, {pipeline_mode = #tpu.pipeline_mode<synchronous>, transform_indices = @transform_3, window_bounds = array<i64: 32, 1>}, {pipeline_mode = #tpu.pipeline_mode<synchronous>, transform_indices = @transform_4, window_bounds = array<i64: 32, 1>}, {pipeline_mode = #tpu.pipeline_mode<synchronous>, transform_indices = @transform_5, window_bounds = array<i64: 32, 1>}, {transform_indices = @transform_6, window_bounds = array<i64: 1, 32, 128>}]} {
    %c0 = arith.constant 0 : index
    %c0_0 = arith.constant 0 : index
    %0 = vector.load %arg4[%c0, %c0_0] : memref<32x1xf32, #tpu.memory_space<vmem>>, vector<32x1xf32>
    %c0_1 = arith.constant 0 : index
    %c0_2 = arith.constant 0 : index
    %1 = vector.load %arg5[%c0_1, %c0_2] : memref<32x1xf32, #tpu.memory_space<vmem>>, vector<32x1xf32>
    %c0_3 = arith.constant 0 : index
    %c0_4 = arith.constant 0 : index
    %c0_5 = arith.constant 0 : index
    %c0_6 = arith.constant 0 : index
    %2 = vector.load %arg2[%c0_3, %c0_4, %c0_5, %c0_6] : memref<1x1x32x176xbf16, #tpu.memory_space<vmem>>, vector<1x1x32x130xbf16>
    %3 = vector.shape_cast %2 : vector<1x1x32x130xbf16> to vector<32x130xbf16>
    %4 = vector.extract_strided_slice %3 {offsets = [0, 0], sizes = [32, 128], strides = [1, 1]} : vector<32x130xbf16> to vector<32x128xbf16>
    %c0_7 = arith.constant 0 : index
    %c0_8 = arith.constant 0 : index
    %5 = vector.load %arg9[%c0_7, %c0_8] : memref<288x128xbf16, #tpu.memory_space<vmem>>, vector<32x128xbf16>
    tpu.vector_store %arg9[%c0_7, %c0_8], %4 {strides = array<i32>} : memref<288x128xbf16, #tpu.memory_space<vmem>>, vector<32x128xbf16>,
    %6 = vector.extract_strided_slice %3 {offsets = [0, 1], sizes = [32, 128], strides = [1, 1]} : vector<32x130xbf16> to vector<32x128xbf16>
    %c32 = arith.constant 32 : index
    %c0_9 = arith.constant 0 : index
    %7 = vector.load %arg9[%c32, %c0_9] : memref<288x128xbf16, #tpu.memory_space<vmem>>, vector<32x128xbf16>
    tpu.vector_store %arg9[%c32, %c0_9], %6 {strides = array<i32>} : memref<288x128xbf16, #tpu.memory_space<vmem>>, vector<32x128xbf16>,
    %8 = vector.extract_strided_slice %3 {offsets = [0, 2], sizes = [32, 128], strides = [1, 1]} : vector<32x130xbf16> to vector<32x128xbf16>
    %c64 = arith.constant 64 : index
    %c0_10 = arith.constant 0 : index
    %9 = vector.load %arg9[%c64, %c0_10] : memref<288x128xbf16, #tpu.memory_space<vmem>>, vector<32x128xbf16>
    tpu.vector_store %arg9[%c64, %c0_10], %8 {strides = array<i32>} : memref<288x128xbf16, #tpu.memory_space<vmem>>, vector<32x128xbf16>,
    %c0_11 = arith.constant 0 : index
    %c0_12 = arith.constant 0 : index
    %c0_13 = arith.constant 0 : index
    %c16 = arith.constant 16 : index
    %10 = vector.load %arg2[%c0_11, %c0_12, %c0_13, %c16] : memref<1x1x32x176xbf16, #tpu.memory_space<vmem>>, vector<1x1x32x130xbf16>
    %11 = vector.shape_cast %10 : vector<1x1x32x130xbf16> to vector<32x130xbf16>
    %12 = vector.extract_strided_slice %11 {offsets = [0, 0], sizes = [32, 128], strides = [1, 1]} : vector<32x130xbf16> to vector<32x128xbf16>
    %c96 = arith.constant 96 : index
    %c0_14 = arith.constant 0 : index
    %13 = vector.load %arg9[%c96, %c0_14] : memref<288x128xbf16, #tpu.memory_space<vmem>>, vector<32x128xbf16>
    tpu.vector_store %arg9[%c96, %c0_14], %12 {strides = array<i32>} : memref<288x128xbf16, #tpu.memory_space<vmem>>, vector<32x128xbf16>,
    %14 = vector.extract_strided_slice %11 {offsets = [0, 1], sizes = [32, 128], strides = [1, 1]} : vector<32x130xbf16> to vector<32x128xbf16>
    %c128 = arith.constant 128 : index
    %c0_15 = arith.constant 0 : index
    %15 = vector.load %arg9[%c128, %c0_15] : memref<288x128xbf16, #tpu.memory_space<vmem>>, vector<32x128xbf16>
    tpu.vector_store %arg9[%c128, %c0_15], %14 {strides = array<i32>} : memref<288x128xbf16, #tpu.memory_space<vmem>>, vector<32x128xbf16>,
    %16 = vector.extract_strided_slice %11 {offsets = [0, 2], sizes = [32, 128], strides = [1, 1]} : vector<32x130xbf16> to vector<32x128xbf16>
    %c160 = arith.constant 160 : index
    %c0_16 = arith.constant 0 : index
    %17 = vector.load %arg9[%c160, %c0_16] : memref<288x128xbf16, #tpu.memory_space<vmem>>, vector<32x128xbf16>
    tpu.vector_store %arg9[%c160, %c0_16], %16 {strides = array<i32>} : memref<288x128xbf16, #tpu.memory_space<vmem>>, vector<32x128xbf16>,
    %c0_17 = arith.constant 0 : index
    %c0_18 = arith.constant 0 : index
    %c0_19 = arith.constant 0 : index
    %c32_20 = arith.constant 32 : index
    %18 = vector.load %arg2[%c0_17, %c0_18, %c0_19, %c32_20] : memref<1x1x32x176xbf16, #tpu.memory_space<vmem>>, vector<1x1x32x130xbf16>
    %19 = vector.shape_cast %18 : vector<1x1x32x130xbf16> to vector<32x130xbf16>
    %20 = vector.extract_strided_slice %19 {offsets = [0, 0], sizes = [32, 128], strides = [1, 1]} : vector<32x130xbf16> to vector<32x128xbf16>
    %c192 = arith.constant 192 : index
    %c0_21 = arith.constant 0 : index
    %21 = vector.load %arg9[%c192, %c0_21] : memref<288x128xbf16, #tpu.memory_space<vmem>>, vector<32x128xbf16>
    tpu.vector_store %arg9[%c192, %c0_21], %20 {strides = array<i32>} : memref<288x128xbf16, #tpu.memory_space<vmem>>, vector<32x128xbf16>,
    %22 = vector.extract_strided_slice %19 {offsets = [0, 1], sizes = [32, 128], strides = [1, 1]} : vector<32x130xbf16> to vector<32x128xbf16>
    %c224 = arith.constant 224 : index
    %c0_22 = arith.constant 0 : index
    %23 = vector.load %arg9[%c224, %c0_22] : memref<288x128xbf16, #tpu.memory_space<vmem>>, vector<32x128xbf16>
    tpu.vector_store %arg9[%c224, %c0_22], %22 {strides = array<i32>} : memref<288x128xbf16, #tpu.memory_space<vmem>>, vector<32x128xbf16>,
    %24 = vector.extract_strided_slice %19 {offsets = [0, 2], sizes = [32, 128], strides = [1, 1]} : vector<32x130xbf16> to vector<32x128xbf16>
    %c256 = arith.constant 256 : index
    %c0_23 = arith.constant 0 : index
    %25 = vector.load %arg9[%c256, %c0_23] : memref<288x128xbf16, #tpu.memory_space<vmem>>, vector<32x128xbf16>
    tpu.vector_store %arg9[%c256, %c0_23], %24 {strides = array<i32>} : memref<288x128xbf16, #tpu.memory_space<vmem>>, vector<32x128xbf16>,
    %c0_24 = arith.constant 0 : index
    %c0_25 = arith.constant 0 : index
    %26 = vector.load %arg3[%c0_24, %c0_25] : memref<32x288xbf16, #tpu.memory_space<vmem>>, vector<32x288xbf16>
    %c0_26 = arith.constant 0 : index
    %c0_27 = arith.constant 0 : index
    %27 = vector.load %arg9[%c0_26, %c0_27] : memref<288x128xbf16, #tpu.memory_space<vmem>>, vector<288x128xbf16>
    %cst = arith.constant dense<0.000000e+00> : vector<32x128xf32>
    %28 = tpu.matmul %26, %27, %cst {dimension_numbers = #tpu.dot_dimension_numbers<[1], [0], [0], [1], [0, 0, 1, 1], [], []>} : vector<32x288xbf16>, vector<288x128xbf16>, vector<32x128xf32> -> vector<32x128xf32>
    %29 = vector.broadcast %0 : vector<32x1xf32> to vector<32x128xf32>
    %30 = arith.mulf %28, %29 : vector<32x128xf32>
    %31 = vector.broadcast %1 : vector<32x1xf32> to vector<32x128xf32>
    %32 = arith.addf %30, %31 : vector<32x128xf32>
    %cst_28 = arith.constant 0.000000e+00 : f32
    %33 = vector.broadcast %cst_28 : f32 to vector<32x128xf32>
    %34 = arith.maximumf %32, %33 : vector<32x128xf32>
    %35 = arith.truncf %34 : vector<32x128xf32> to vector<32x128xbf16>
    %c0_29 = arith.constant 0 : index
    %c0_30 = arith.constant 0 : index
    %c0_31 = arith.constant 0 : index
    %36 = vector.load %arg8[%c0_29, %c0_30, %c0_31] : memref<1x32x128xbf16, #tpu.memory_space<vmem>>, vector<1x32x128xbf16>
    %37 = vector.shape_cast %36 : vector<1x32x128xbf16> to vector<32x128xbf16>
    %38 = vector.shape_cast %35 : vector<32x128xbf16> to vector<1x32x128xbf16>
    tpu.vector_store %arg8[%c0_29, %c0_30, %c0_31], %38 {strides = array<i32>} : memref<1x32x128xbf16, #tpu.memory_space<vmem>>, vector<1x32x128xbf16>,
    return
  }
  func.func @transform_0(%arg0: i32, %arg1: i32) -> (i32, i32, i32, i32) {
    %c1_i32 = arith.constant 1 : i32
    %0 = arith.muli %arg0, %c1_i32 : i32
    %1 = arith.addi %0, %arg1 : i32
    %c0_i32 = arith.constant 0 : i32
    %c0_i32_0 = arith.constant 0 : i32
    %c0_i32_1 = arith.constant 0 : i32
    %c0_i32_2 = arith.constant 0 : i32
    return %1, %c0_i32, %c0_i32_0, %c0_i32_1 : i32, i32, i32, i32
  }
  func.func @transform_1(%arg0: i32, %arg1: i32) -> (i32, i32) {
    %c0_i32 = arith.constant 0 : i32
    %c0_i32_0 = arith.constant 0 : i32
    %c0_i32_1 = arith.constant 0 : i32
    return %c0_i32, %c0_i32_0 : i32, i32
  }
  func.func @transform_2(%arg0: i32, %arg1: i32) -> (i32, i32) {
    %c0_i32 = arith.constant 0 : i32
    %c0_i32_0 = arith.constant 0 : i32
    %c0_i32_1 = arith.constant 0 : i32
    return %c0_i32, %c0_i32_0 : i32, i32
  }
  func.func @transform_3(%arg0: i32, %arg1: i32) -> (i32, i32) {
    %c0_i32 = arith.constant 0 : i32
    %c0_i32_0 = arith.constant 0 : i32
    %c0_i32_1 = arith.constant 0 : i32
    return %c0_i32, %c0_i32_0 : i32, i32
  }
  func.func @transform_4(%arg0: i32, %arg1: i32) -> (i32, i32) {
    %c0_i32 = arith.constant 0 : i32
    %c0_i32_0 = arith.constant 0 : i32
    %c0_i32_1 = arith.constant 0 : i32
    return %c0_i32, %c0_i32_0 : i32, i32
  }
  func.func @transform_5(%arg0: i32, %arg1: i32) -> (i32, i32) {
    %c0_i32 = arith.constant 0 : i32
    %c0_i32_0 = arith.constant 0 : i32
    %c0_i32_1 = arith.constant 0 : i32
    return %c0_i32, %c0_i32_0 : i32, i32
  }
  func.func @transform_6(%arg0: i32, %arg1: i32) -> (i32, i32, i32) {
    %c0_i32 = arith.constant 0 : i32
    %c0_i32_0 = arith.constant 0 : i32
    return %arg0, %c0_i32, %arg1 : i32, i32, i32
  }
}

module attributes {stable_mosaic.version = 11 : i64} {
  func.func @kernel(%arg0: i32, %arg1: i32, %arg2: memref<1x4x32x48xbf16, #tpu.memory_space<vmem>>, %arg3: memref<32x288xbf16, #tpu.memory_space<vmem>>, %arg4: memref<32x1xf32, #tpu.memory_space<vmem>>, %arg5: memref<32x1xf32, #tpu.memory_space<vmem>>, %arg6: memref<32x1xf32, #tpu.memory_space<vmem>>, %arg7: memref<32x1xf32, #tpu.memory_space<vmem>>, %arg8: memref<1x32x32xf32, #tpu.memory_space<vmem>>, %arg9: memref<288x32xbf16, #tpu.memory_space<vmem>>) attributes {dimension_semantics = [#tpu.dimension_semantics<parallel>, #tpu.dimension_semantics<parallel>], iteration_bounds = array<i64: 2, 1>, scalar_prefetch = 0 : i64, scratch_operands = 1 : i64, tpu.core_type = #tpu.core_type<tc>, window_params = [{transform_indices = @transform_0, window_bounds = array<i64: 1, 4, 32, 48>}, {pipeline_mode = #tpu.pipeline_mode<synchronous>, transform_indices = @transform_1, window_bounds = array<i64: 32, 288>}, {pipeline_mode = #tpu.pipeline_mode<synchronous>, transform_indices = @transform_2, window_bounds = array<i64: 32, 1>}, {pipeline_mode = #tpu.pipeline_mode<synchronous>, transform_indices = @transform_3, window_bounds = array<i64: 32, 1>}, {pipeline_mode = #tpu.pipeline_mode<synchronous>, transform_indices = @transform_4, window_bounds = array<i64: 32, 1>}, {pipeline_mode = #tpu.pipeline_mode<synchronous>, transform_indices = @transform_5, window_bounds = array<i64: 32, 1>}, {transform_indices = @transform_6, window_bounds = array<i64: 1, 32, 32>}]} {
    %c0 = arith.constant 0 : index
    %c0_0 = arith.constant 0 : index
    %0 = vector.load %arg4[%c0, %c0_0] : memref<32x1xf32, #tpu.memory_space<vmem>>, vector<32x1xf32>
    %c0_1 = arith.constant 0 : index
    %c0_2 = arith.constant 0 : index
    %1 = vector.load %arg5[%c0_1, %c0_2] : memref<32x1xf32, #tpu.memory_space<vmem>>, vector<32x1xf32>
    %c0_3 = arith.constant 0 : index
    %c0_4 = arith.constant 0 : index
    %c0_5 = arith.constant 0 : index
    %c0_6 = arith.constant 0 : index
    %2 = vector.load %arg2[%c0_3, %c0_4, %c0_5, %c0_6] : memref<1x4x32x48xbf16, #tpu.memory_space<vmem>>, vector<1x1x32x33xbf16>
    %3 = vector.shape_cast %2 : vector<1x1x32x33xbf16> to vector<32x33xbf16>
    %4 = vector.extract_strided_slice %3 {offsets = [0, 0], sizes = [32, 32], strides = [1, 1]} : vector<32x33xbf16> to vector<32x32xbf16>
    %c0_7 = arith.constant 0 : index
    %c0_8 = arith.constant 0 : index
    %5 = vector.load %arg9[%c0_7, %c0_8] : memref<288x32xbf16, #tpu.memory_space<vmem>>, vector<32x32xbf16>
    tpu.vector_store %arg9[%c0_7, %c0_8], %4 {strides = array<i32>} : memref<288x32xbf16, #tpu.memory_space<vmem>>, vector<32x32xbf16>,
    %6 = vector.extract_strided_slice %3 {offsets = [0, 1], sizes = [32, 32], strides = [1, 1]} : vector<32x33xbf16> to vector<32x32xbf16>
    %c64 = arith.constant 64 : index
    %c0_9 = arith.constant 0 : index
    %7 = vector.load %arg9[%c64, %c0_9] : memref<288x32xbf16, #tpu.memory_space<vmem>>, vector<32x32xbf16>
    tpu.vector_store %arg9[%c64, %c0_9], %6 {strides = array<i32>} : memref<288x32xbf16, #tpu.memory_space<vmem>>, vector<32x32xbf16>,
    %c0_10 = arith.constant 0 : index
    %c0_11 = arith.constant 0 : index
    %c0_12 = arith.constant 0 : index
    %c8 = arith.constant 8 : index
    %8 = vector.load %arg2[%c0_10, %c0_11, %c0_12, %c8] : memref<1x4x32x48xbf16, #tpu.memory_space<vmem>>, vector<1x1x32x33xbf16>
    %9 = vector.shape_cast %8 : vector<1x1x32x33xbf16> to vector<32x33xbf16>
    %10 = vector.extract_strided_slice %9 {offsets = [0, 0], sizes = [32, 32], strides = [1, 1]} : vector<32x33xbf16> to vector<32x32xbf16>
    %c192 = arith.constant 192 : index
    %c0_13 = arith.constant 0 : index
    %11 = vector.load %arg9[%c192, %c0_13] : memref<288x32xbf16, #tpu.memory_space<vmem>>, vector<32x32xbf16>
    tpu.vector_store %arg9[%c192, %c0_13], %10 {strides = array<i32>} : memref<288x32xbf16, #tpu.memory_space<vmem>>, vector<32x32xbf16>,
    %12 = vector.extract_strided_slice %9 {offsets = [0, 1], sizes = [32, 32], strides = [1, 1]} : vector<32x33xbf16> to vector<32x32xbf16>
    %c256 = arith.constant 256 : index
    %c0_14 = arith.constant 0 : index
    %13 = vector.load %arg9[%c256, %c0_14] : memref<288x32xbf16, #tpu.memory_space<vmem>>, vector<32x32xbf16>
    tpu.vector_store %arg9[%c256, %c0_14], %12 {strides = array<i32>} : memref<288x32xbf16, #tpu.memory_space<vmem>>, vector<32x32xbf16>,
    %c0_15 = arith.constant 0 : index
    %c1 = arith.constant 1 : index
    %c0_16 = arith.constant 0 : index
    %c0_17 = arith.constant 0 : index
    %14 = vector.load %arg2[%c0_15, %c1, %c0_16, %c0_17] : memref<1x4x32x48xbf16, #tpu.memory_space<vmem>>, vector<1x1x32x33xbf16>
    %15 = vector.shape_cast %14 : vector<1x1x32x33xbf16> to vector<32x33xbf16>
    %16 = vector.extract_strided_slice %15 {offsets = [0, 0], sizes = [32, 32], strides = [1, 1]} : vector<32x33xbf16> to vector<32x32xbf16>
    %c32 = arith.constant 32 : index
    %c0_18 = arith.constant 0 : index
    %17 = vector.load %arg9[%c32, %c0_18] : memref<288x32xbf16, #tpu.memory_space<vmem>>, vector<32x32xbf16>
    tpu.vector_store %arg9[%c32, %c0_18], %16 {strides = array<i32>} : memref<288x32xbf16, #tpu.memory_space<vmem>>, vector<32x32xbf16>,
    %c0_19 = arith.constant 0 : index
    %c1_20 = arith.constant 1 : index
    %c0_21 = arith.constant 0 : index
    %c8_22 = arith.constant 8 : index
    %18 = vector.load %arg2[%c0_19, %c1_20, %c0_21, %c8_22] : memref<1x4x32x48xbf16, #tpu.memory_space<vmem>>, vector<1x1x32x33xbf16>
    %19 = vector.shape_cast %18 : vector<1x1x32x33xbf16> to vector<32x33xbf16>
    %20 = vector.extract_strided_slice %19 {offsets = [0, 0], sizes = [32, 32], strides = [1, 1]} : vector<32x33xbf16> to vector<32x32xbf16>
    %c224 = arith.constant 224 : index
    %c0_23 = arith.constant 0 : index
    %21 = vector.load %arg9[%c224, %c0_23] : memref<288x32xbf16, #tpu.memory_space<vmem>>, vector<32x32xbf16>
    tpu.vector_store %arg9[%c224, %c0_23], %20 {strides = array<i32>} : memref<288x32xbf16, #tpu.memory_space<vmem>>, vector<32x32xbf16>,
    %c0_24 = arith.constant 0 : index
    %c2 = arith.constant 2 : index
    %c0_25 = arith.constant 0 : index
    %c0_26 = arith.constant 0 : index
    %22 = vector.load %arg2[%c0_24, %c2, %c0_25, %c0_26] : memref<1x4x32x48xbf16, #tpu.memory_space<vmem>>, vector<1x1x32x33xbf16>
    %23 = vector.shape_cast %22 : vector<1x1x32x33xbf16> to vector<32x33xbf16>
    %24 = vector.extract_strided_slice %23 {offsets = [0, 0], sizes = [32, 32], strides = [1, 1]} : vector<32x33xbf16> to vector<32x32xbf16>
    %c96 = arith.constant 96 : index
    %c0_27 = arith.constant 0 : index
    %25 = vector.load %arg9[%c96, %c0_27] : memref<288x32xbf16, #tpu.memory_space<vmem>>, vector<32x32xbf16>
    tpu.vector_store %arg9[%c96, %c0_27], %24 {strides = array<i32>} : memref<288x32xbf16, #tpu.memory_space<vmem>>, vector<32x32xbf16>,
    %26 = vector.extract_strided_slice %23 {offsets = [0, 1], sizes = [32, 32], strides = [1, 1]} : vector<32x33xbf16> to vector<32x32xbf16>
    %c160 = arith.constant 160 : index
    %c0_28 = arith.constant 0 : index
    %27 = vector.load %arg9[%c160, %c0_28] : memref<288x32xbf16, #tpu.memory_space<vmem>>, vector<32x32xbf16>
    tpu.vector_store %arg9[%c160, %c0_28], %26 {strides = array<i32>} : memref<288x32xbf16, #tpu.memory_space<vmem>>, vector<32x32xbf16>,
    %c0_29 = arith.constant 0 : index
    %c3 = arith.constant 3 : index
    %c0_30 = arith.constant 0 : index
    %c0_31 = arith.constant 0 : index
    %28 = vector.load %arg2[%c0_29, %c3, %c0_30, %c0_31] : memref<1x4x32x48xbf16, #tpu.memory_space<vmem>>, vector<1x1x32x33xbf16>
    %29 = vector.shape_cast %28 : vector<1x1x32x33xbf16> to vector<32x33xbf16>
    %30 = vector.extract_strided_slice %29 {offsets = [0, 0], sizes = [32, 32], strides = [1, 1]} : vector<32x33xbf16> to vector<32x32xbf16>
    %c128 = arith.constant 128 : index
    %c0_32 = arith.constant 0 : index
    %31 = vector.load %arg9[%c128, %c0_32] : memref<288x32xbf16, #tpu.memory_space<vmem>>, vector<32x32xbf16>
    tpu.vector_store %arg9[%c128, %c0_32], %30 {strides = array<i32>} : memref<288x32xbf16, #tpu.memory_space<vmem>>, vector<32x32xbf16>,
    %c0_33 = arith.constant 0 : index
    %c0_34 = arith.constant 0 : index
    %32 = vector.load %arg3[%c0_33, %c0_34] : memref<32x288xbf16, #tpu.memory_space<vmem>>, vector<32x288xbf16>
    %c0_35 = arith.constant 0 : index
    %c0_36 = arith.constant 0 : index
    %33 = vector.load %arg9[%c0_35, %c0_36] : memref<288x32xbf16, #tpu.memory_space<vmem>>, vector<288x32xbf16>
    %cst = arith.constant dense<0.000000e+00> : vector<32x32xf32>
    %34 = tpu.matmul %32, %33, %cst {dimension_numbers = #tpu.dot_dimension_numbers<[1], [0], [0], [1], [0, 0, 1, 1], [], []>} : vector<32x288xbf16>, vector<288x32xbf16>, vector<32x32xf32> -> vector<32x32xf32>
    %35 = vector.broadcast %0 : vector<32x1xf32> to vector<32x32xf32>
    %36 = arith.mulf %34, %35 : vector<32x32xf32>
    %37 = vector.broadcast %1 : vector<32x1xf32> to vector<32x32xf32>
    %38 = arith.addf %36, %37 : vector<32x32xf32>
    %cst_37 = arith.constant dense<0.000000e+00> : vector<32xf32>
    %39 = vector.multi_reduction <add>, %38, %cst_37 [0] : vector<32x32xf32> to vector<32xf32>
    %40 = vector.shape_cast %39 : vector<32xf32> to vector<1x32xf32>
    %cst_38 = arith.constant 3.125000e-02 : f32
    %41 = vector.broadcast %cst_38 : f32 to vector<1x32xf32>
    %42 = arith.mulf %40, %41 : vector<1x32xf32>
    %43 = arith.mulf %38, %38 : vector<32x32xf32>
    %cst_39 = arith.constant dense<0.000000e+00> : vector<32xf32>
    %44 = vector.multi_reduction <add>, %43, %cst_39 [0] : vector<32x32xf32> to vector<32xf32>
    %45 = vector.shape_cast %44 : vector<32xf32> to vector<1x32xf32>
    %cst_40 = arith.constant 3.125000e-02 : f32
    %46 = vector.broadcast %cst_40 : f32 to vector<1x32xf32>
    %47 = arith.mulf %45, %46 : vector<1x32xf32>
    %48 = arith.mulf %42, %42 : vector<1x32xf32>
    %49 = arith.subf %47, %48 : vector<1x32xf32>
    %50 = vector.broadcast %42 : vector<1x32xf32> to vector<32x32xf32>
    %51 = arith.subf %38, %50 : vector<32x32xf32>
    %cst_41 = arith.constant 9.99999974E-6 : f32
    %52 = vector.broadcast %cst_41 : f32 to vector<1x32xf32>
    %53 = arith.addf %49, %52 : vector<1x32xf32>
    %54 = math.rsqrt %53 : vector<1x32xf32>
    %55 = vector.broadcast %54 : vector<1x32xf32> to vector<32x32xf32>
    %56 = arith.mulf %51, %55 : vector<32x32xf32>
    %c0_42 = arith.constant 0 : index
    %c0_43 = arith.constant 0 : index
    %57 = vector.load %arg6[%c0_42, %c0_43] : memref<32x1xf32, #tpu.memory_space<vmem>>, vector<32x1xf32>
    %58 = vector.broadcast %57 : vector<32x1xf32> to vector<32x32xf32>
    %59 = arith.mulf %56, %58 : vector<32x32xf32>
    %c0_44 = arith.constant 0 : index
    %c0_45 = arith.constant 0 : index
    %60 = vector.load %arg7[%c0_44, %c0_45] : memref<32x1xf32, #tpu.memory_space<vmem>>, vector<32x1xf32>
    %61 = vector.broadcast %60 : vector<32x1xf32> to vector<32x32xf32>
    %62 = arith.addf %59, %61 : vector<32x32xf32>
    %c0_46 = arith.constant 0 : index
    %c0_47 = arith.constant 0 : index
    %c0_48 = arith.constant 0 : index
    %63 = vector.load %arg8[%c0_46, %c0_47, %c0_48] : memref<1x32x32xf32, #tpu.memory_space<vmem>>, vector<1x32x32xf32>
    %64 = vector.shape_cast %63 : vector<1x32x32xf32> to vector<32x32xf32>
    %65 = vector.shape_cast %62 : vector<32x32xf32> to vector<1x32x32xf32>
    tpu.vector_store %arg8[%c0_46, %c0_47, %c0_48], %65 {strides = array<i32>} : memref<1x32x32xf32, #tpu.memory_space<vmem>>, vector<1x32x32xf32>,
    return
  }
  func.func @transform_0(%arg0: i32, %arg1: i32) -> (i32, i32, i32, i32) {
    %c1_i32 = arith.constant 1 : i32
    %0 = arith.muli %arg0, %c1_i32 : i32
    %1 = arith.addi %0, %arg1 : i32
    %c0_i32 = arith.constant 0 : i32
    %c0_i32_0 = arith.constant 0 : i32
    %c0_i32_1 = arith.constant 0 : i32
    %c0_i32_2 = arith.constant 0 : i32
    return %1, %c0_i32, %c0_i32_0, %c0_i32_1 : i32, i32, i32, i32
  }
  func.func @transform_1(%arg0: i32, %arg1: i32) -> (i32, i32) {
    %c0_i32 = arith.constant 0 : i32
    %c0_i32_0 = arith.constant 0 : i32
    %c0_i32_1 = arith.constant 0 : i32
    return %c0_i32, %c0_i32_0 : i32, i32
  }
  func.func @transform_2(%arg0: i32, %arg1: i32) -> (i32, i32) {
    %c0_i32 = arith.constant 0 : i32
    %c0_i32_0 = arith.constant 0 : i32
    %c0_i32_1 = arith.constant 0 : i32
    return %c0_i32, %c0_i32_0 : i32, i32
  }
  func.func @transform_3(%arg0: i32, %arg1: i32) -> (i32, i32) {
    %c0_i32 = arith.constant 0 : i32
    %c0_i32_0 = arith.constant 0 : i32
    %c0_i32_1 = arith.constant 0 : i32
    return %c0_i32, %c0_i32_0 : i32, i32
  }
  func.func @transform_4(%arg0: i32, %arg1: i32) -> (i32, i32) {
    %c0_i32 = arith.constant 0 : i32
    %c0_i32_0 = arith.constant 0 : i32
    %c0_i32_1 = arith.constant 0 : i32
    return %c0_i32, %c0_i32_0 : i32, i32
  }
  func.func @transform_5(%arg0: i32, %arg1: i32) -> (i32, i32) {
    %c0_i32 = arith.constant 0 : i32
    %c0_i32_0 = arith.constant 0 : i32
    %c0_i32_1 = arith.constant 0 : i32
    return %c0_i32, %c0_i32_0 : i32, i32
  }
  func.func @transform_6(%arg0: i32, %arg1: i32) -> (i32, i32, i32) {
    %c0_i32 = arith.constant 0 : i32
    %c0_i32_0 = arith.constant 0 : i32
    return %arg0, %c0_i32, %arg1 : i32, i32, i32
  }
}

</mosaic_0001>

<llo_original>
// kernel: stem_forward.4
$region0: #{stem_forward.4}
  #allocation0 [shape = 'u32[]', space=smem, size = 0x4, offset = 0x4, fixed_abs, tag = 'smem constant byte address 0x4 - core index']
  #allocation1 [shape = 'u32[144,128]{1,0:T(1,128)}', space=vmem, size = 0x12000, scoped, tag = 'internal scratch']
  #allocation2 [shape = 'bf16[784,128]{1,0:T(16,128)(2,1)}', space=vmem, size = 0x31000, scoped, tag = 'scratch operand']
  %s0 = inlined_call_operand.vmem [shape: bf16[2,4,16,192], index: 0, kind: input, shape index: {}]
  %s1 = inlined_call_operand.vmem [shape: bf16[32,784], index: 1, kind: input, shape index: {}]
  %s2 = inlined_call_operand.vmem [shape: f32[32,1], index: 2, kind: input, shape index: {}]
  %s3 = inlined_call_operand.vmem [shape: f32[32,1], index: 3, kind: input, shape index: {}]
  %s4 = inlined_call_operand.vmem [shape: f32[32,1], index: 4, kind: input, shape index: {}]
  %s5 = inlined_call_operand.vmem [shape: f32[32,1], index: 5, kind: input, shape index: {}]
  %s6 = inlined_call_operand.vmem [shape: bf16[2,32,128], index: 6, kind: output, shape index: {}]
  %s7 = sld [smem:[#allocation0]]
  $region57: #{stem_forward.4} parent=0
    _
  %s9 = ssub.s32 1, %s7
  %s10 = scalar_select 0, %s9, %s7
  loop: start=0, step=1, limit=4
  $region2: #{stem_forward.4} parent=0 // loop_pre_header
    _
  $region3: #{stem_forward.4} parent=0 // loop_header
    %s12 = sphi 0, %s16
    %p13 = scmp.ge.s32.totalorder %s12, 4
    %s19 = sphi 0, %s31
    %s20 = sphi 0, %s27
    %s21 = sphi 0, %s19
    %s22 = sphi 0, %s20
    %s23 = sphi 0, %s21
    %s24 = sphi 0, %s22
    %s36 = sphi 0, %s38
    %s39 = sphi 0, %s36
    %s40 = sphi 0, %s39
    %s56 = sphi 0, %s40
    %s60 = sphi 0, %s60
    %s62 = sphi 0, %s60
    %s63 = sphi 0, %s62
    %s77 = sphi 0, %s63
    %s81 = sphi 0, %s81
    %s83 = sphi 0, %s81
    %s84 = sphi 0, %s83
    %s98 = sphi 0, %s84
    %s102 = sphi 0, %s102
    %s104 = sphi 0, %s102
    %s105 = sphi 0, %s104
    %s119 = sphi 0, %s105
    %s123 = sphi 0, %s123
    %s125 = sphi 0, %s123
    %s126 = sphi 0, %s125
    %s140 = sphi 0, %s126
    %s144 = sphi 0, %s144
    %s146 = sphi 0, %s144
    %s147 = sphi 0, %s146
    %s161 = sphi 0, %s147
    %s169 = sphi 0, %s171
    %s172 = sphi 0, %s169
    %s173 = sphi 0, %s172
    %s189 = sphi 0, %s173
  $region4: #{stem_forward.4} parent=0 // loop_header_branch
    %15 = sbr.rel (%p13) target = $region8
  $region5: #{stem_forward.4} parent=0 // loop_body
    %s17 = ssub.s32 %s12, 1
    %s18 = ssub.s32 %s12, 2
    %s25 = sadd.s32 1, %s20
    %p26 = scmp.ge.s32.totalorder %s25, 1
    %s27 = scalar_select %p26, 0, %s25
    %s28 = sadd.s32 1, %s19
    %s29 = scalar_select %p26, %s28, %s19
    %p30 = scmp.ge.s32.totalorder %s29, 2
    %s31 = scalar_select %p30, 0, %s29
    %s32 = sadd.s32 %s19, %s20
    %s33 = sadd.s32 %s31, %s27
    %s34 = ssub.s32 %s32, %s33
    %p35 = scmp.eq.s32.totalorder %s34, 0
    %s37 = sadd.s32 %s36, 1
    %s38 = scalar_select %p35, %s36, %s37
    %p41 = pneg %p35
    %p42 = scmp.eq.s32.totalorder %s12, 1
    %p43 = por %p41, %p42
    %p44 = scmp.ne.s32.totalorder %s36, %s39
    %p45 = scmp.eq.s32.totalorder %s12, 0
    %p46 = por %p44, %p45
    %p47 = scmp.ne.s32.totalorder %s36, %s39
    %p48 = scmp.eq.s32.totalorder %s17, 1
    %p49 = por %p47, %p48
    %p50 = scmp.ne.s32.totalorder %s39, %s40
    %p51 = scmp.eq.s32.totalorder %s17, 0
    %p52 = por %p50, %p51
    %p53 = scmp.ne.s32.totalorder %s39, %s40
    %p54 = scmp.eq.s32.totalorder %s18, 1
    %p55 = por %p53, %p54
    %p57 = scmp.ne.s32.totalorder %s40, %s56
    %p58 = scmp.eq.s32.totalorder %s18, 0
    %p59 = por %p57, %p58
    %s61 = sadd.s32 %s60, 1
    %p64 = scmp.eq.s32.totalorder %s12, 1
    %p65 = scmp.ne.s32.totalorder %s60, %s62
    %p66 = scmp.eq.s32.totalorder %s12, 0
    %p67 = por %p65, %p66
    %p68 = scmp.ne.s32.totalorder %s60, %s62
    %p69 = scmp.eq.s32.totalorder %s17, 1
    %p70 = por %p68, %p69
    %p71 = scmp.ne.s32.totalorder %s62, %s63
    %p72 = scmp.eq.s32.totalorder %s17, 0
    %p73 = por %p71, %p72
    %p74 = scmp.ne.s32.totalorder %s62, %s63
    %p75 = scmp.eq.s32.totalorder %s18, 1
    %p76 = por %p74, %p75
    %p78 = scmp.ne.s32.totalorder %s63, %s77
    %p79 = scmp.eq.s32.totalorder %s18, 0
    %p80 = por %p78, %p79
    %s82 = sadd.s32 %s81, 1
    %p85 = scmp.eq.s32.totalorder %s12, 1
    %p86 = scmp.ne.s32.totalorder %s81, %s83
    %p87 = scmp.eq.s32.totalorder %s12, 0
    %p88 = por %p86, %p87
    %p89 = scmp.ne.s32.totalorder %s81, %s83
    %p90 = scmp.eq.s32.totalorder %s17, 1
    %p91 = por %p89, %p90
    %p92 = scmp.ne.s32.totalorder %s83, %s84
    %p93 = scmp.eq.s32.totalorder %s17, 0
    %p94 = por %p92, %p93
    %p95 = scmp.ne.s32.totalorder %s83, %s84
    %p96 = scmp.eq.s32.totalorder %s18, 1
    %p97 = por %p95, %p96
    %p99 = scmp.ne.s32.totalorder %s84, %s98
    %p100 = scmp.eq.s32.totalorder %s18, 0
    %p101 = por %p99, %p100
    %s103 = sadd.s32 %s102, 1
    %p106 = scmp.eq.s32.totalorder %s12, 1
    %p107 = scmp.ne.s32.totalorder %s102, %s104
    %p108 = scmp.eq.s32.totalorder %s12, 0
    %p109 = por %p107, %p108
    %p110 = scmp.ne.s32.totalorder %s102, %s104
    %p111 = scmp.eq.s32.totalorder %s17, 1
    %p112 = por %p110, %p111
    %p113 = scmp.ne.s32.totalorder %s104, %s105
    %p114 = scmp.eq.s32.totalorder %s17, 0
    %p115 = por %p113, %p114
    %p116 = scmp.ne.s32.totalorder %s104, %s105
    %p117 = scmp.eq.s32.totalorder %s18, 1
    %p118 = por %p116, %p117
    %p120 = scmp.ne.s32.totalorder %s105, %s119
    %p121 = scmp.eq.s32.totalorder %s18, 0
    %p122 = por %p120, %p121
    %s124 = sadd.s32 %s123, 1
    %p127 = scmp.eq.s32.totalorder %s12, 1
    %p128 = scmp.ne.s32.totalorder %s123, %s125
    %p129 = scmp.eq.s32.totalorder %s12, 0
    %p130 = por %p128, %p129
    %p131 = scmp.ne.s32.totalorder %s123, %s125
    %p132 = scmp.eq.s32.totalorder %s17, 1
    %p133 = por %p131, %p132
    %p134 = scmp.ne.s32.totalorder %s125, %s126
    %p135 = scmp.eq.s32.totalorder %s17, 0
    %p136 = por %p134, %p135
    %p137 = scmp.ne.s32.totalorder %s125, %s126
    %p138 = scmp.eq.s32.totalorder %s18, 1
    %p139 = por %p137, %p138
    %p141 = scmp.ne.s32.totalorder %s126, %s140
    %p142 = scmp.eq.s32.totalorder %s18, 0
    %p143 = por %p141, %p142
    %s145 = sadd.s32 %s144, 1
    %p148 = scmp.eq.s32.totalorder %s12, 1
    %p149 = scmp.ne.s32.totalorder %s144, %s146
    %p150 = scmp.eq.s32.totalorder %s12, 0
    %p151 = por %p149, %p150
    %p152 = scmp.ne.s32.totalorder %s144, %s146
    %p153 = scmp.eq.s32.totalorder %s17, 1
    %p154 = por %p152, %p153
    %p155 = scmp.ne.s32.totalorder %s146, %s147
    %p156 = scmp.eq.s32.totalorder %s17, 0
    %p157 = por %p155, %p156
    %p158 = scmp.ne.s32.totalorder %s146, %s147
    %p159 = scmp.eq.s32.totalorder %s18, 1
    %p160 = por %p158, %p159
    %p162 = scmp.ne.s32.totalorder %s147, %s161
    %p163 = scmp.eq.s32.totalorder %s18, 0
    %p164 = por %p162, %p163
    %s165 = ssub.s32 %s19, %s31
    %s166 = ssub.s32 %s20, %s27
    %s167 = sor.u32 %s165, %s166
    %p168 = scmp.eq.s32.totalorder %s167, 0
    %s170 = sadd.s32 %s169, 1
    %s171 = scalar_select %p168, %s169, %s170
    %p174 = pneg %p168
    %p175 = scmp.eq.s32.totalorder %s12, 1
    %p176 = por %p174, %p175
    %p177 = scmp.ne.s32.totalorder %s169, %s172
    %p178 = scmp.eq.s32.totalorder %s12, 0
    %p179 = por %p177, %p178
    %p180 = scmp.ne.s32.totalorder %s169, %s172
    %p181 = scmp.eq.s32.totalorder %s17, 1
    %p182 = por %p180, %p181
    %p183 = scmp.ne.s32.totalorder %s172, %s173
    %p184 = scmp.eq.s32.totalorder %s17, 0
    %p185 = por %p183, %p184
    %p186 = scmp.ne.s32.totalorder %s172, %s173
    %p187 = scmp.eq.s32.totalorder %s18, 1
    %p188 = por %p186, %p187
    %p190 = scmp.ne.s32.totalorder %s173, %s189
    %p191 = scmp.eq.s32.totalorder %s18, 0
    %p192 = por %p190, %p191
    %p193 = scmp.le.s32.totalorder 1, %s12
    %p194 = scmp.lt.s32.totalorder %s12, 3
    %p195 = pnand %p193, %p194
    %p196 = pneg %p195
    // Predicated region
    $region9: #{stem_forward.4} parent=5 // pred_check
      _
    $region10: #{stem_forward.4} parent=5 // pred_check_branch
      %198 = sbr.rel (%p195) target = $region12
    $region11: #{stem_forward.4} parent=5 // pred_region
      %s199 = ssub.s32 %s12, 1
      // Predicated region
      $region13: #{stem_forward.4} parent=11 // pred_check
        %p200 = pneg %p73
      $region14: #{stem_forward.4} parent=11 // pred_check_branch
        %202 = sbr.rel (%p200) target = $region16
      $region15: #{stem_forward.4} parent=11 // pred_region
        _
      $region16: #{stem_forward.4} parent=11 // pred_fallthru
        _
      // Predicated region
      $region17: #{stem_forward.4} parent=11 // pred_check
        %p203 = pneg %p94
      $region18: #{stem_forward.4} parent=11 // pred_check_branch
        %205 = sbr.rel (%p203) target = $region20
      $region19: #{stem_forward.4} parent=11 // pred_region
        _
      $region20: #{stem_forward.4} parent=11 // pred_fallthru
        _
      // Predicated region
      $region21: #{stem_forward.4} parent=11 // pred_check
        %p206 = pneg %p115
      $region22: #{stem_forward.4} parent=11 // pred_check_branch
        %208 = sbr.rel (%p206) target = $region24
      $region23: #{stem_forward.4} parent=11 // pred_region
        _
      $region24: #{stem_forward.4} parent=11 // pred_fallthru
        _
      // Predicated region
      $region25: #{stem_forward.4} parent=11 // pred_check
        %p209 = pneg %p136
      $region26: #{stem_forward.4} parent=11 // pred_check_branch
        %211 = sbr.rel (%p209) target = $region28
      $region27: #{stem_forward.4} parent=11 // pred_region
        _
      $region28: #{stem_forward.4} parent=11 // pred_fallthru
        _
      // Predicated region
      $region29: #{stem_forward.4} parent=11 // pred_check
        %p212 = pneg %p157
      $region30: #{stem_forward.4} parent=11 // pred_check_branch
        %214 = sbr.rel (%p212) target = $region32
      $region31: #{stem_forward.4} parent=11 // pred_region
        _
      $region32: #{stem_forward.4} parent=11 // pred_fallthru
        _
    $region12: #{stem_forward.4} parent=5 // pred_fallthru
      _
    %p215 = scmp.lt.s32.totalorder %s12, 2
    // Predicated region
    $region33: #{stem_forward.4} parent=5 // pred_check
      %p216 = pneg %p215
    $region34: #{stem_forward.4} parent=5 // pred_check_branch
      %218 = sbr.rel (%p216) target = $region36
    $region35: #{stem_forward.4} parent=5 // pred_region
      // Predicated region
      $region37: #{stem_forward.4} parent=35 // pred_check
        %p219 = pneg %p46
      $region38: #{stem_forward.4} parent=35 // pred_check_branch
        %221 = sbr.rel (%p219) target = $region40
      $region39: #{stem_forward.4} parent=35 // pred_region
        %s222 = sadd.s32 %s19, %s20
        %p223 = scmp.lt.s32.totalorder %s222, 1
        %s224 = scalar_select %p223, %s222, 1
        %s225 = smul.addr %s224, 16
        %s226 = smul.addr %s225, 4
        %s227 = scalar_lea.vmem %s0, %s226
        %s228 = sadd.s32 %s19, %s20
      $region40: #{stem_forward.4} parent=35 // pred_fallthru
        _
    $region36: #{stem_forward.4} parent=5 // pred_fallthru
      _
    %p229 = scmp.le.s32.totalorder 1, %s12
    %p230 = scmp.lt.s32.totalorder %s12, 3
    %p231 = pnand %p229, %p230
    %p232 = pneg %p231
    // Predicated region
    $region41: #{stem_forward.4} parent=5 // pred_check
      _
    $region42: #{stem_forward.4} parent=5 // pred_check_branch
      %234 = sbr.rel (%p231) target = $region44
    $region43: #{stem_forward.4} parent=5 // pred_region
      %s235 = ssub.s32 %s12, 1
      %s236 = sadd.s32 %s21, %s22
      %p237 = scmp.lt.s32.totalorder %s236, 1
      %s238 = scalar_select %p237, %s236, 1
      %s239 = smul.addr %s238, 16
      %s240 = smul.addr %s239, 4
      %s241 = scalar_lea.vmem %s0, %s240
      %p242 = pneg %p52
      %p243 = pneg %p49
      %p244 = pneg %p73
      %p245 = pneg %p70
      %p246 = pneg %p94
      %p247 = pneg %p91
      %p248 = pneg %p115
      %p249 = pneg %p112
      %p250 = pneg %p136
      %p251 = pneg %p133
      %p252 = pneg %p157
      %p253 = pneg %p154
      %p254 = pneg %p185
      %p255 = pneg %p182
      %p256 = scmp.lt.s32.totalorder %s21, 1
      %s257 = scalar_select %p256, %s21, 1
      %p258 = scmp.lt.s32.totalorder %s22, 0
      %s259 = scalar_select %p258, %s22, 0
      %s260 = smul.addr %s257, 4
      %s261 = sadd.s32 %s259, %s260
      %s262 = smul.addr %s261, 4
      %s263 = scalar_lea.vmem %s6, %s262
      %s264 = sadd.s32 %s21, %s22
      %p265 = scmp.lt.s32.totalorder %s264, 1
      %s266 = scalar_select %p265, %s264, 1
      %s267 = smul.addr %s266, 16
      %s268 = smul.addr %s267, 4
      %s269 = scalar_lea.vmem %s0, %s268
      %s270 = sadd.s32 %s21, %s22
      %p271 = scmp.lt.s32.totalorder %s21, 1
      %s272 = scalar_select %p271, %s21, 1
      %p273 = scmp.lt.s32.totalorder %s22, 0
      %s274 = scalar_select %p273, %s22, 0
      %s275 = smul.addr %s272, 4
      %s276 = sadd.s32 %s274, %s275
      %s277 = smul.addr %s276, 4
      %s278 = scalar_lea.vmem %s6, %s277
      %v280 = vld [vmem:[%s2] sm:$0xff]
      %v281 = vld [vmem:[%s2 + $0x8] sm:$0xff]
      %v282 = vld [vmem:[%s2 + $0x10] sm:$0xff]
      %v283 = vld [vmem:[%s2 + $0x18] sm:$0xff]
      %v284 = vld [vmem:[%s3] sm:$0xff]
      %v285 = vld [vmem:[%s3 + $0x8] sm:$0xff]
      %v286 = vld [vmem:[%s3 + $0x10] sm:$0xff]
      %v287 = vld [vmem:[%s3 + $0x18] sm:$0xff]
      %v288 = vld [vmem:[%s269] sm:$0xff]
      %v289 = vld [vmem:[%s269 + $0x8] sm:$0xff]
      %v292 = vunpack.c.l.b16 %v288
      %v293 = vunpack.c.l.b16 %v289
      %v294 = vpack.c.b16 %v293, %v292
      %296 = vst [vmem:[#allocation2] sm:$0xff] %v294
      %v297 = vunpack.c.h.b16 %v288
      %v298 = vunpack.c.h.b16 %v289
      %v299 = vpack.c.b16 %v298, %v297
      %300 = vrot.lane.b32.xlu0 %v294, 127
      %v301 = vpop.permute.xlu0 %300
      %302 = vrot.lane.b32.xlu0 %v299, 127
      %v303 = vpop.permute.xlu0 %302
      %vm304 = vcmask 1039360
      %v305 = vsel %vm304, %v301, %v303
      %307 = vst [vmem:[#allocation2 + $0x10] sm:$0xff] %v305
      %308 = vrot.lane.b32.xlu0 %v294, 126
      %v309 = vpop.permute.xlu0 %308
      %310 = vrot.lane.b32.xlu0 %v299, 126
      %v311 = vpop.permute.xlu0 %310
      %vm312 = vcmask 1031168
      %v313 = vsel %vm312, %v309, %v311
      %315 = vst [vmem:[#allocation2 + $0x20] sm:$0xff] %v313
      %316 = vrot.lane.b32.xlu0 %v294, 125
      %v317 = vpop.permute.xlu0 %316
      %318 = vrot.lane.b32.xlu0 %v299, 125
      %v319 = vpop.permute.xlu0 %318
      %vm320 = vcmask 1022976
      %v321 = vsel %vm320, %v317, %v319
      %323 = vst [vmem:[#allocation2 + $0x30] sm:$0xff] %v321
      %v324 = vld [vmem:[%s269] sm:$0xff]
      %v325 = vld [vmem:[%s269 + $0x8] sm:$0xff]
      %v328 = vunpack.c.l.b16 %v324
      %v329 = vunpack.c.h.b16 %v324
      %v330 = vunpack.c.l.b16 %v325
      %v331 = vunpack.c.h.b16 %v325
      %v332 = vpack.c.b16 %v330, %v328
      %v333 = vpack.c.b16 %v331, %v329
      %334 = vrot.lane.b32.xlu0 %v332, 112
      %v335 = vpop.permute.xlu0 %334
      %336 = vrot.lane.b32.xlu0 %v333, 112
      %v337 = vpop.permute.xlu0 %336
      %vm338 = vcmask 916480
      %v339 = vsel %vm338, %v335, %v337
      %341 = vst [vmem:[#allocation2 + $0x70] sm:$0xff] %v339
      %342 = vrot.lane.b32.xlu0 %v332, 111
      %v343 = vpop.permute.xlu0 %342
      %344 = vrot.lane.b32.xlu0 %v333, 111
      %v345 = vpop.permute.xlu0 %344
      %vm346 = vcmask 908288
      %v347 = vsel %vm346, %v343, %v345
      %349 = vst [vmem:[#allocation2 + $0x80] sm:$0xff] %v347
      %350 = vrot.lane.b32.xlu0 %v332, 110
      %v351 = vpop.permute.xlu0 %350
      %352 = vrot.lane.b32.xlu0 %v333, 110
      %v353 = vpop.permute.xlu0 %352
      %vm354 = vcmask 900096
      %v355 = vsel %vm354, %v351, %v353
      %357 = vst [vmem:[#allocation2 + $0x90] sm:$0xff] %v355
      %358 = vrot.lane.b32.xlu0 %v332, 109
      %v359 = vpop.permute.xlu0 %358
      %360 = vrot.lane.b32.xlu0 %v333, 109
      %v361 = vpop.permute.xlu0 %360
      %vm362 = vcmask 891904
      %v363 = vsel %vm362, %v359, %v361
      %365 = vst [vmem:[#allocation2 + $0xa0] sm:$0xff] %v363
      %v366 = vld [vmem:[%s269] sm:$0xff]
      %v367 = vld [vmem:[%s269 + $0x8] sm:$0xff]
      %v370 = vunpack.c.l.b16 %v366
      %v371 = vunpack.c.h.b16 %v366
      %v372 = vunpack.c.l.b16 %v367
      %v373 = vunpack.c.h.b16 %v367
      %v374 = vpack.c.b16 %v372, %v370
      %v375 = vpack.c.b16 %v373, %v371
      %376 = vrot.lane.b32.xlu0 %v374, 96
      %v377 = vpop.permute.xlu0 %376
      %378 = vrot.lane.b32.xlu0 %v375, 96
      %v379 = vpop.permute.xlu0 %378
      %vm380 = vcmask 785408
      %v381 = vsel %vm380, %v377, %v379
      %383 = vst [vmem:[#allocation2 + $0xe0] sm:$0xff] %v381
      %384 = vrot.lane.b32.xlu0 %v374, 95
      %v385 = vpop.permute.xlu0 %384
      %386 = vrot.lane.b32.xlu0 %v375, 95
      %v387 = vpop.permute.xlu0 %386
      %vm388 = vcmask 777216
      %v389 = vsel %vm388, %v385, %v387
      %391 = vst [vmem:[#allocation2 + $0xf0] sm:$0xff] %v389
      %392 = vrot.lane.b32.xlu0 %v374, 94
      %v393 = vpop.permute.xlu0 %392
      %394 = vrot.lane.b32.xlu0 %v375, 94
      %v395 = vpop.permute.xlu0 %394
      %vm396 = vcmask 769024
      %v397 = vsel %vm396, %v393, %v395
      %399 = vst [vmem:[#allocation2 + $0x100] sm:$0xff] %v397
      %400 = vrot.lane.b32.xlu0 %v374, 93
      %v401 = vpop.permute.xlu0 %400
      %402 = vrot.lane.b32.xlu0 %v375, 93
      %v403 = vpop.permute.xlu0 %402
      %vm404 = vcmask 760832
      %v405 = vsel %vm404, %v401, %v403
      %407 = vst [vmem:[#allocation2 + $0x110] sm:$0xff] %v405
      %v408 = vld [vmem:[%s269] sm:$0xff]
      %v409 = vld [vmem:[%s269 + $0x8] sm:$0xff]
      %v412 = vunpack.c.l.b16 %v408
      %v413 = vunpack.c.h.b16 %v408
      %v414 = vunpack.c.l.b16 %v409
      %v415 = vunpack.c.h.b16 %v409
      %v416 = vpack.c.b16 %v414, %v412
      %v417 = vpack.c.b16 %v415, %v413
      %418 = vrot.lane.b32.xlu0 %v416, 80
      %v419 = vpop.permute.xlu0 %418
      %420 = vrot.lane.b32.xlu0 %v417, 80
      %v421 = vpop.permute.xlu0 %420
      %vm422 = vcmask 654336
      %v423 = vsel %vm422, %v419, %v421
      %425 = vst [vmem:[#allocation2 + $0x150] sm:$0xff] %v423
      %426 = vrot.lane.b32.xlu0 %v416, 79
      %v427 = vpop.permute.xlu0 %426
      %428 = vrot.lane.b32.xlu0 %v417, 79
      %v429 = vpop.permute.xlu0 %428
      %vm430 = vcmask 646144
      %v431 = vsel %vm430, %v427, %v429
      %433 = vst [vmem:[#allocation2 + $0x160] sm:$0xff] %v431
      %434 = vrot.lane.b32.xlu0 %v416, 78
      %v435 = vpop.permute.xlu0 %434
      %436 = vrot.lane.b32.xlu0 %v417, 78
      %v437 = vpop.permute.xlu0 %436
      %vm438 = vcmask 637952
      %v439 = vsel %vm438, %v435, %v437
      %441 = vst [vmem:[#allocation2 + $0x170] sm:$0xff] %v439
      %442 = vrot.lane.b32.xlu0 %v416, 77
      %v443 = vpop.permute.xlu0 %442
      %444 = vrot.lane.b32.xlu0 %v417, 77
      %v445 = vpop.permute.xlu0 %444
      %vm446 = vcmask 629760
      %v447 = vsel %vm446, %v443, %v445
      %449 = vst [vmem:[#allocation2 + $0x180] sm:$0xff] %v447
      %s450 = scalar_lea.vmem %s269, 16
      %v451 = vld [vmem:[%s450] sm:$0xff]
      %v452 = vld [vmem:[%s450 + $0x8] sm:$0xff]
      %v455 = vunpack.c.l.b16 %v451
      %v456 = vunpack.c.l.b16 %v452
      %v457 = vpack.c.b16 %v456, %v455
      %459 = vst [vmem:[#allocation2 + $0x8] sm:$0xff] %v457
      %v460 = vunpack.c.h.b16 %v451
      %v461 = vunpack.c.h.b16 %v452
      %v462 = vpack.c.b16 %v461, %v460
      %463 = vrot.lane.b32.xlu0 %v457, 127
      %v464 = vpop.permute.xlu0 %463
      %465 = vrot.lane.b32.xlu0 %v462, 127
      %v466 = vpop.permute.xlu0 %465
      %v467 = vsel %vm304, %v464, %v466
      %469 = vst [vmem:[#allocation2 + $0x18] sm:$0xff] %v467
      %470 = vrot.lane.b32.xlu0 %v457, 126
      %v471 = vpop.permute.xlu0 %470
      %472 = vrot.lane.b32.xlu0 %v462, 126
      %v473 = vpop.permute.xlu0 %472
      %v474 = vsel %vm312, %v471, %v473
      %476 = vst [vmem:[#allocation2 + $0x28] sm:$0xff] %v474
      %v477 = vld [vmem:[%s450] sm:$0xff]
      %v478 = vld [vmem:[%s450 + $0x8] sm:$0xff]
      %v481 = vunpack.c.l.b16 %v477
      %v482 = vunpack.c.h.b16 %v477
      %v483 = vunpack.c.l.b16 %v478
      %v484 = vunpack.c.h.b16 %v478
      %v485 = vpack.c.b16 %v483, %v481
      %v486 = vpack.c.b16 %v484, %v482
      %487 = vrot.lane.b32.xlu0 %v485, 112
      %v488 = vpop.permute.xlu0 %487
      %489 = vrot.lane.b32.xlu0 %v486, 112
      %v490 = vpop.permute.xlu0 %489
      %v491 = vsel %vm338, %v488, %v490
      %493 = vst [vmem:[#allocation2 + $0x78] sm:$0xff] %v491
      %494 = vrot.lane.b32.xlu0 %v485, 111
      %v495 = vpop.permute.xlu0 %494
      %496 = vrot.lane.b32.xlu0 %v486, 111
      %v497 = vpop.permute.xlu0 %496
      %v498 = vsel %vm346, %v495, %v497
      %500 = vst [vmem:[#allocation2 + $0x88] sm:$0xff] %v498
      %501 = vrot.lane.b32.xlu0 %v485, 110
      %v502 = vpop.permute.xlu0 %501
      %503 = vrot.lane.b32.xlu0 %v486, 110
      %v504 = vpop.permute.xlu0 %503
      %v505 = vsel %vm354, %v502, %v504
      %507 = vst [vmem:[#allocation2 + $0x98] sm:$0xff] %v505
      %v508 = vld [vmem:[%s450] sm:$0xff]
      %v509 = vld [vmem:[%s450 + $0x8] sm:$0xff]
      %v512 = vunpack.c.l.b16 %v508
      %v513 = vunpack.c.h.b16 %v508
      %v514 = vunpack.c.l.b16 %v509
      %v515 = vunpack.c.h.b16 %v509
      %v516 = vpack.c.b16 %v514, %v512
      %v517 = vpack.c.b16 %v515, %v513
      %518 = vrot.lane.b32.xlu0 %v516, 96
      %v519 = vpop.permute.xlu0 %518
      %520 = vrot.lane.b32.xlu0 %v517, 96
      %v521 = vpop.permute.xlu0 %520
      %v522 = vsel %vm380, %v519, %v521
      %524 = vst [vmem:[#allocation2 + $0xe8] sm:$0xff] %v522
      %525 = vrot.lane.b32.xlu0 %v516, 95
      %v526 = vpop.permute.xlu0 %525
      %527 = vrot.lane.b32.xlu0 %v517, 95
      %v528 = vpop.permute.xlu0 %527
      %v529 = vsel %vm388, %v526, %v528
      %531 = vst [vmem:[#allocation2 + $0xf8] sm:$0xff] %v529
      %532 = vrot.lane.b32.xlu0 %v516, 94
      %v533 = vpop.permute.xlu0 %532
      %534 = vrot.lane.b32.xlu0 %v517, 94
      %v535 = vpop.permute.xlu0 %534
      %v536 = vsel %vm396, %v533, %v535
      %538 = vst [vmem:[#allocation2 + $0x108] sm:$0xff] %v536
      %v539 = vld [vmem:[%s450] sm:$0xff]
      %v540 = vld [vmem:[%s450 + $0x8] sm:$0xff]
      %v543 = vunpack.c.l.b16 %v539
      %v544 = vunpack.c.h.b16 %v539
      %v545 = vunpack.c.l.b16 %v540
      %v546 = vunpack.c.h.b16 %v540
      %v547 = vpack.c.b16 %v545, %v543
      %v548 = vpack.c.b16 %v546, %v544
      %549 = vrot.lane.b32.xlu0 %v547, 80
      %v550 = vpop.permute.xlu0 %549
      %551 = vrot.lane.b32.xlu0 %v548, 80
      %v552 = vpop.permute.xlu0 %551
      %v553 = vsel %vm422, %v550, %v552
      %555 = vst [vmem:[#allocation2 + $0x158] sm:$0xff] %v553
      %556 = vrot.lane.b32.xlu0 %v547, 79
      %v557 = vpop.permute.xlu0 %556
      %558 = vrot.lane.b32.xlu0 %v548, 79
      %v559 = vpop.permute.xlu0 %558
      %v560 = vsel %vm430, %v557, %v559
      %562 = vst [vmem:[#allocation2 + $0x168] sm:$0xff] %v560
      %563 = vrot.lane.b32.xlu0 %v547, 78
      %v564 = vpop.permute.xlu0 %563
      %565 = vrot.lane.b32.xlu0 %v548, 78
      %v566 = vpop.permute.xlu0 %565
      %v567 = vsel %vm438, %v564, %v566
      %569 = vst [vmem:[#allocation2 + $0x178] sm:$0xff] %v567
      %s570 = scalar_lea.vmem %s269, 32
      %v571 = vld [vmem:[%s570] sm:$0xff]
      %v572 = vld [vmem:[%s570 + $0x8] sm:$0xff]
      %v575 = vunpack.c.l.b16 %v571
      %v576 = vunpack.c.l.b16 %v572
      %v577 = vpack.c.b16 %v576, %v575
      %579 = vst [vmem:[#allocation2 + $0x38] sm:$0xff] %v577
      %v580 = vunpack.c.h.b16 %v571
      %v581 = vunpack.c.h.b16 %v572
      %v582 = vpack.c.b16 %v581, %v580
      %583 = vrot.lane.b32.xlu0 %v577, 127
      %v584 = vpop.permute.xlu0 %583
      %585 = vrot.lane.b32.xlu0 %v582, 127
      %v586 = vpop.permute.xlu0 %585
      %v587 = vsel %vm304, %v584, %v586
      %589 = vst [vmem:[#allocation2 + $0x48] sm:$0xff] %v587
      %590 = vrot.lane.b32.xlu0 %v577, 126
      %v591 = vpop.permute.xlu0 %590
      %592 = vrot.lane.b32.xlu0 %v582, 126
      %v593 = vpop.permute.xlu0 %592
      %v594 = vsel %vm312, %v591, %v593
      %596 = vst [vmem:[#allocation2 + $0x58] sm:$0xff] %v594
      %597 = vrot.lane.b32.xlu0 %v577, 125
      %v598 = vpop.permute.xlu0 %597
      %599 = vrot.lane.b32.xlu0 %v582, 125
      %v600 = vpop.permute.xlu0 %599
      %v601 = vsel %vm320, %v598, %v600
      %603 = vst [vmem:[#allocation2 + $0x68] sm:$0xff] %v601
      %v604 = vld [vmem:[%s570] sm:$0xff]
      %v605 = vld [vmem:[%s570 + $0x8] sm:$0xff]
      %v608 = vunpack.c.l.b16 %v604
      %v609 = vunpack.c.h.b16 %v604
      %v610 = vunpack.c.l.b16 %v605
      %v611 = vunpack.c.h.b16 %v605
      %v612 = vpack.c.b16 %v610, %v608
      %v613 = vpack.c.b16 %v611, %v609
      %614 = vrot.lane.b32.xlu0 %v612, 112
      %v615 = vpop.permute.xlu0 %614
      %616 = vrot.lane.b32.xlu0 %v613, 112
      %v617 = vpop.permute.xlu0 %616
      %v618 = vsel %vm338, %v615, %v617
      %620 = vst [vmem:[#allocation2 + $0xa8] sm:$0xff] %v618
      %621 = vrot.lane.b32.xlu0 %v612, 111
      %v622 = vpop.permute.xlu0 %621
      %623 = vrot.lane.b32.xlu0 %v613, 111
      %v624 = vpop.permute.xlu0 %623
      %v625 = vsel %vm346, %v622, %v624
      %627 = vst [vmem:[#allocation2 + $0xb8] sm:$0xff] %v625
      %628 = vrot.lane.b32.xlu0 %v612, 110
      %v629 = vpop.permute.xlu0 %628
      %630 = vrot.lane.b32.xlu0 %v613, 110
      %v631 = vpop.permute.xlu0 %630
      %v632 = vsel %vm354, %v629, %v631
      %634 = vst [vmem:[#allocation2 + $0xc8] sm:$0xff] %v632
      %635 = vrot.lane.b32.xlu0 %v612, 109
      %v636 = vpop.permute.xlu0 %635
      %637 = vrot.lane.b32.xlu0 %v613, 109
      %v638 = vpop.permute.xlu0 %637
      %v639 = vsel %vm362, %v636, %v638
      %641 = vst [vmem:[#allocation2 + $0xd8] sm:$0xff] %v639
      %v642 = vld [vmem:[%s570] sm:$0xff]
      %v643 = vld [vmem:[%s570 + $0x8] sm:$0xff]
      %v646 = vunpack.c.l.b16 %v642
      %v647 = vunpack.c.h.b16 %v642
      %v648 = vunpack.c.l.b16 %v643
      %v649 = vunpack.c.h.b16 %v643
      %v650 = vpack.c.b16 %v648, %v646
      %v651 = vpack.c.b16 %v649, %v647
      %652 = vrot.lane.b32.xlu0 %v650, 96
      %v653 = vpop.permute.xlu0 %652
      %654 = vrot.lane.b32.xlu0 %v651, 96
      %v655 = vpop.permute.xlu0 %654
      %v656 = vsel %vm380, %v653, %v655
      %658 = vst [vmem:[#allocation2 + $0x118] sm:$0xff] %v656
      %659 = vrot.lane.b32.xlu0 %v650, 95
      %v660 = vpop.permute.xlu0 %659
      %661 = vrot.lane.b32.xlu0 %v651, 95
      %v662 = vpop.permute.xlu0 %661
      %v663 = vsel %vm388, %v660, %v662
      %665 = vst [vmem:[#allocation2 + $0x128] sm:$0xff] %v663
      %666 = vrot.lane.b32.xlu0 %v650, 94
      %v667 = vpop.permute.xlu0 %666
      %668 = vrot.lane.b32.xlu0 %v651, 94
      %v669 = vpop.permute.xlu0 %668
      %v670 = vsel %vm396, %v667, %v669
      %672 = vst [vmem:[#allocation2 + $0x138] sm:$0xff] %v670
      %673 = vrot.lane.b32.xlu0 %v650, 93
      %v674 = vpop.permute.xlu0 %673
      %675 = vrot.lane.b32.xlu0 %v651, 93
      %v676 = vpop.permute.xlu0 %675
      %v677 = vsel %vm404, %v674, %v676
      %679 = vst [vmem:[#allocation2 + $0x148] sm:$0xff] %v677
      %s680 = scalar_lea.vmem %s269, 48
      %v681 = vld [vmem:[%s680] sm:$0xff]
      %v682 = vld [vmem:[%s680 + $0x8] sm:$0xff]
      %v685 = vunpack.c.l.b16 %v681
      %v686 = vunpack.c.l.b16 %v682
      %v687 = vpack.c.b16 %v686, %v685
      %689 = vst [vmem:[#allocation2 + $0x40] sm:$0xff] %v687
      %v690 = vunpack.c.h.b16 %v681
      %v691 = vunpack.c.h.b16 %v682
      %v692 = vpack.c.b16 %v691, %v690
      %693 = vrot.lane.b32.xlu0 %v687, 127
      %v694 = vpop.permute.xlu0 %693
      %695 = vrot.lane.b32.xlu0 %v692, 127
      %v696 = vpop.permute.xlu0 %695
      %v697 = vsel %vm304, %v694, %v696
      %699 = vst [vmem:[#allocation2 + $0x50] sm:$0xff] %v697
      %700 = vrot.lane.b32.xlu0 %v687, 126
      %v701 = vpop.permute.xlu0 %700
      %702 = vrot.lane.b32.xlu0 %v692, 126
      %v703 = vpop.permute.xlu0 %702
      %v704 = vsel %vm312, %v701, %v703
      %706 = vst [vmem:[#allocation2 + $0x60] sm:$0xff] %v704
      %v707 = vld [vmem:[%s680] sm:$0xff]
      %v708 = vld [vmem:[%s680 + $0x8] sm:$0xff]
      %v711 = vunpack.c.l.b16 %v707
      %v712 = vunpack.c.h.b16 %v707
      %v713 = vunpack.c.l.b16 %v708
      %v714 = vunpack.c.h.b16 %v708
      %v715 = vpack.c.b16 %v713, %v711
      %v716 = vpack.c.b16 %v714, %v712
      %717 = vrot.lane.b32.xlu0 %v715, 112
      %v718 = vpop.permute.xlu0 %717
      %719 = vrot.lane.b32.xlu0 %v716, 112
      %v720 = vpop.permute.xlu0 %719
      %v721 = vsel %vm338, %v718, %v720
      %723 = vst [vmem:[#allocation2 + $0xb0] sm:$0xff] %v721
      %724 = vrot.lane.b32.xlu0 %v715, 111
      %v725 = vpop.permute.xlu0 %724
      %726 = vrot.lane.b32.xlu0 %v716, 111
      %v727 = vpop.permute.xlu0 %726
      %v728 = vsel %vm346, %v725, %v727
      %730 = vst [vmem:[#allocation2 + $0xc0] sm:$0xff] %v728
      %731 = vrot.lane.b32.xlu0 %v715, 110
      %v732 = vpop.permute.xlu0 %731
      %733 = vrot.lane.b32.xlu0 %v716, 110
      %v734 = vpop.permute.xlu0 %733
      %v735 = vsel %vm354, %v732, %v734
      %737 = vst [vmem:[#allocation2 + $0xd0] sm:$0xff] %v735
      %v738 = vld [vmem:[%s680] sm:$0xff]
      %v739 = vld [vmem:[%s680 + $0x8] sm:$0xff]
      %v742 = vunpack.c.l.b16 %v738
      %v743 = vunpack.c.h.b16 %v738
      %v744 = vunpack.c.l.b16 %v739
      %v745 = vunpack.c.h.b16 %v739
      %v746 = vpack.c.b16 %v744, %v742
      %v747 = vpack.c.b16 %v745, %v743
      %748 = vrot.lane.b32.xlu0 %v746, 96
      %v749 = vpop.permute.xlu0 %748
      %750 = vrot.lane.b32.xlu0 %v747, 96
      %v751 = vpop.permute.xlu0 %750
      %v752 = vsel %vm380, %v749, %v751
      %754 = vst [vmem:[#allocation2 + $0x120] sm:$0xff] %v752
      %755 = vrot.lane.b32.xlu0 %v746, 95
      %v756 = vpop.permute.xlu0 %755
      %757 = vrot.lane.b32.xlu0 %v747, 95
      %v758 = vpop.permute.xlu0 %757
      %v759 = vsel %vm388, %v756, %v758
      %761 = vst [vmem:[#allocation2 + $0x130] sm:$0xff] %v759
      %762 = vrot.lane.b32.xlu0 %v746, 94
      %v763 = vpop.permute.xlu0 %762
      %764 = vrot.lane.b32.xlu0 %v747, 94
      %v765 = vpop.permute.xlu0 %764
      %v766 = vsel %vm396, %v763, %v765
      %768 = vst [vmem:[#allocation2 + $0x140] sm:$0xff] %v766
      %v769 = vld [vmem:[%s1] sm:$0xff]
      %v770 = vld [vmem:[%s1 + $0x8] sm:$0xff]
      %v771 = vld [vmem:[%s1 + $0x10] sm:$0xff]
      %v772 = vld [vmem:[%s1 + $0x18] sm:$0xf]
      %v773 = vld [vmem:[%s1 + $0x1c] sm:$0xff]
      %v774 = vld [vmem:[%s1 + $0x24] sm:$0xff]
      %v775 = vld [vmem:[%s1 + $0x2c] sm:$0xff]
      %v776 = vld [vmem:[%s1 + $0x34] sm:$0xf]
      %v777 = vld [vmem:[%s1 + $0x38] sm:$0xff]
      %v778 = vld [vmem:[%s1 + $0x40] sm:$0xff]
      %v779 = vld [vmem:[%s1 + $0x48] sm:$0xff]
      %v780 = vld [vmem:[%s1 + $0x50] sm:$0xf]
      %v781 = vld [vmem:[%s1 + $0x54] sm:$0xff]
      %v782 = vld [vmem:[%s1 + $0x5c] sm:$0xff]
      %v783 = vld [vmem:[%s1 + $0x64] sm:$0xff]
      %v784 = vld [vmem:[%s1 + $0x6c] sm:$0xf]
      %v785 = vld [vmem:[#allocation2] sm:$0xff]
      %v786 = vld [vmem:[#allocation2 + $0x8] sm:$0xff]
      %v787 = vld [vmem:[#allocation2 + $0x10] sm:$0xff]
      %v788 = vld [vmem:[#allocation2 + $0x18] sm:$0xff]
      %v789 = vld [vmem:[#allocation2 + $0x20] sm:$0xff]
      %v790 = vld [vmem:[#allocation2 + $0x28] sm:$0xff]
      %v791 = vld [vmem:[#allocation2 + $0x30] sm:$0xff]
      %v792 = vld [vmem:[#allocation2 + $0x38] sm:$0xff]
      %v793 = vld [vmem:[#allocation2 + $0x40] sm:$0xff]
      %v794 = vld [vmem:[#allocation2 + $0x48] sm:$0xff]
      %v795 = vld [vmem:[#allocation2 + $0x50] sm:$0xff]
      %v796 = vld [vmem:[#allocation2 + $0x58] sm:$0xff]
      %v797 = vld [vmem:[#allocation2 + $0x60] sm:$0xff]
      %v798 = vld [vmem:[#allocation2 + $0x68] sm:$0xff]
      %v799 = vld [vmem:[#allocation2 + $0x70] sm:$0xff]
      %v800 = vld [vmem:[#allocation2 + $0x78] sm:$0xff]
      %v801 = vld [vmem:[#allocation2 + $0x80] sm:$0xff]
      %v802 = vld [vmem:[#allocation2 + $0x88] sm:$0xff]
      %v803 = vld [vmem:[#allocation2 + $0x90] sm:$0xff]
      %v804 = vld [vmem:[#allocation2 + $0x98] sm:$0xff]
      %v805 = vld [vmem:[#allocation2 + $0xa0] sm:$0xff]
      %v806 = vld [vmem:[#allocation2 + $0xa8] sm:$0xff]
      %v807 = vld [vmem:[#allocation2 + $0xb0] sm:$0xff]
      %v808 = vld [vmem:[#allocation2 + $0xb8] sm:$0xff]
      %v809 = vld [vmem:[#allocation2 + $0xc0] sm:$0xff]
      %v810 = vld [vmem:[#allocation2 + $0xc8] sm:$0xff]
      %v811 = vld [vmem:[#allocation2 + $0xd0] sm:$0xff]
      %v812 = vld [vmem:[#allocation2 + $0xd8] sm:$0xff]
      %v813 = vld [vmem:[#allocation2 + $0xe0] sm:$0xff]
      %v814 = vld [vmem:[#allocation2 + $0xe8] sm:$0xff]
      %v815 = vld [vmem:[#allocation2 + $0xf0] sm:$0xff]
      %v816 = vld [vmem:[#allocation2 + $0xf8] sm:$0xff]
      %v817 = vld [vmem:[#allocation2 + $0x100] sm:$0xff]
      %v818 = vld [vmem:[#allocation2 + $0x108] sm:$0xff]
      %v819 = vld [vmem:[#allocation2 + $0x110] sm:$0xff]
      %v820 = vld [vmem:[#allocation2 + $0x118] sm:$0xff]
      %v821 = vld [vmem:[#allocation2 + $0x120] sm:$0xff]
      %v822 = vld [vmem:[#allocation2 + $0x128] sm:$0xff]
      %v823 = vld [vmem:[#allocation2 + $0x130] sm:$0xff]
      %v824 = vld [vmem:[#allocation2 + $0x138] sm:$0xff]
      %v825 = vld [vmem:[#allocation2 + $0x140] sm:$0xff]
      %v826 = vld [vmem:[#allocation2 + $0x148] sm:$0xff]
      %v827 = vld [vmem:[#allocation2 + $0x150] sm:$0xff]
      %v828 = vld [vmem:[#allocation2 + $0x158] sm:$0xff]
      %v829 = vld [vmem:[#allocation2 + $0x160] sm:$0xff]
      %v830 = vld [vmem:[#allocation2 + $0x168] sm:$0xff]
      %v831 = vld [vmem:[#allocation2 + $0x170] sm:$0xff]
      %v832 = vld [vmem:[#allocation2 + $0x178] sm:$0xff]
      %v833 = vld [vmem:[#allocation2 + $0x180] sm:$0xff]
      %v850 = vunpack.c.l.b16 %v769
      %v851 = vunpack.c.h.b16 %v769
      %v852 = vunpack.c.l.b16 %v770
      %v853 = vunpack.c.h.b16 %v770
      %v854 = vunpack.c.l.b16 %v771
      %v855 = vunpack.c.h.b16 %v771
      %v856 = vunpack.c.l.b16 %v772
      %v857 = vunpack.c.l.b16 %v773
      %v858 = vunpack.c.h.b16 %v773
      %v859 = vunpack.c.l.b16 %v774
      %v860 = vunpack.c.h.b16 %v774
      %v861 = vunpack.c.l.b16 %v775
      %v862 = vunpack.c.h.b16 %v775
      %v863 = vunpack.c.l.b16 %v776
      %v864 = vunpack.c.l.b16 %v777
      %v865 = vunpack.c.h.b16 %v777
      %v866 = vunpack.c.l.b16 %v778
      %v867 = vunpack.c.h.b16 %v778
      %v868 = vunpack.c.l.b16 %v779
      %v869 = vunpack.c.h.b16 %v779
      %v870 = vunpack.c.l.b16 %v780
      %v871 = vunpack.c.l.b16 %v781
      %v872 = vunpack.c.h.b16 %v781
      %v873 = vunpack.c.l.b16 %v782
      %v874 = vunpack.c.h.b16 %v782
      %v875 = vunpack.c.l.b16 %v783
      %v876 = vunpack.c.h.b16 %v783
      %v877 = vunpack.c.l.b16 %v784
      %v878 = vpack.c.b16 %v857, %v850
      %v879 = vpack.c.b16 %v858, %v851
      %v880 = vpack.c.b16 %v859, %v852
      %v881 = vpack.c.b16 %v860, %v853
      %v882 = vpack.c.b16 %v861, %v854
      %v883 = vpack.c.b16 %v862, %v855
      %v884 = vpack.c.b16 %v863, %v856
      %v885 = vpack.c.b16 %v871, %v864
      %v886 = vpack.c.b16 %v872, %v865
      %v887 = vpack.c.b16 %v873, %v866
      %v888 = vpack.c.b16 %v874, %v867
      %v889 = vpack.c.b16 %v875, %v868
      %v890 = vpack.c.b16 %v876, %v869
      %v891 = vpack.c.b16 %v877, %v870
      %vm904 = vcmask 130048
      %v906 = vsel %vm904, %v884, 0
      %v909 = vsel %vm904, %v891, 0
      %911 = vmatprep.subr.bf16.mxu0 0
      %912 = vmatpush1.bf16.msra.mxu0 %v785
      %913 = vmatprep.subr.bf16.mxu0 0
      %914 = vmatpush1.bf16.msra.mxu0 %v786
      %915 = vmatprep.subr.bf16.mxu0 0
      %916 = vmatpush1.bf16.msra.mxu0 %v787
      %917 = vmatprep.subr.bf16.mxu0 0
      %918 = vmatpush1.bf16.msra.mxu0 %v788
      %919 = vmatprep.subr.bf16.mxu0 0
      %920 = vmatpush1.bf16.msra.mxu0 %v789
      %921 = vmatprep.subr.bf16.mxu0 0
      %922 = vmatpush1.bf16.msra.mxu0 %v790
      %923 = vmatprep.subr.bf16.mxu0 0
      %924 = vmatpush1.bf16.msra.mxu0 %v791
      %925 = vmatprep.subr.bf16.mxu0 0
      %926 = vmatpush1.bf16.msra.mxu0 %v792
      %927 = vmatprep.subr.bf16.mxu0 0
      %928 = vmatpush1.bf16.msra.mxu0 %v793
      %929 = vmatprep.subr.bf16.mxu0 0
      %930 = vmatpush1.bf16.msra.mxu0 %v794
      %931 = vmatprep.subr.bf16.mxu0 0
      %932 = vmatpush1.bf16.msra.mxu0 %v795
      %933 = vmatprep.subr.bf16.mxu0 0
      %934 = vmatpush1.bf16.msra.mxu0 %v796
      %935 = vmatprep.subr.bf16.mxu0 0
      %936 = vmatpush1.bf16.msra.mxu0 %v797
      %937 = vmatprep.subr.bf16.mxu0 0
      %938 = vmatpush1.bf16.msra.mxu0 %v798
      %939 = vmatprep.subr.bf16.mxu0 0
      %940 = vmatpush1.bf16.msra.mxu0 %v799
      %941 = vmatprep.subr.bf16.mxu0 0
      %942 = vmatpush1.bf16.msra.mxu0 %v800
      %943 = vmatprep.mubr.bf16.mxu0 %v879
      %944 = vmatmul.mubr.bf16.gmra.mrb[0].mxu0 %v878
      %v945 = vpop.f32.mrb[0].mxu0
      %v946 = vadd.f32 0.0, %v945
      %v947 = vpop.f32.mrb[0].mxu0
      %v948 = vpop.f32.mrb[0].mxu0
      %v949 = vadd.f32 0.0, %v948
      %v950 = vpop.f32.mrb[0].mxu0
      %951 = vmatprep.mubr.bf16.mxu0 %v886
      %952 = vmatmul.mubr.bf16.gmra.mrb[0].mxu0 %v885
      %v953 = vpop.f32.mrb[0].mxu0
      %v954 = vadd.f32 0.0, %v953
      %v955 = vpop.f32.mrb[0].mxu0
      %v956 = vpop.f32.mrb[0].mxu0
      %v957 = vadd.f32 0.0, %v956
      %v958 = vpop.f32.mrb[0].mxu0
      %959 = vdwg.mxu0
      %960 = vmatprep.subr.bf16.mxu0 0
      %961 = vmatpush1.bf16.msra.mxu0 %v801
      %962 = vmatprep.subr.bf16.mxu0 0
      %963 = vmatpush1.bf16.msra.mxu0 %v802
      %964 = vmatprep.subr.bf16.mxu0 0
      %965 = vmatpush1.bf16.msra.mxu0 %v803
      %966 = vmatprep.subr.bf16.mxu0 0
      %967 = vmatpush1.bf16.msra.mxu0 %v804
      %968 = vmatprep.subr.bf16.mxu0 0
      %969 = vmatpush1.bf16.msra.mxu0 %v805
      %970 = vmatprep.subr.bf16.mxu0 0
      %971 = vmatpush1.bf16.msra.mxu0 %v806
      %972 = vmatprep.subr.bf16.mxu0 0
      %973 = vmatpush1.bf16.msra.mxu0 %v807
      %974 = vmatprep.subr.bf16.mxu0 0
      %975 = vmatpush1.bf16.msra.mxu0 %v808
      %976 = vmatprep.subr.bf16.mxu0 0
      %977 = vmatpush1.bf16.msra.mxu0 %v809
      %978 = vmatprep.subr.bf16.mxu0 0
      %979 = vmatpush1.bf16.msra.mxu0 %v810
      %980 = vmatprep.subr.bf16.mxu0 0
      %981 = vmatpush1.bf16.msra.mxu0 %v811
      %982 = vmatprep.subr.bf16.mxu0 0
      %983 = vmatpush1.bf16.msra.mxu0 %v812
      %984 = vmatprep.subr.bf16.mxu0 0
      %985 = vmatpush1.bf16.msra.mxu0 %v813
      %986 = vmatprep.subr.bf16.mxu0 0
      %987 = vmatpush1.bf16.msra.mxu0 %v814
      %988 = vmatprep.subr.bf16.mxu0 0
      %989 = vmatpush1.bf16.msra.mxu0 %v815
      %990 = vmatprep.subr.bf16.mxu0 0
      %991 = vmatpush1.bf16.msra.mxu0 %v816
      %992 = vmatprep.mubr.bf16.mxu0 %v881
      %993 = vmatmul.mubr.bf16.gmra.mrb[0].mxu0 %v880
      %v994 = vpop.f32.mrb[0].mxu0
      %v995 = vadd.f32 %v946, %v994
      %v996 = vpop.f32.mrb[0].mxu0
      %v997 = vpop.f32.mrb[0].mxu0
      %v998 = vadd.f32 %v949, %v997
      %v999 = vpop.f32.mrb[0].mxu0
      %1000 = vmatprep.mubr.bf16.mxu0 %v888
      %1001 = vmatmul.mubr.bf16.gmra.mrb[0].mxu0 %v887
      %v1002 = vpop.f32.mrb[0].mxu0
      %v1003 = vadd.f32 %v954, %v1002
      %v1004 = vpop.f32.mrb[0].mxu0
      %v1005 = vpop.f32.mrb[0].mxu0
      %v1006 = vadd.f32 %v957, %v1005
      %v1007 = vpop.f32.mrb[0].mxu0
      %1008 = vdwg.mxu0
      %1009 = vmatprep.subr.bf16.mxu0 0
      %1010 = vmatpush1.bf16.msra.mxu0 %v817
      %1011 = vmatprep.subr.bf16.mxu0 0
      %1012 = vmatpush1.bf16.msra.mxu0 %v818
      %1013 = vmatprep.subr.bf16.mxu0 0
      %1014 = vmatpush1.bf16.msra.mxu0 %v819
      %1015 = vmatprep.subr.bf16.mxu0 0
      %1016 = vmatpush1.bf16.msra.mxu0 %v820
      %1017 = vmatprep.subr.bf16.mxu0 0
      %1018 = vmatpush1.bf16.msra.mxu0 %v821
      %1019 = vmatprep.subr.bf16.mxu0 0
      %1020 = vmatpush1.bf16.msra.mxu0 %v822
      %1021 = vmatprep.subr.bf16.mxu0 0
      %1022 = vmatpush1.bf16.msra.mxu0 %v823
      %1023 = vmatprep.subr.bf16.mxu0 0
      %1024 = vmatpush1.bf16.msra.mxu0 %v824
      %1025 = vmatprep.subr.bf16.mxu0 0
      %1026 = vmatpush1.bf16.msra.mxu0 %v825
      %1027 = vmatprep.subr.bf16.mxu0 0
      %1028 = vmatpush1.bf16.msra.mxu0 %v826
      %1029 = vmatprep.subr.bf16.mxu0 0
      %1030 = vmatpush1.bf16.msra.mxu0 %v827
      %1031 = vmatprep.subr.bf16.mxu0 0
      %1032 = vmatpush1.bf16.msra.mxu0 %v828
      %1033 = vmatprep.subr.bf16.mxu0 0
      %1034 = vmatpush1.bf16.msra.mxu0 %v829
      %1035 = vmatprep.subr.bf16.mxu0 0
      %1036 = vmatpush1.bf16.msra.mxu0 %v830
      %1037 = vmatprep.subr.bf16.mxu0 0
      %1038 = vmatpush1.bf16.msra.mxu0 %v831
      %1039 = vmatprep.subr.bf16.mxu0 0
      %1040 = vmatpush1.bf16.msra.mxu0 %v832
      %1041 = vmatprep.mubr.bf16.mxu0 %v883
      %1042 = vmatmul.mubr.bf16.gmra.mrb[0].mxu0 %v882
      %v1043 = vpop.f32.mrb[0].mxu0
      %v1044 = vadd.f32 %v995, %v1043
      %v1045 = vpop.f32.mrb[0].mxu0
      %v1046 = vpop.f32.mrb[0].mxu0
      %v1047 = vadd.f32 %v998, %v1046
      %v1048 = vpop.f32.mrb[0].mxu0
      %1049 = vmatprep.mubr.bf16.mxu0 %v890
      %1050 = vmatmul.mubr.bf16.gmra.mrb[0].mxu0 %v889
      %v1051 = vpop.f32.mrb[0].mxu0
      %v1052 = vadd.f32 %v1003, %v1051
      %v1053 = vpop.f32.mrb[0].mxu0
      %v1054 = vpop.f32.mrb[0].mxu0
      %v1055 = vadd.f32 %v1006, %v1054
      %v1056 = vpop.f32.mrb[0].mxu0
      %1057 = vdwg.mxu0
      %1058 = vmatprep.subr.bf16.mxu0 0
      %1059 = vmatpush1.bf16.msra.mxu0 %v833
      %1060 = vmatprep.subr.bf16.mxu0 0
      %1061 = vmatpush1.bf16.msra.mxu0 0
      %1062 = vmatprep.subr.bf16.mxu0 0
      %1063 = vmatpush1.bf16.msra.mxu0 0
      %1064 = vmatprep.subr.bf16.mxu0 0
      %1065 = vmatpush1.bf16.msra.mxu0 0
      %1066 = vmatprep.subr.bf16.mxu0 0
      %1067 = vmatpush1.bf16.msra.mxu0 0
      %1068 = vmatprep.subr.bf16.mxu0 0
      %1069 = vmatpush1.bf16.msra.mxu0 0
      %1070 = vmatprep.subr.bf16.mxu0 0
      %1071 = vmatpush1.bf16.msra.mxu0 0
      %1072 = vmatprep.subr.bf16.mxu0 0
      %1073 = vmatpush1.bf16.msra.mxu0 0
      %1074 = vmatprep.subr.bf16.mxu0 0
      %1075 = vmatpush1.bf16.msra.mxu0 0
      %1076 = vmatprep.subr.bf16.mxu0 0
      %1077 = vmatpush1.bf16.msra.mxu0 0
      %1078 = vmatprep.subr.bf16.mxu0 0
      %1079 = vmatpush1.bf16.msra.mxu0 0
      %1080 = vmatprep.subr.bf16.mxu0 0
      %1081 = vmatpush1.bf16.msra.mxu0 0
      %1082 = vmatprep.subr.bf16.mxu0 0
      %1083 = vmatpush1.bf16.msra.mxu0 0
      %1084 = vmatprep.subr.bf16.mxu0 0
      %1085 = vmatpush1.bf16.msra.mxu0 0
      %1086 = vmatprep.subr.bf16.mxu0 0
      %1087 = vmatpush1.bf16.msra.mxu0 0
      %1088 = vmatprep.subr.bf16.mxu0 0
      %1089 = vmatpush1.bf16.msra.mxu0 0
      %1090 = vmatprep.mubr.bf16.mxu0 0
      %1091 = vmatmul.mubr.bf16.gmra.mrb[0].mxu0 %v906
      %v1092 = vpop.f32.mrb[0].mxu0
      %v1093 = vadd.f32 %v1044, %v1092
      %v1094 = vpop.f32.mrb[0].mxu0
      %v1095 = vpop.f32.mrb[0].mxu0
      %v1096 = vadd.f32 %v1047, %v1095
      %v1097 = vpop.f32.mrb[0].mxu0
      %1098 = vmatprep.mubr.bf16.mxu0 0
      %1099 = vmatmul.mubr.bf16.gmra.mrb[0].mxu0 %v909
      %v1100 = vpop.f32.mrb[0].mxu0
      %v1101 = vadd.f32 %v1052, %v1100
      %v1102 = vpop.f32.mrb[0].mxu0
      %v1103 = vpop.f32.mrb[0].mxu0
      %v1104 = vadd.f32 %v1055, %v1103
      %v1105 = vpop.f32.mrb[0].mxu0
      %1106 = vdwg.mxu0
      %1108 = vset.pattern.permute.xlu0 0
      %1109 = vperm.xlu0 %1108, %v280
      %v1110 = vpop.permute.xlu0 %1109
      %1113 = vset.pattern.permute.xlu0 0
      %1114 = vperm.xlu0 %1113, %v281
      %v1115 = vpop.permute.xlu0 %1114
      %1118 = vset.pattern.permute.xlu0 0
      %1119 = vperm.xlu0 %1118, %v282
      %v1120 = vpop.permute.xlu0 %1119
      %1123 = vset.pattern.permute.xlu0 0
      %1124 = vperm.xlu0 %1123, %v283
      %v1125 = vpop.permute.xlu0 %1124
      %v1127 = vmul.f32 %v1093, %v1110
      %v1128 = vmul.f32 %v1096, %v1115
      %v1129 = vmul.f32 %v1101, %v1120
      %v1130 = vmul.f32 %v1104, %v1125
      %1132 = vset.pattern.permute.xlu0 0
      %1133 = vperm.xlu0 %1132, %v284
      %v1134 = vpop.permute.xlu0 %1133
      %1137 = vset.pattern.permute.xlu0 0
      %1138 = vperm.xlu0 %1137, %v285
      %v1139 = vpop.permute.xlu0 %1138
      %1142 = vset.pattern.permute.xlu0 0
      %1143 = vperm.xlu0 %1142, %v286
      %v1144 = vpop.permute.xlu0 %1143
      %1147 = vset.pattern.permute.xlu0 0
      %1148 = vperm.xlu0 %1147, %v287
      %v1149 = vpop.permute.xlu0 %1148
      %v1151 = vadd.f32 %v1127, %v1134
      %v1152 = vadd.f32 %v1128, %v1139
      %v1153 = vadd.f32 %v1129, %v1144
      %v1154 = vadd.f32 %v1130, %v1149
      %v1155 = vmax.f32 %v1151, 0.0
      %v1156 = vmax.f32 %v1152, 0.0
      %v1157 = vmax.f32 %v1153, 0.0
      %v1158 = vmax.f32 %v1154, 0.0
      %v1159 = vpack.c.bf16 %v1156, %v1155
      %v1160 = vpack.c.bf16 %v1158, %v1157
      %v1163 = vunpack.c.l.b16 %v1159
      %v1164 = vunpack.c.h.b16 %v1159
      %v1165 = vunpack.c.l.b16 %v1160
      %v1166 = vunpack.c.h.b16 %v1160
      %v1167 = vpack.c.b16 %v1163, %v1163
      %v1168 = vpack.c.b16 %v1164, %v1164
      %v1169 = vpack.c.b16 %v1165, %v1165
      %v1170 = vpack.c.b16 %v1166, %v1166
      %1175 = vst [vmem:[%s278] sm:$0xf] %v1167
      %1176 = vst [vmem:[%s278 + $0x4] sm:$0xf] %v1168
      %1177 = vst [vmem:[%s278 + $0x8] sm:$0xf] %v1169
      %1178 = vst [vmem:[%s278 + $0xc] sm:$0xf] %v1170
      %p1179 = scmp.lt.s32.totalorder %s21, 1
      %s1180 = scalar_select %p1179, %s21, 1
      %p1181 = scmp.lt.s32.totalorder %s22, 0
      %s1182 = scalar_select %p1181, %s22, 0
      %s1183 = smul.addr %s1180, 4
      %s1184 = sadd.s32 %s1182, %s1183
      %s1185 = smul.addr %s1184, 4
      %s1186 = scalar_lea.vmem %s6, %s1185
      // Predicated region
      $region45: #{stem_forward.4} parent=43 // pred_check
        %p1187 = pneg %p182
      $region46: #{stem_forward.4} parent=43 // pred_check_branch
        %1189 = sbr.rel (%p1187) target = $region48
      $region47: #{stem_forward.4} parent=43 // pred_region
        _
      $region48: #{stem_forward.4} parent=43 // pred_fallthru
        _
    $region44: #{stem_forward.4} parent=5 // pred_fallthru
      _
    %p1190 = scmp.le.s32.totalorder 2, %s12
    // Predicated region
    $region49: #{stem_forward.4} parent=5 // pred_check
      %p1191 = pneg %p1190
    $region50: #{stem_forward.4} parent=5 // pred_check_branch
      %1193 = sbr.rel (%p1191) target = $region52
    $region51: #{stem_forward.4} parent=5 // pred_region
      %s1194 = ssub.s32 %s12, 2
      // Predicated region
      $region53: #{stem_forward.4} parent=51 // pred_check
        %p1195 = pneg %p188
      $region54: #{stem_forward.4} parent=51 // pred_check_branch
        %1197 = sbr.rel (%p1195) target = $region56
      $region55: #{stem_forward.4} parent=51 // pred_region
        %p1198 = scmp.lt.s32.totalorder %s23, 1
        %s1199 = scalar_select %p1198, %s23, 1
        %p1200 = scmp.lt.s32.totalorder %s24, 0
        %s1201 = scalar_select %p1200, %s24, 0
        %s1202 = smul.addr %s1199, 4
        %s1203 = sadd.s32 %s1201, %s1202
        %s1204 = smul.addr %s1203, 4
        %s1205 = scalar_lea.vmem %s6, %s1204
      $region56: #{stem_forward.4} parent=51 // pred_fallthru
        _
    $region52: #{stem_forward.4} parent=5 // pred_fallthru
      _
  $region6: #{stem_forward.4} parent=0 // loop_footer
    %s16 = sadd.s32 1, %s12
  $region7: #{stem_forward.4} parent=0 // loop_footer_branch
    %11 = sbr.rel target = $region3
  $region8: #{stem_forward.4} parent=0 // loop_exit
    _

// kernel: stem_forward.5
$region0: #{stem_forward.5}
  #allocation0 [shape = 'u32[]', space=smem, size = 0x4, offset = 0x4, fixed_abs, tag = 'smem constant byte address 0x4 - core index']
  #allocation1 [shape = 'u32[144,128]{1,0:T(1,128)}', space=vmem, size = 0x12000, scoped, tag = 'internal scratch']
  #allocation2 [shape = 'bf16[288,128]{1,0:T(16,128)(2,1)}', space=vmem, size = 0x12000, scoped, tag = 'scratch operand']
  %s0 = inlined_call_operand.vmem [shape: bf16[2,1,32,176], index: 0, kind: input, shape index: {}]
  %s1 = inlined_call_operand.vmem [shape: bf16[32,288], index: 1, kind: input, shape index: {}]
  %s2 = inlined_call_operand.vmem [shape: f32[32,1], index: 2, kind: input, shape index: {}]
  %s3 = inlined_call_operand.vmem [shape: f32[32,1], index: 3, kind: input, shape index: {}]
  %s4 = inlined_call_operand.vmem [shape: f32[32,1], index: 4, kind: input, shape index: {}]
  %s5 = inlined_call_operand.vmem [shape: f32[32,1], index: 5, kind: input, shape index: {}]
  %s6 = inlined_call_operand.vmem [shape: bf16[2,32,128], index: 6, kind: output, shape index: {}]
  %s7 = sld [smem:[#allocation0]]
  $region57: #{stem_forward.5} parent=0
    _
  %s9 = ssub.s32 1, %s7
  %s10 = scalar_select 0, %s9, %s7
  loop: start=0, step=1, limit=4
  $region2: #{stem_forward.5} parent=0 // loop_pre_header
    _
  $region3: #{stem_forward.5} parent=0 // loop_header
    %s12 = sphi 0, %s16
    %p13 = scmp.ge.s32.totalorder %s12, 4
    %s19 = sphi 0, %s31
    %s20 = sphi 0, %s27
    %s21 = sphi 0, %s19
    %s22 = sphi 0, %s20
    %s23 = sphi 0, %s21
    %s24 = sphi 0, %s22
    %s36 = sphi 0, %s38
    %s39 = sphi 0, %s36
    %s40 = sphi 0, %s39
    %s56 = sphi 0, %s40
    %s60 = sphi 0, %s60
    %s62 = sphi 0, %s60
    %s63 = sphi 0, %s62
    %s77 = sphi 0, %s63
    %s81 = sphi 0, %s81
    %s83 = sphi 0, %s81
    %s84 = sphi 0, %s83
    %s98 = sphi 0, %s84
    %s102 = sphi 0, %s102
    %s104 = sphi 0, %s102
    %s105 = sphi 0, %s104
    %s119 = sphi 0, %s105
    %s123 = sphi 0, %s123
    %s125 = sphi 0, %s123
    %s126 = sphi 0, %s125
    %s140 = sphi 0, %s126
    %s144 = sphi 0, %s144
    %s146 = sphi 0, %s144
    %s147 = sphi 0, %s146
    %s161 = sphi 0, %s147
    %s169 = sphi 0, %s171
    %s172 = sphi 0, %s169
    %s173 = sphi 0, %s172
    %s189 = sphi 0, %s173
  $region4: #{stem_forward.5} parent=0 // loop_header_branch
    %15 = sbr.rel (%p13) target = $region8
  $region5: #{stem_forward.5} parent=0 // loop_body
    %s17 = ssub.s32 %s12, 1
    %s18 = ssub.s32 %s12, 2
    %s25 = sadd.s32 1, %s20
    %p26 = scmp.ge.s32.totalorder %s25, 1
    %s27 = scalar_select %p26, 0, %s25
    %s28 = sadd.s32 1, %s19
    %s29 = scalar_select %p26, %s28, %s19
    %p30 = scmp.ge.s32.totalorder %s29, 2
    %s31 = scalar_select %p30, 0, %s29
    %s32 = sadd.s32 %s19, %s20
    %s33 = sadd.s32 %s31, %s27
    %s34 = ssub.s32 %s32, %s33
    %p35 = scmp.eq.s32.totalorder %s34, 0
    %s37 = sadd.s32 %s36, 1
    %s38 = scalar_select %p35, %s36, %s37
    %p41 = pneg %p35
    %p42 = scmp.eq.s32.totalorder %s12, 1
    %p43 = por %p41, %p42
    %p44 = scmp.ne.s32.totalorder %s36, %s39
    %p45 = scmp.eq.s32.totalorder %s12, 0
    %p46 = por %p44, %p45
    %p47 = scmp.ne.s32.totalorder %s36, %s39
    %p48 = scmp.eq.s32.totalorder %s17, 1
    %p49 = por %p47, %p48
    %p50 = scmp.ne.s32.totalorder %s39, %s40
    %p51 = scmp.eq.s32.totalorder %s17, 0
    %p52 = por %p50, %p51
    %p53 = scmp.ne.s32.totalorder %s39, %s40
    %p54 = scmp.eq.s32.totalorder %s18, 1
    %p55 = por %p53, %p54
    %p57 = scmp.ne.s32.totalorder %s40, %s56
    %p58 = scmp.eq.s32.totalorder %s18, 0
    %p59 = por %p57, %p58
    %s61 = sadd.s32 %s60, 1
    %p64 = scmp.eq.s32.totalorder %s12, 1
    %p65 = scmp.ne.s32.totalorder %s60, %s62
    %p66 = scmp.eq.s32.totalorder %s12, 0
    %p67 = por %p65, %p66
    %p68 = scmp.ne.s32.totalorder %s60, %s62
    %p69 = scmp.eq.s32.totalorder %s17, 1
    %p70 = por %p68, %p69
    %p71 = scmp.ne.s32.totalorder %s62, %s63
    %p72 = scmp.eq.s32.totalorder %s17, 0
    %p73 = por %p71, %p72
    %p74 = scmp.ne.s32.totalorder %s62, %s63
    %p75 = scmp.eq.s32.totalorder %s18, 1
    %p76 = por %p74, %p75
    %p78 = scmp.ne.s32.totalorder %s63, %s77
    %p79 = scmp.eq.s32.totalorder %s18, 0
    %p80 = por %p78, %p79
    %s82 = sadd.s32 %s81, 1
    %p85 = scmp.eq.s32.totalorder %s12, 1
    %p86 = scmp.ne.s32.totalorder %s81, %s83
    %p87 = scmp.eq.s32.totalorder %s12, 0
    %p88 = por %p86, %p87
    %p89 = scmp.ne.s32.totalorder %s81, %s83
    %p90 = scmp.eq.s32.totalorder %s17, 1
    %p91 = por %p89, %p90
    %p92 = scmp.ne.s32.totalorder %s83, %s84
    %p93 = scmp.eq.s32.totalorder %s17, 0
    %p94 = por %p92, %p93
    %p95 = scmp.ne.s32.totalorder %s83, %s84
    %p96 = scmp.eq.s32.totalorder %s18, 1
    %p97 = por %p95, %p96
    %p99 = scmp.ne.s32.totalorder %s84, %s98
    %p100 = scmp.eq.s32.totalorder %s18, 0
    %p101 = por %p99, %p100
    %s103 = sadd.s32 %s102, 1
    %p106 = scmp.eq.s32.totalorder %s12, 1
    %p107 = scmp.ne.s32.totalorder %s102, %s104
    %p108 = scmp.eq.s32.totalorder %s12, 0
    %p109 = por %p107, %p108
    %p110 = scmp.ne.s32.totalorder %s102, %s104
    %p111 = scmp.eq.s32.totalorder %s17, 1
    %p112 = por %p110, %p111
    %p113 = scmp.ne.s32.totalorder %s104, %s105
    %p114 = scmp.eq.s32.totalorder %s17, 0
    %p115 = por %p113, %p114
    %p116 = scmp.ne.s32.totalorder %s104, %s105
    %p117 = scmp.eq.s32.totalorder %s18, 1
    %p118 = por %p116, %p117
    %p120 = scmp.ne.s32.totalorder %s105, %s119
    %p121 = scmp.eq.s32.totalorder %s18, 0
    %p122 = por %p120, %p121
    %s124 = sadd.s32 %s123, 1
    %p127 = scmp.eq.s32.totalorder %s12, 1
    %p128 = scmp.ne.s32.totalorder %s123, %s125
    %p129 = scmp.eq.s32.totalorder %s12, 0
    %p130 = por %p128, %p129
    %p131 = scmp.ne.s32.totalorder %s123, %s125
    %p132 = scmp.eq.s32.totalorder %s17, 1
    %p133 = por %p131, %p132
    %p134 = scmp.ne.s32.totalorder %s125, %s126
    %p135 = scmp.eq.s32.totalorder %s17, 0
    %p136 = por %p134, %p135
    %p137 = scmp.ne.s32.totalorder %s125, %s126
    %p138 = scmp.eq.s32.totalorder %s18, 1
    %p139 = por %p137, %p138
    %p141 = scmp.ne.s32.totalorder %s126, %s140
    %p142 = scmp.eq.s32.totalorder %s18, 0
    %p143 = por %p141, %p142
    %s145 = sadd.s32 %s144, 1
    %p148 = scmp.eq.s32.totalorder %s12, 1
    %p149 = scmp.ne.s32.totalorder %s144, %s146
    %p150 = scmp.eq.s32.totalorder %s12, 0
    %p151 = por %p149, %p150
    %p152 = scmp.ne.s32.totalorder %s144, %s146
    %p153 = scmp.eq.s32.totalorder %s17, 1
    %p154 = por %p152, %p153
    %p155 = scmp.ne.s32.totalorder %s146, %s147
    %p156 = scmp.eq.s32.totalorder %s17, 0
    %p157 = por %p155, %p156
    %p158 = scmp.ne.s32.totalorder %s146, %s147
    %p159 = scmp.eq.s32.totalorder %s18, 1
    %p160 = por %p158, %p159
    %p162 = scmp.ne.s32.totalorder %s147, %s161
    %p163 = scmp.eq.s32.totalorder %s18, 0
    %p164 = por %p162, %p163
    %s165 = ssub.s32 %s19, %s31
    %s166 = ssub.s32 %s20, %s27
    %s167 = sor.u32 %s165, %s166
    %p168 = scmp.eq.s32.totalorder %s167, 0
    %s170 = sadd.s32 %s169, 1
    %s171 = scalar_select %p168, %s169, %s170
    %p174 = pneg %p168
    %p175 = scmp.eq.s32.totalorder %s12, 1
    %p176 = por %p174, %p175
    %p177 = scmp.ne.s32.totalorder %s169, %s172
    %p178 = scmp.eq.s32.totalorder %s12, 0
    %p179 = por %p177, %p178
    %p180 = scmp.ne.s32.totalorder %s169, %s172
    %p181 = scmp.eq.s32.totalorder %s17, 1
    %p182 = por %p180, %p181
    %p183 = scmp.ne.s32.totalorder %s172, %s173
    %p184 = scmp.eq.s32.totalorder %s17, 0
    %p185 = por %p183, %p184
    %p186 = scmp.ne.s32.totalorder %s172, %s173
    %p187 = scmp.eq.s32.totalorder %s18, 1
    %p188 = por %p186, %p187
    %p190 = scmp.ne.s32.totalorder %s173, %s189
    %p191 = scmp.eq.s32.totalorder %s18, 0
    %p192 = por %p190, %p191
    %p193 = scmp.le.s32.totalorder 1, %s12
    %p194 = scmp.lt.s32.totalorder %s12, 3
    %p195 = pnand %p193, %p194
    %p196 = pneg %p195
    // Predicated region
    $region9: #{stem_forward.5} parent=5 // pred_check
      _
    $region10: #{stem_forward.5} parent=5 // pred_check_branch
      %198 = sbr.rel (%p195) target = $region12
    $region11: #{stem_forward.5} parent=5 // pred_region
      %s199 = ssub.s32 %s12, 1
      // Predicated region
      $region13: #{stem_forward.5} parent=11 // pred_check
        %p200 = pneg %p73
      $region14: #{stem_forward.5} parent=11 // pred_check_branch
        %202 = sbr.rel (%p200) target = $region16
      $region15: #{stem_forward.5} parent=11 // pred_region
        _
      $region16: #{stem_forward.5} parent=11 // pred_fallthru
        _
      // Predicated region
      $region17: #{stem_forward.5} parent=11 // pred_check
        %p203 = pneg %p94
      $region18: #{stem_forward.5} parent=11 // pred_check_branch
        %205 = sbr.rel (%p203) target = $region20
      $region19: #{stem_forward.5} parent=11 // pred_region
        _
      $region20: #{stem_forward.5} parent=11 // pred_fallthru
        _
      // Predicated region
      $region21: #{stem_forward.5} parent=11 // pred_check
        %p206 = pneg %p115
      $region22: #{stem_forward.5} parent=11 // pred_check_branch
        %208 = sbr.rel (%p206) target = $region24
      $region23: #{stem_forward.5} parent=11 // pred_region
        _
      $region24: #{stem_forward.5} parent=11 // pred_fallthru
        _
      // Predicated region
      $region25: #{stem_forward.5} parent=11 // pred_check
        %p209 = pneg %p136
      $region26: #{stem_forward.5} parent=11 // pred_check_branch
        %211 = sbr.rel (%p209) target = $region28
      $region27: #{stem_forward.5} parent=11 // pred_region
        _
      $region28: #{stem_forward.5} parent=11 // pred_fallthru
        _
      // Predicated region
      $region29: #{stem_forward.5} parent=11 // pred_check
        %p212 = pneg %p157
      $region30: #{stem_forward.5} parent=11 // pred_check_branch
        %214 = sbr.rel (%p212) target = $region32
      $region31: #{stem_forward.5} parent=11 // pred_region
        _
      $region32: #{stem_forward.5} parent=11 // pred_fallthru
        _
    $region12: #{stem_forward.5} parent=5 // pred_fallthru
      _
    %p215 = scmp.lt.s32.totalorder %s12, 2
    // Predicated region
    $region33: #{stem_forward.5} parent=5 // pred_check
      %p216 = pneg %p215
    $region34: #{stem_forward.5} parent=5 // pred_check_branch
      %218 = sbr.rel (%p216) target = $region36
    $region35: #{stem_forward.5} parent=5 // pred_region
      // Predicated region
      $region37: #{stem_forward.5} parent=35 // pred_check
        %p219 = pneg %p46
      $region38: #{stem_forward.5} parent=35 // pred_check_branch
        %221 = sbr.rel (%p219) target = $region40
      $region39: #{stem_forward.5} parent=35 // pred_region
        %s222 = sadd.s32 %s19, %s20
        %p223 = scmp.lt.s32.totalorder %s222, 1
        %s224 = scalar_select %p223, %s222, 1
        %s225 = smul.addr %s224, 8
        %s226 = smul.addr %s225, 4
        %s227 = scalar_lea.vmem %s0, %s226
        %s228 = sadd.s32 %s19, %s20
      $region40: #{stem_forward.5} parent=35 // pred_fallthru
        _
    $region36: #{stem_forward.5} parent=5 // pred_fallthru
      _
    %p229 = scmp.le.s32.totalorder 1, %s12
    %p230 = scmp.lt.s32.totalorder %s12, 3
    %p231 = pnand %p229, %p230
    %p232 = pneg %p231
    // Predicated region
    $region41: #{stem_forward.5} parent=5 // pred_check
      _
    $region42: #{stem_forward.5} parent=5 // pred_check_branch
      %234 = sbr.rel (%p231) target = $region44
    $region43: #{stem_forward.5} parent=5 // pred_region
      %s235 = ssub.s32 %s12, 1
      %s236 = sadd.s32 %s21, %s22
      %p237 = scmp.lt.s32.totalorder %s236, 1
      %s238 = scalar_select %p237, %s236, 1
      %s239 = smul.addr %s238, 8
      %s240 = smul.addr %s239, 4
      %s241 = scalar_lea.vmem %s0, %s240
      %p242 = pneg %p52
      %p243 = pneg %p49
      %p244 = pneg %p73
      %p245 = pneg %p70
      %p246 = pneg %p94
      %p247 = pneg %p91
      %p248 = pneg %p115
      %p249 = pneg %p112
      %p250 = pneg %p136
      %p251 = pneg %p133
      %p252 = pneg %p157
      %p253 = pneg %p154
      %p254 = pneg %p185
      %p255 = pneg %p182
      %p256 = scmp.lt.s32.totalorder %s21, 1
      %s257 = scalar_select %p256, %s21, 1
      %p258 = scmp.lt.s32.totalorder %s22, 0
      %s259 = scalar_select %p258, %s22, 0
      %s260 = smul.addr %s257, 4
      %s261 = sadd.s32 %s259, %s260
      %s262 = smul.addr %s261, 4
      %s263 = scalar_lea.vmem %s6, %s262
      %s264 = sadd.s32 %s21, %s22
      %p265 = scmp.lt.s32.totalorder %s264, 1
      %s266 = scalar_select %p265, %s264, 1
      %s267 = smul.addr %s266, 8
      %s268 = smul.addr %s267, 4
      %s269 = scalar_lea.vmem %s0, %s268
      %s270 = sadd.s32 %s21, %s22
      %p271 = scmp.lt.s32.totalorder %s21, 1
      %s272 = scalar_select %p271, %s21, 1
      %p273 = scmp.lt.s32.totalorder %s22, 0
      %s274 = scalar_select %p273, %s22, 0
      %s275 = smul.addr %s272, 4
      %s276 = sadd.s32 %s274, %s275
      %s277 = smul.addr %s276, 4
      %s278 = scalar_lea.vmem %s6, %s277
      %v280 = vld [vmem:[%s2] sm:$0xff]
      %v281 = vld [vmem:[%s2 + $0x8] sm:$0xff]
      %v282 = vld [vmem:[%s2 + $0x10] sm:$0xff]
      %v283 = vld [vmem:[%s2 + $0x18] sm:$0xff]
      %v284 = vld [vmem:[%s3] sm:$0xff]
      %v285 = vld [vmem:[%s3 + $0x8] sm:$0xff]
      %v286 = vld [vmem:[%s3 + $0x10] sm:$0xff]
      %v287 = vld [vmem:[%s3 + $0x18] sm:$0xff]
      %v288 = vld [vmem:[%s269] sm:$0xff]
      %v289 = vld [vmem:[%s269 + $0x8] sm:$0xff]
      %v290 = vld [vmem:[%s269 + $0x10] sm:$0xff]
      %v291 = vld [vmem:[%s269 + $0x18] sm:$0xff]
      %v296 = vunpack.c.l.b16 %v288
      %v297 = vunpack.c.l.b16 %v289
      %v298 = vunpack.c.l.b16 %v290
      %v299 = vunpack.c.l.b16 %v291
      %v300 = vpack.c.b16 %v297, %v296
      %v301 = vpack.c.b16 %v299, %v298
      %304 = vst [vmem:[#allocation2] sm:$0xff] %v300
      %305 = vst [vmem:[#allocation2 + $0x8] sm:$0xff] %v301
      %v306 = vunpack.c.h.b16 %v288
      %v307 = vunpack.c.h.b16 %v289
      %v308 = vunpack.c.h.b16 %v290
      %v309 = vunpack.c.h.b16 %v291
      %v310 = vpack.c.b16 %v307, %v306
      %v311 = vpack.c.b16 %v309, %v308
      %312 = vrot.lane.b32.xlu0 %v300, 127
      %v313 = vpop.permute.xlu0 %312
      %314 = vrot.lane.b32.xlu0 %v310, 127
      %v315 = vpop.permute.xlu0 %314
      %316 = vrot.lane.b32.xlu0 %v301, 127
      %v317 = vpop.permute.xlu0 %316
      %318 = vrot.lane.b32.xlu0 %v311, 127
      %v319 = vpop.permute.xlu0 %318
      %vm320 = vcmask 1039360
      %v321 = vsel %vm320, %v313, %v315
      %v322 = vsel %vm320, %v317, %v319
      %325 = vst [vmem:[#allocation2 + $0x10] sm:$0xff] %v321
      %326 = vst [vmem:[#allocation2 + $0x18] sm:$0xff] %v322
      %327 = vrot.lane.b32.xlu0 %v300, 126
      %v328 = vpop.permute.xlu0 %327
      %329 = vrot.lane.b32.xlu0 %v310, 126
      %v330 = vpop.permute.xlu0 %329
      %331 = vrot.lane.b32.xlu0 %v301, 126
      %v332 = vpop.permute.xlu0 %331
      %333 = vrot.lane.b32.xlu0 %v311, 126
      %v334 = vpop.permute.xlu0 %333
      %vm335 = vcmask 1031168
      %v336 = vsel %vm335, %v328, %v330
      %v337 = vsel %vm335, %v332, %v334
      %340 = vst [vmem:[#allocation2 + $0x20] sm:$0xff] %v336
      %341 = vst [vmem:[#allocation2 + $0x28] sm:$0xff] %v337
      %v342 = vld [vmem:[%s269] sm:$0xff]
      %v343 = vld [vmem:[%s269 + $0x8] sm:$0xff]
      %v344 = vld [vmem:[%s269 + $0x10] sm:$0xff]
      %v345 = vld [vmem:[%s269 + $0x18] sm:$0xff]
      %v350 = vunpack.c.l.b16 %v342
      %v351 = vunpack.c.h.b16 %v342
      %v352 = vunpack.c.l.b16 %v343
      %v353 = vunpack.c.h.b16 %v343
      %v354 = vunpack.c.l.b16 %v344
      %v355 = vunpack.c.h.b16 %v344
      %v356 = vunpack.c.l.b16 %v345
      %v357 = vunpack.c.h.b16 %v345
      %v358 = vpack.c.b16 %v352, %v350
      %v359 = vpack.c.b16 %v353, %v351
      %v360 = vpack.c.b16 %v356, %v354
      %v361 = vpack.c.b16 %v357, %v355
      %362 = vrot.lane.b32.xlu0 %v358, 112
      %v363 = vpop.permute.xlu0 %362
      %364 = vrot.lane.b32.xlu0 %v359, 112
      %v365 = vpop.permute.xlu0 %364
      %366 = vrot.lane.b32.xlu0 %v360, 112
      %v367 = vpop.permute.xlu0 %366
      %368 = vrot.lane.b32.xlu0 %v361, 112
      %v369 = vpop.permute.xlu0 %368
      %vm370 = vcmask 916480
      %v371 = vsel %vm370, %v363, %v365
      %v372 = vsel %vm370, %v367, %v369
      %375 = vst [vmem:[#allocation2 + $0x30] sm:$0xff] %v371
      %376 = vst [vmem:[#allocation2 + $0x38] sm:$0xff] %v372
      %377 = vrot.lane.b32.xlu0 %v358, 111
      %v378 = vpop.permute.xlu0 %377
      %379 = vrot.lane.b32.xlu0 %v359, 111
      %v380 = vpop.permute.xlu0 %379
      %381 = vrot.lane.b32.xlu0 %v360, 111
      %v382 = vpop.permute.xlu0 %381
      %383 = vrot.lane.b32.xlu0 %v361, 111
      %v384 = vpop.permute.xlu0 %383
      %vm385 = vcmask 908288
      %v386 = vsel %vm385, %v378, %v380
      %v387 = vsel %vm385, %v382, %v384
      %390 = vst [vmem:[#allocation2 + $0x40] sm:$0xff] %v386
      %391 = vst [vmem:[#allocation2 + $0x48] sm:$0xff] %v387
      %392 = vrot.lane.b32.xlu0 %v358, 110
      %v393 = vpop.permute.xlu0 %392
      %394 = vrot.lane.b32.xlu0 %v359, 110
      %v395 = vpop.permute.xlu0 %394
      %396 = vrot.lane.b32.xlu0 %v360, 110
      %v397 = vpop.permute.xlu0 %396
      %398 = vrot.lane.b32.xlu0 %v361, 110
      %v399 = vpop.permute.xlu0 %398
      %vm400 = vcmask 900096
      %v401 = vsel %vm400, %v393, %v395
      %v402 = vsel %vm400, %v397, %v399
      %405 = vst [vmem:[#allocation2 + $0x50] sm:$0xff] %v401
      %406 = vst [vmem:[#allocation2 + $0x58] sm:$0xff] %v402
      %v407 = vld [vmem:[%s269] sm:$0xff]
      %v408 = vld [vmem:[%s269 + $0x8] sm:$0xff]
      %v409 = vld [vmem:[%s269 + $0x10] sm:$0xff]
      %v410 = vld [vmem:[%s269 + $0x18] sm:$0xff]
      %v415 = vunpack.c.l.b16 %v407
      %v416 = vunpack.c.h.b16 %v407
      %v417 = vunpack.c.l.b16 %v408
      %v418 = vunpack.c.h.b16 %v408
      %v419 = vunpack.c.l.b16 %v409
      %v420 = vunpack.c.h.b16 %v409
      %v421 = vunpack.c.l.b16 %v410
      %v422 = vunpack.c.h.b16 %v410
      %v423 = vpack.c.b16 %v417, %v415
      %v424 = vpack.c.b16 %v418, %v416
      %v425 = vpack.c.b16 %v421, %v419
      %v426 = vpack.c.b16 %v422, %v420
      %427 = vrot.lane.b32.xlu0 %v423, 96
      %v428 = vpop.permute.xlu0 %427
      %429 = vrot.lane.b32.xlu0 %v424, 96
      %v430 = vpop.permute.xlu0 %429
      %431 = vrot.lane.b32.xlu0 %v425, 96
      %v432 = vpop.permute.xlu0 %431
      %433 = vrot.lane.b32.xlu0 %v426, 96
      %v434 = vpop.permute.xlu0 %433
      %vm435 = vcmask 785408
      %v436 = vsel %vm435, %v428, %v430
      %v437 = vsel %vm435, %v432, %v434
      %440 = vst [vmem:[#allocation2 + $0x60] sm:$0xff] %v436
      %441 = vst [vmem:[#allocation2 + $0x68] sm:$0xff] %v437
      %442 = vrot.lane.b32.xlu0 %v423, 95
      %v443 = vpop.permute.xlu0 %442
      %444 = vrot.lane.b32.xlu0 %v424, 95
      %v445 = vpop.permute.xlu0 %444
      %446 = vrot.lane.b32.xlu0 %v425, 95
      %v447 = vpop.permute.xlu0 %446
      %448 = vrot.lane.b32.xlu0 %v426, 95
      %v449 = vpop.permute.xlu0 %448
      %vm450 = vcmask 777216
      %v451 = vsel %vm450, %v443, %v445
      %v452 = vsel %vm450, %v447, %v449
      %455 = vst [vmem:[#allocation2 + $0x70] sm:$0xff] %v451
      %456 = vst [vmem:[#allocation2 + $0x78] sm:$0xff] %v452
      %457 = vrot.lane.b32.xlu0 %v423, 94
      %v458 = vpop.permute.xlu0 %457
      %459 = vrot.lane.b32.xlu0 %v424, 94
      %v460 = vpop.permute.xlu0 %459
      %461 = vrot.lane.b32.xlu0 %v425, 94
      %v462 = vpop.permute.xlu0 %461
      %463 = vrot.lane.b32.xlu0 %v426, 94
      %v464 = vpop.permute.xlu0 %463
      %vm465 = vcmask 769024
      %v466 = vsel %vm465, %v458, %v460
      %v467 = vsel %vm465, %v462, %v464
      %470 = vst [vmem:[#allocation2 + $0x80] sm:$0xff] %v466
      %471 = vst [vmem:[#allocation2 + $0x88] sm:$0xff] %v467
      %v472 = vld [vmem:[%s1] sm:$0xff]
      %v473 = vld [vmem:[%s1 + $0x8] sm:$0xf]
      %v474 = vld [vmem:[%s1 + $0xc] sm:$0xff]
      %v475 = vld [vmem:[%s1 + $0x14] sm:$0xf]
      %v476 = vld [vmem:[%s1 + $0x18] sm:$0xff]
      %v477 = vld [vmem:[%s1 + $0x20] sm:$0xf]
      %v478 = vld [vmem:[%s1 + $0x24] sm:$0xff]
      %v479 = vld [vmem:[%s1 + $0x2c] sm:$0xf]
      %v480 = vld [vmem:[#allocation2] sm:$0xff]
      %v481 = vld [vmem:[#allocation2 + $0x8] sm:$0xff]
      %v482 = vld [vmem:[#allocation2 + $0x10] sm:$0xff]
      %v483 = vld [vmem:[#allocation2 + $0x18] sm:$0xff]
      %v484 = vld [vmem:[#allocation2 + $0x20] sm:$0xff]
      %v485 = vld [vmem:[#allocation2 + $0x28] sm:$0xff]
      %v486 = vld [vmem:[#allocation2 + $0x30] sm:$0xff]
      %v487 = vld [vmem:[#allocation2 + $0x38] sm:$0xff]
      %v488 = vld [vmem:[#allocation2 + $0x40] sm:$0xff]
      %v489 = vld [vmem:[#allocation2 + $0x48] sm:$0xff]
      %v490 = vld [vmem:[#allocation2 + $0x50] sm:$0xff]
      %v491 = vld [vmem:[#allocation2 + $0x58] sm:$0xff]
      %v492 = vld [vmem:[#allocation2 + $0x60] sm:$0xff]
      %v493 = vld [vmem:[#allocation2 + $0x68] sm:$0xff]
      %v494 = vld [vmem:[#allocation2 + $0x70] sm:$0xff]
      %v495 = vld [vmem:[#allocation2 + $0x78] sm:$0xff]
      %v496 = vld [vmem:[#allocation2 + $0x80] sm:$0xff]
      %v497 = vld [vmem:[#allocation2 + $0x88] sm:$0xff]
      %v506 = vunpack.c.l.b16 %v472
      %v507 = vunpack.c.h.b16 %v472
      %v508 = vunpack.c.l.b16 %v473
      %v509 = vunpack.c.l.b16 %v474
      %v510 = vunpack.c.h.b16 %v474
      %v511 = vunpack.c.l.b16 %v475
      %v512 = vunpack.c.l.b16 %v476
      %v513 = vunpack.c.h.b16 %v476
      %v514 = vunpack.c.l.b16 %v477
      %v515 = vunpack.c.l.b16 %v478
      %v516 = vunpack.c.h.b16 %v478
      %v517 = vunpack.c.l.b16 %v479
      %v518 = vpack.c.b16 %v509, %v506
      %v519 = vpack.c.b16 %v510, %v507
      %v520 = vpack.c.b16 %v511, %v508
      %v521 = vpack.c.b16 %v515, %v512
      %v522 = vpack.c.b16 %v516, %v513
      %v523 = vpack.c.b16 %v517, %v514
      %vm528 = vcmask 261120
      %v530 = vsel %vm528, %v520, 0
      %v533 = vsel %vm528, %v523, 0
      %535 = vmatprep.subr.bf16.mxu0 0
      %536 = vmatpush1.bf16.msra.mxu0 %v480
      %537 = vmatprep.subr.bf16.mxu0 0
      %538 = vmatpush1.bf16.msra.mxu0 %v481
      %539 = vmatprep.subr.bf16.mxu0 0
      %540 = vmatpush1.bf16.msra.mxu0 %v482
      %541 = vmatprep.subr.bf16.mxu0 0
      %542 = vmatpush1.bf16.msra.mxu0 %v483
      %543 = vmatprep.subr.bf16.mxu0 0
      %544 = vmatpush1.bf16.msra.mxu0 %v484
      %545 = vmatprep.subr.bf16.mxu0 0
      %546 = vmatpush1.bf16.msra.mxu0 %v485
      %547 = vmatprep.subr.bf16.mxu0 0
      %548 = vmatpush1.bf16.msra.mxu0 %v486
      %549 = vmatprep.subr.bf16.mxu0 0
      %550 = vmatpush1.bf16.msra.mxu0 %v487
      %551 = vmatprep.subr.bf16.mxu0 0
      %552 = vmatpush1.bf16.msra.mxu0 %v488
      %553 = vmatprep.subr.bf16.mxu0 0
      %554 = vmatpush1.bf16.msra.mxu0 %v489
      %555 = vmatprep.subr.bf16.mxu0 0
      %556 = vmatpush1.bf16.msra.mxu0 %v490
      %557 = vmatprep.subr.bf16.mxu0 0
      %558 = vmatpush1.bf16.msra.mxu0 %v491
      %559 = vmatprep.subr.bf16.mxu0 0
      %560 = vmatpush1.bf16.msra.mxu0 %v492
      %561 = vmatprep.subr.bf16.mxu0 0
      %562 = vmatpush1.bf16.msra.mxu0 %v493
      %563 = vmatprep.subr.bf16.mxu0 0
      %564 = vmatpush1.bf16.msra.mxu0 %v494
      %565 = vmatprep.subr.bf16.mxu0 0
      %566 = vmatpush1.bf16.msra.mxu0 %v495
      %567 = vmatprep.mubr.bf16.mxu0 %v519
      %568 = vmatmul.mubr.bf16.gmra.mrb[0].mxu0 %v518
      %v569 = vpop.f32.mrb[0].mxu0
      %v570 = vadd.f32 0.0, %v569
      %v571 = vpop.f32.mrb[0].mxu0
      %v572 = vpop.f32.mrb[0].mxu0
      %v573 = vadd.f32 0.0, %v572
      %v574 = vpop.f32.mrb[0].mxu0
      %575 = vmatprep.mubr.bf16.mxu0 %v522
      %576 = vmatmul.mubr.bf16.gmra.mrb[0].mxu0 %v521
      %v577 = vpop.f32.mrb[0].mxu0
      %v578 = vadd.f32 0.0, %v577
      %v579 = vpop.f32.mrb[0].mxu0
      %v580 = vpop.f32.mrb[0].mxu0
      %v581 = vadd.f32 0.0, %v580
      %v582 = vpop.f32.mrb[0].mxu0
      %583 = vdwg.mxu0
      %584 = vmatprep.subr.bf16.mxu0 0
      %585 = vmatpush1.bf16.msra.mxu0 %v496
      %586 = vmatprep.subr.bf16.mxu0 0
      %587 = vmatpush1.bf16.msra.mxu0 %v497
      %588 = vmatprep.subr.bf16.mxu0 0
      %589 = vmatpush1.bf16.msra.mxu0 0
      %590 = vmatprep.subr.bf16.mxu0 0
      %591 = vmatpush1.bf16.msra.mxu0 0
      %592 = vmatprep.subr.bf16.mxu0 0
      %593 = vmatpush1.bf16.msra.mxu0 0
      %594 = vmatprep.subr.bf16.mxu0 0
      %595 = vmatpush1.bf16.msra.mxu0 0
      %596 = vmatprep.subr.bf16.mxu0 0
      %597 = vmatpush1.bf16.msra.mxu0 0
      %598 = vmatprep.subr.bf16.mxu0 0
      %599 = vmatpush1.bf16.msra.mxu0 0
      %600 = vmatprep.subr.bf16.mxu0 0
      %601 = vmatpush1.bf16.msra.mxu0 0
      %602 = vmatprep.subr.bf16.mxu0 0
      %603 = vmatpush1.bf16.msra.mxu0 0
      %604 = vmatprep.subr.bf16.mxu0 0
      %605 = vmatpush1.bf16.msra.mxu0 0
      %606 = vmatprep.subr.bf16.mxu0 0
      %607 = vmatpush1.bf16.msra.mxu0 0
      %608 = vmatprep.subr.bf16.mxu0 0
      %609 = vmatpush1.bf16.msra.mxu0 0
      %610 = vmatprep.subr.bf16.mxu0 0
      %611 = vmatpush1.bf16.msra.mxu0 0
      %612 = vmatprep.subr.bf16.mxu0 0
      %613 = vmatpush1.bf16.msra.mxu0 0
      %614 = vmatprep.subr.bf16.mxu0 0
      %615 = vmatpush1.bf16.msra.mxu0 0
      %616 = vmatprep.mubr.bf16.mxu0 0
      %617 = vmatmul.mubr.bf16.gmra.mrb[0].mxu0 %v530
      %v618 = vpop.f32.mrb[0].mxu0
      %v619 = vadd.f32 %v570, %v618
      %v620 = vpop.f32.mrb[0].mxu0
      %v621 = vpop.f32.mrb[0].mxu0
      %v622 = vadd.f32 %v573, %v621
      %v623 = vpop.f32.mrb[0].mxu0
      %624 = vmatprep.mubr.bf16.mxu0 0
      %625 = vmatmul.mubr.bf16.gmra.mrb[0].mxu0 %v533
      %v626 = vpop.f32.mrb[0].mxu0
      %v627 = vadd.f32 %v578, %v626
      %v628 = vpop.f32.mrb[0].mxu0
      %v629 = vpop.f32.mrb[0].mxu0
      %v630 = vadd.f32 %v581, %v629
      %v631 = vpop.f32.mrb[0].mxu0
      %632 = vdwg.mxu0
      %634 = vset.pattern.permute.xlu0 0
      %635 = vperm.xlu0 %634, %v280
      %v636 = vpop.permute.xlu0 %635
      %639 = vset.pattern.permute.xlu0 0
      %640 = vperm.xlu0 %639, %v281
      %v641 = vpop.permute.xlu0 %640
      %644 = vset.pattern.permute.xlu0 0
      %645 = vperm.xlu0 %644, %v282
      %v646 = vpop.permute.xlu0 %645
      %649 = vset.pattern.permute.xlu0 0
      %650 = vperm.xlu0 %649, %v283
      %v651 = vpop.permute.xlu0 %650
      %v653 = vmul.f32 %v619, %v636
      %v654 = vmul.f32 %v622, %v641
      %v655 = vmul.f32 %v627, %v646
      %v656 = vmul.f32 %v630, %v651
      %658 = vset.pattern.permute.xlu0 0
      %659 = vperm.xlu0 %658, %v284
      %v660 = vpop.permute.xlu0 %659
      %663 = vset.pattern.permute.xlu0 0
      %664 = vperm.xlu0 %663, %v285
      %v665 = vpop.permute.xlu0 %664
      %668 = vset.pattern.permute.xlu0 0
      %669 = vperm.xlu0 %668, %v286
      %v670 = vpop.permute.xlu0 %669
      %673 = vset.pattern.permute.xlu0 0
      %674 = vperm.xlu0 %673, %v287
      %v675 = vpop.permute.xlu0 %674
      %v677 = vadd.f32 %v653, %v660
      %v678 = vadd.f32 %v654, %v665
      %v679 = vadd.f32 %v655, %v670
      %v680 = vadd.f32 %v656, %v675
      %v681 = vmax.f32 %v677, 0.0
      %v682 = vmax.f32 %v678, 0.0
      %v683 = vmax.f32 %v679, 0.0
      %v684 = vmax.f32 %v680, 0.0
      %v685 = vpack.c.bf16 %v682, %v681
      %v686 = vpack.c.bf16 %v684, %v683
      %v689 = vunpack.c.l.b16 %v685
      %v690 = vunpack.c.h.b16 %v685
      %v691 = vunpack.c.l.b16 %v686
      %v692 = vunpack.c.h.b16 %v686
      %v693 = vpack.c.b16 %v689, %v689
      %v694 = vpack.c.b16 %v690, %v690
      %v695 = vpack.c.b16 %v691, %v691
      %v696 = vpack.c.b16 %v692, %v692
      %701 = vst [vmem:[%s278] sm:$0xf] %v693
      %702 = vst [vmem:[%s278 + $0x4] sm:$0xf] %v694
      %703 = vst [vmem:[%s278 + $0x8] sm:$0xf] %v695
      %704 = vst [vmem:[%s278 + $0xc] sm:$0xf] %v696
      %p705 = scmp.lt.s32.totalorder %s21, 1
      %s706 = scalar_select %p705, %s21, 1
      %p707 = scmp.lt.s32.totalorder %s22, 0
      %s708 = scalar_select %p707, %s22, 0
      %s709 = smul.addr %s706, 4
      %s710 = sadd.s32 %s708, %s709
      %s711 = smul.addr %s710, 4
      %s712 = scalar_lea.vmem %s6, %s711
      // Predicated region
      $region45: #{stem_forward.5} parent=43 // pred_check
        %p713 = pneg %p182
      $region46: #{stem_forward.5} parent=43 // pred_check_branch
        %715 = sbr.rel (%p713) target = $region48
      $region47: #{stem_forward.5} parent=43 // pred_region
        _
      $region48: #{stem_forward.5} parent=43 // pred_fallthru
        _
    $region44: #{stem_forward.5} parent=5 // pred_fallthru
      _
    %p716 = scmp.le.s32.totalorder 2, %s12
    // Predicated region
    $region49: #{stem_forward.5} parent=5 // pred_check
      %p717 = pneg %p716
    $region50: #{stem_forward.5} parent=5 // pred_check_branch
      %719 = sbr.rel (%p717) target = $region52
    $region51: #{stem_forward.5} parent=5 // pred_region
      %s720 = ssub.s32 %s12, 2
      // Predicated region
      $region53: #{stem_forward.5} parent=51 // pred_check
        %p721 = pneg %p188
      $region54: #{stem_forward.5} parent=51 // pred_check_branch
        %723 = sbr.rel (%p721) target = $region56
      $region55: #{stem_forward.5} parent=51 // pred_region
        %p724 = scmp.lt.s32.totalorder %s23, 1
        %s725 = scalar_select %p724, %s23, 1
        %p726 = scmp.lt.s32.totalorder %s24, 0
        %s727 = scalar_select %p726, %s24, 0
        %s728 = smul.addr %s725, 4
        %s729 = sadd.s32 %s727, %s728
        %s730 = smul.addr %s729, 4
        %s731 = scalar_lea.vmem %s6, %s730
      $region56: #{stem_forward.5} parent=51 // pred_fallthru
        _
    $region52: #{stem_forward.5} parent=5 // pred_fallthru
      _
  $region6: #{stem_forward.5} parent=0 // loop_footer
    %s16 = sadd.s32 1, %s12
  $region7: #{stem_forward.5} parent=0 // loop_footer_branch
    %11 = sbr.rel target = $region3
  $region8: #{stem_forward.5} parent=0 // loop_exit
    _

// kernel: stem_forward.7
$region0: #{stem_forward.7}
  #allocation0 [shape = 'u32[]', space=smem, size = 0x4, offset = 0x4, fixed_abs, tag = 'smem constant byte address 0x4 - core index']
  #allocation1 [shape = 'u32[144,128]{1,0:T(1,128)}', space=vmem, size = 0x12000, scoped, tag = 'internal scratch']
  #allocation2 [shape = 'bf16[288,32]{1,0:T(16,128)(2,1)}', space=vmem, size = 0x12000, scoped, tag = 'scratch operand']
  %s0 = inlined_call_operand.vmem [shape: bf16[2,4,32,48], index: 0, kind: input, shape index: {}]
  %s1 = inlined_call_operand.vmem [shape: bf16[32,288], index: 1, kind: input, shape index: {}]
  %s2 = inlined_call_operand.vmem [shape: f32[32,1], index: 2, kind: input, shape index: {}]
  %s3 = inlined_call_operand.vmem [shape: f32[32,1], index: 3, kind: input, shape index: {}]
  %s4 = inlined_call_operand.vmem [shape: f32[32,1], index: 4, kind: input, shape index: {}]
  %s5 = inlined_call_operand.vmem [shape: f32[32,1], index: 5, kind: input, shape index: {}]
  %s6 = inlined_call_operand.vmem [shape: f32[2,32,32], index: 6, kind: output, shape index: {}]
  %s7 = sld [smem:[#allocation0]]
  $region57: #{stem_forward.7} parent=0
    _
  %s9 = ssub.s32 1, %s7
  %s10 = scalar_select 0, %s9, %s7
  loop: start=0, step=1, limit=4
  $region2: #{stem_forward.7} parent=0 // loop_pre_header
    _
  $region3: #{stem_forward.7} parent=0 // loop_header
    %s12 = sphi 0, %s16
    %p13 = scmp.ge.s32.totalorder %s12, 4
    %s19 = sphi 0, %s31
    %s20 = sphi 0, %s27
    %s21 = sphi 0, %s19
    %s22 = sphi 0, %s20
    %s23 = sphi 0, %s21
    %s24 = sphi 0, %s22
    %s36 = sphi 0, %s38
    %s39 = sphi 0, %s36
    %s40 = sphi 0, %s39
    %s56 = sphi 0, %s40
    %s60 = sphi 0, %s60
    %s62 = sphi 0, %s60
    %s63 = sphi 0, %s62
    %s77 = sphi 0, %s63
    %s81 = sphi 0, %s81
    %s83 = sphi 0, %s81
    %s84 = sphi 0, %s83
    %s98 = sphi 0, %s84
    %s102 = sphi 0, %s102
    %s104 = sphi 0, %s102
    %s105 = sphi 0, %s104
    %s119 = sphi 0, %s105
    %s123 = sphi 0, %s123
    %s125 = sphi 0, %s123
    %s126 = sphi 0, %s125
    %s140 = sphi 0, %s126
    %s144 = sphi 0, %s144
    %s146 = sphi 0, %s144
    %s147 = sphi 0, %s146
    %s161 = sphi 0, %s147
    %s169 = sphi 0, %s171
    %s172 = sphi 0, %s169
    %s173 = sphi 0, %s172
    %s189 = sphi 0, %s173
  $region4: #{stem_forward.7} parent=0 // loop_header_branch
    %15 = sbr.rel (%p13) target = $region8
  $region5: #{stem_forward.7} parent=0 // loop_body
    %s17 = ssub.s32 %s12, 1
    %s18 = ssub.s32 %s12, 2
    %s25 = sadd.s32 1, %s20
    %p26 = scmp.ge.s32.totalorder %s25, 1
    %s27 = scalar_select %p26, 0, %s25
    %s28 = sadd.s32 1, %s19
    %s29 = scalar_select %p26, %s28, %s19
    %p30 = scmp.ge.s32.totalorder %s29, 2
    %s31 = scalar_select %p30, 0, %s29
    %s32 = sadd.s32 %s19, %s20
    %s33 = sadd.s32 %s31, %s27
    %s34 = ssub.s32 %s32, %s33
    %p35 = scmp.eq.s32.totalorder %s34, 0
    %s37 = sadd.s32 %s36, 1
    %s38 = scalar_select %p35, %s36, %s37
    %p41 = pneg %p35
    %p42 = scmp.eq.s32.totalorder %s12, 1
    %p43 = por %p41, %p42
    %p44 = scmp.ne.s32.totalorder %s36, %s39
    %p45 = scmp.eq.s32.totalorder %s12, 0
    %p46 = por %p44, %p45
    %p47 = scmp.ne.s32.totalorder %s36, %s39
    %p48 = scmp.eq.s32.totalorder %s17, 1
    %p49 = por %p47, %p48
    %p50 = scmp.ne.s32.totalorder %s39, %s40
    %p51 = scmp.eq.s32.totalorder %s17, 0
    %p52 = por %p50, %p51
    %p53 = scmp.ne.s32.totalorder %s39, %s40
    %p54 = scmp.eq.s32.totalorder %s18, 1
    %p55 = por %p53, %p54
    %p57 = scmp.ne.s32.totalorder %s40, %s56
    %p58 = scmp.eq.s32.totalorder %s18, 0
    %p59 = por %p57, %p58
    %s61 = sadd.s32 %s60, 1
    %p64 = scmp.eq.s32.totalorder %s12, 1
    %p65 = scmp.ne.s32.totalorder %s60, %s62
    %p66 = scmp.eq.s32.totalorder %s12, 0
    %p67 = por %p65, %p66
    %p68 = scmp.ne.s32.totalorder %s60, %s62
    %p69 = scmp.eq.s32.totalorder %s17, 1
    %p70 = por %p68, %p69
    %p71 = scmp.ne.s32.totalorder %s62, %s63
    %p72 = scmp.eq.s32.totalorder %s17, 0
    %p73 = por %p71, %p72
    %p74 = scmp.ne.s32.totalorder %s62, %s63
    %p75 = scmp.eq.s32.totalorder %s18, 1
    %p76 = por %p74, %p75
    %p78 = scmp.ne.s32.totalorder %s63, %s77
    %p79 = scmp.eq.s32.totalorder %s18, 0
    %p80 = por %p78, %p79
    %s82 = sadd.s32 %s81, 1
    %p85 = scmp.eq.s32.totalorder %s12, 1
    %p86 = scmp.ne.s32.totalorder %s81, %s83
    %p87 = scmp.eq.s32.totalorder %s12, 0
    %p88 = por %p86, %p87
    %p89 = scmp.ne.s32.totalorder %s81, %s83
    %p90 = scmp.eq.s32.totalorder %s17, 1
    %p91 = por %p89, %p90
    %p92 = scmp.ne.s32.totalorder %s83, %s84
    %p93 = scmp.eq.s32.totalorder %s17, 0
    %p94 = por %p92, %p93
    %p95 = scmp.ne.s32.totalorder %s83, %s84
    %p96 = scmp.eq.s32.totalorder %s18, 1
    %p97 = por %p95, %p96
    %p99 = scmp.ne.s32.totalorder %s84, %s98
    %p100 = scmp.eq.s32.totalorder %s18, 0
    %p101 = por %p99, %p100
    %s103 = sadd.s32 %s102, 1
    %p106 = scmp.eq.s32.totalorder %s12, 1
    %p107 = scmp.ne.s32.totalorder %s102, %s104
    %p108 = scmp.eq.s32.totalorder %s12, 0
    %p109 = por %p107, %p108
    %p110 = scmp.ne.s32.totalorder %s102, %s104
    %p111 = scmp.eq.s32.totalorder %s17, 1
    %p112 = por %p110, %p111
    %p113 = scmp.ne.s32.totalorder %s104, %s105
    %p114 = scmp.eq.s32.totalorder %s17, 0
    %p115 = por %p113, %p114
    %p116 = scmp.ne.s32.totalorder %s104, %s105
    %p117 = scmp.eq.s32.totalorder %s18, 1
    %p118 = por %p116, %p117
    %p120 = scmp.ne.s32.totalorder %s105, %s119
    %p121 = scmp.eq.s32.totalorder %s18, 0
    %p122 = por %p120, %p121
    %s124 = sadd.s32 %s123, 1
    %p127 = scmp.eq.s32.totalorder %s12, 1
    %p128 = scmp.ne.s32.totalorder %s123, %s125
    %p129 = scmp.eq.s32.totalorder %s12, 0
    %p130 = por %p128, %p129
    %p131 = scmp.ne.s32.totalorder %s123, %s125
    %p132 = scmp.eq.s32.totalorder %s17, 1
    %p133 = por %p131, %p132
    %p134 = scmp.ne.s32.totalorder %s125, %s126
    %p135 = scmp.eq.s32.totalorder %s17, 0
    %p136 = por %p134, %p135
    %p137 = scmp.ne.s32.totalorder %s125, %s126
    %p138 = scmp.eq.s32.totalorder %s18, 1
    %p139 = por %p137, %p138
    %p141 = scmp.ne.s32.totalorder %s126, %s140
    %p142 = scmp.eq.s32.totalorder %s18, 0
    %p143 = por %p141, %p142
    %s145 = sadd.s32 %s144, 1
    %p148 = scmp.eq.s32.totalorder %s12, 1
    %p149 = scmp.ne.s32.totalorder %s144, %s146
    %p150 = scmp.eq.s32.totalorder %s12, 0
    %p151 = por %p149, %p150
    %p152 = scmp.ne.s32.totalorder %s144, %s146
    %p153 = scmp.eq.s32.totalorder %s17, 1
    %p154 = por %p152, %p153
    %p155 = scmp.ne.s32.totalorder %s146, %s147
    %p156 = scmp.eq.s32.totalorder %s17, 0
    %p157 = por %p155, %p156
    %p158 = scmp.ne.s32.totalorder %s146, %s147
    %p159 = scmp.eq.s32.totalorder %s18, 1
    %p160 = por %p158, %p159
    %p162 = scmp.ne.s32.totalorder %s147, %s161
    %p163 = scmp.eq.s32.totalorder %s18, 0
    %p164 = por %p162, %p163
    %s165 = ssub.s32 %s19, %s31
    %s166 = ssub.s32 %s20, %s27
    %s167 = sor.u32 %s165, %s166
    %p168 = scmp.eq.s32.totalorder %s167, 0
    %s170 = sadd.s32 %s169, 1
    %s171 = scalar_select %p168, %s169, %s170
    %p174 = pneg %p168
    %p175 = scmp.eq.s32.totalorder %s12, 1
    %p176 = por %p174, %p175
    %p177 = scmp.ne.s32.totalorder %s169, %s172
    %p178 = scmp.eq.s32.totalorder %s12, 0
    %p179 = por %p177, %p178
    %p180 = scmp.ne.s32.totalorder %s169, %s172
    %p181 = scmp.eq.s32.totalorder %s17, 1
    %p182 = por %p180, %p181
    %p183 = scmp.ne.s32.totalorder %s172, %s173
    %p184 = scmp.eq.s32.totalorder %s17, 0
    %p185 = por %p183, %p184
    %p186 = scmp.ne.s32.totalorder %s172, %s173
    %p187 = scmp.eq.s32.totalorder %s18, 1
    %p188 = por %p186, %p187
    %p190 = scmp.ne.s32.totalorder %s173, %s189
    %p191 = scmp.eq.s32.totalorder %s18, 0
    %p192 = por %p190, %p191
    %p193 = scmp.le.s32.totalorder 1, %s12
    %p194 = scmp.lt.s32.totalorder %s12, 3
    %p195 = pnand %p193, %p194
    %p196 = pneg %p195
    // Predicated region
    $region9: #{stem_forward.7} parent=5 // pred_check
      _
    $region10: #{stem_forward.7} parent=5 // pred_check_branch
      %198 = sbr.rel (%p195) target = $region12
    $region11: #{stem_forward.7} parent=5 // pred_region
      %s199 = ssub.s32 %s12, 1
      // Predicated region
      $region13: #{stem_forward.7} parent=11 // pred_check
        %p200 = pneg %p73
      $region14: #{stem_forward.7} parent=11 // pred_check_branch
        %202 = sbr.rel (%p200) target = $region16
      $region15: #{stem_forward.7} parent=11 // pred_region
        _
      $region16: #{stem_forward.7} parent=11 // pred_fallthru
        _
      // Predicated region
      $region17: #{stem_forward.7} parent=11 // pred_check
        %p203 = pneg %p94
      $region18: #{stem_forward.7} parent=11 // pred_check_branch
        %205 = sbr.rel (%p203) target = $region20
      $region19: #{stem_forward.7} parent=11 // pred_region
        _
      $region20: #{stem_forward.7} parent=11 // pred_fallthru
        _
      // Predicated region
      $region21: #{stem_forward.7} parent=11 // pred_check
        %p206 = pneg %p115
      $region22: #{stem_forward.7} parent=11 // pred_check_branch
        %208 = sbr.rel (%p206) target = $region24
      $region23: #{stem_forward.7} parent=11 // pred_region
        _
      $region24: #{stem_forward.7} parent=11 // pred_fallthru
        _
      // Predicated region
      $region25: #{stem_forward.7} parent=11 // pred_check
        %p209 = pneg %p136
      $region26: #{stem_forward.7} parent=11 // pred_check_branch
        %211 = sbr.rel (%p209) target = $region28
      $region27: #{stem_forward.7} parent=11 // pred_region
        _
      $region28: #{stem_forward.7} parent=11 // pred_fallthru
        _
      // Predicated region
      $region29: #{stem_forward.7} parent=11 // pred_check
        %p212 = pneg %p157
      $region30: #{stem_forward.7} parent=11 // pred_check_branch
        %214 = sbr.rel (%p212) target = $region32
      $region31: #{stem_forward.7} parent=11 // pred_region
        _
      $region32: #{stem_forward.7} parent=11 // pred_fallthru
        _
    $region12: #{stem_forward.7} parent=5 // pred_fallthru
      _
    %p215 = scmp.lt.s32.totalorder %s12, 2
    // Predicated region
    $region33: #{stem_forward.7} parent=5 // pred_check
      %p216 = pneg %p215
    $region34: #{stem_forward.7} parent=5 // pred_check_branch
      %218 = sbr.rel (%p216) target = $region36
    $region35: #{stem_forward.7} parent=5 // pred_region
      // Predicated region
      $region37: #{stem_forward.7} parent=35 // pred_check
        %p219 = pneg %p46
      $region38: #{stem_forward.7} parent=35 // pred_check_branch
        %221 = sbr.rel (%p219) target = $region40
      $region39: #{stem_forward.7} parent=35 // pred_region
        %s222 = sadd.s32 %s19, %s20
        %p223 = scmp.lt.s32.totalorder %s222, 1
        %s224 = scalar_select %p223, %s222, 1
        %s225 = smul.addr %s224, 16
        %s226 = smul.addr %s225, 4
        %s227 = scalar_lea.vmem %s0, %s226
        %s228 = sadd.s32 %s19, %s20
      $region40: #{stem_forward.7} parent=35 // pred_fallthru
        _
    $region36: #{stem_forward.7} parent=5 // pred_fallthru
      _
    %p229 = scmp.le.s32.totalorder 1, %s12
    %p230 = scmp.lt.s32.totalorder %s12, 3
    %p231 = pnand %p229, %p230
    %p232 = pneg %p231
    // Predicated region
    $region41: #{stem_forward.7} parent=5 // pred_check
      _
    $region42: #{stem_forward.7} parent=5 // pred_check_branch
      %234 = sbr.rel (%p231) target = $region44
    $region43: #{stem_forward.7} parent=5 // pred_region
      %s235 = ssub.s32 %s12, 1
      %s236 = sadd.s32 %s21, %s22
      %p237 = scmp.lt.s32.totalorder %s236, 1
      %s238 = scalar_select %p237, %s236, 1
      %s239 = smul.addr %s238, 16
      %s240 = smul.addr %s239, 4
      %s241 = scalar_lea.vmem %s0, %s240
      %p242 = pneg %p52
      %p243 = pneg %p49
      %p244 = pneg %p73
      %p245 = pneg %p70
      %p246 = pneg %p94
      %p247 = pneg %p91
      %p248 = pneg %p115
      %p249 = pneg %p112
      %p250 = pneg %p136
      %p251 = pneg %p133
      %p252 = pneg %p157
      %p253 = pneg %p154
      %p254 = pneg %p185
      %p255 = pneg %p182
      %p256 = scmp.lt.s32.totalorder %s21, 1
      %s257 = scalar_select %p256, %s21, 1
      %p258 = scmp.lt.s32.totalorder %s22, 0
      %s259 = scalar_select %p258, %s22, 0
      %s260 = smul.addr %s257, 4
      %s261 = sadd.s32 %s259, %s260
      %s262 = smul.addr %s261, 8
      %s263 = scalar_lea.vmem %s6, %s262
      %s264 = sadd.s32 %s21, %s22
      %p265 = scmp.lt.s32.totalorder %s264, 1
      %s266 = scalar_select %p265, %s264, 1
      %s267 = smul.addr %s266, 16
      %s268 = smul.addr %s267, 4
      %s269 = scalar_lea.vmem %s0, %s268
      %s270 = sadd.s32 %s21, %s22
      %p271 = scmp.lt.s32.totalorder %s21, 1
      %s272 = scalar_select %p271, %s21, 1
      %p273 = scmp.lt.s32.totalorder %s22, 0
      %s274 = scalar_select %p273, %s22, 0
      %s275 = smul.addr %s272, 4
      %s276 = sadd.s32 %s274, %s275
      %s277 = smul.addr %s276, 8
      %s278 = scalar_lea.vmem %s6, %s277
      %v280 = vld [vmem:[%s2] sm:$0xff]
      %v281 = vld [vmem:[%s2 + $0x8] sm:$0xff]
      %v282 = vld [vmem:[%s2 + $0x10] sm:$0xff]
      %v283 = vld [vmem:[%s2 + $0x18] sm:$0xff]
      %v284 = vld [vmem:[%s3] sm:$0xff]
      %v285 = vld [vmem:[%s3 + $0x8] sm:$0xff]
      %v286 = vld [vmem:[%s3 + $0x10] sm:$0xff]
      %v287 = vld [vmem:[%s3 + $0x18] sm:$0xff]
      %v288 = vld [vmem:[%s269] sm:$0xf]
      %v289 = vld [vmem:[%s269 + $0x4] sm:$0xf]
      %v290 = vld [vmem:[%s269 + $0x8] sm:$0xf]
      %v291 = vld [vmem:[%s269 + $0xc] sm:$0xf]
      %v296 = vunpack.c.l.b16 %v288
      %v297 = vunpack.c.l.b16 %v289
      %v298 = vunpack.c.l.b16 %v290
      %v299 = vunpack.c.l.b16 %v291
      %v300 = vpack.c.b16 %v297, %v296
      %v301 = vpack.c.b16 %v299, %v298
      %vm304 = vcmask 261120
      %305 = vst.msk [vmem:[#allocation2] sm:$0xff] %vm304, %v300
      %306 = vst.msk [vmem:[#allocation2 + $0x8] sm:$0xff] %vm304, %v301
      %307 = vrot.lane.b32.xlu0 %v300, 127
      %v308 = vpop.permute.xlu0 %307
      %309 = vrot.lane.b32.xlu0 %v301, 127
      %v310 = vpop.permute.xlu0 %309
      %313 = vst.msk [vmem:[#allocation2 + $0x20] sm:$0xff] %vm304, %v308
      %314 = vst.msk [vmem:[#allocation2 + $0x28] sm:$0xff] %vm304, %v310
      %v315 = vld [vmem:[%s269] sm:$0xf]
      %v316 = vld [vmem:[%s269 + $0x4] sm:$0xf]
      %v317 = vld [vmem:[%s269 + $0x8] sm:$0xf]
      %v318 = vld [vmem:[%s269 + $0xc] sm:$0xf]
      %v323 = vunpack.c.l.b16 %v315
      %v324 = vunpack.c.l.b16 %v316
      %v325 = vunpack.c.l.b16 %v317
      %v326 = vunpack.c.l.b16 %v318
      %v327 = vpack.c.b16 %v324, %v323
      %v328 = vpack.c.b16 %v326, %v325
      %329 = vrot.lane.b32.xlu0 %v327, 120
      %v330 = vpop.permute.xlu0 %329
      %331 = vrot.lane.b32.xlu0 %v328, 120
      %v332 = vpop.permute.xlu0 %331
      %335 = vst.msk [vmem:[#allocation2 + $0x60] sm:$0xff] %vm304, %v330
      %336 = vst.msk [vmem:[#allocation2 + $0x68] sm:$0xff] %vm304, %v332
      %337 = vrot.lane.b32.xlu0 %v327, 119
      %v338 = vpop.permute.xlu0 %337
      %339 = vrot.lane.b32.xlu0 %v328, 119
      %v340 = vpop.permute.xlu0 %339
      %343 = vst.msk [vmem:[#allocation2 + $0x80] sm:$0xff] %vm304, %v338
      %344 = vst.msk [vmem:[#allocation2 + $0x88] sm:$0xff] %vm304, %v340
      %s345 = scalar_lea.vmem %s269, 16
      %v346 = vld [vmem:[%s345] sm:$0xf]
      %v347 = vld [vmem:[%s345 + $0x4] sm:$0xf]
      %v348 = vld [vmem:[%s345 + $0x8] sm:$0xf]
      %v349 = vld [vmem:[%s345 + $0xc] sm:$0xf]
      %v354 = vunpack.c.l.b16 %v346
      %v355 = vunpack.c.l.b16 %v347
      %v356 = vunpack.c.l.b16 %v348
      %v357 = vunpack.c.l.b16 %v349
      %v358 = vpack.c.b16 %v355, %v354
      %v359 = vpack.c.b16 %v357, %v356
      %362 = vst.msk [vmem:[#allocation2 + $0x10] sm:$0xff] %vm304, %v358
      %363 = vst.msk [vmem:[#allocation2 + $0x18] sm:$0xff] %vm304, %v359
      %v364 = vld [vmem:[%s345] sm:$0xf]
      %v365 = vld [vmem:[%s345 + $0x4] sm:$0xf]
      %v366 = vld [vmem:[%s345 + $0x8] sm:$0xf]
      %v367 = vld [vmem:[%s345 + $0xc] sm:$0xf]
      %v372 = vunpack.c.l.b16 %v364
      %v373 = vunpack.c.l.b16 %v365
      %v374 = vunpack.c.l.b16 %v366
      %v375 = vunpack.c.l.b16 %v367
      %v376 = vpack.c.b16 %v373, %v372
      %v377 = vpack.c.b16 %v375, %v374
      %378 = vrot.lane.b32.xlu0 %v376, 120
      %v379 = vpop.permute.xlu0 %378
      %380 = vrot.lane.b32.xlu0 %v377, 120
      %v381 = vpop.permute.xlu0 %380
      %384 = vst.msk [vmem:[#allocation2 + $0x70] sm:$0xff] %vm304, %v379
      %385 = vst.msk [vmem:[#allocation2 + $0x78] sm:$0xff] %vm304, %v381
      %s386 = scalar_lea.vmem %s269, 32
      %v387 = vld [vmem:[%s386] sm:$0xf]
      %v388 = vld [vmem:[%s386 + $0x4] sm:$0xf]
      %v389 = vld [vmem:[%s386 + $0x8] sm:$0xf]
      %v390 = vld [vmem:[%s386 + $0xc] sm:$0xf]
      %v395 = vunpack.c.l.b16 %v387
      %v396 = vunpack.c.l.b16 %v388
      %v397 = vunpack.c.l.b16 %v389
      %v398 = vunpack.c.l.b16 %v390
      %v399 = vpack.c.b16 %v396, %v395
      %v400 = vpack.c.b16 %v398, %v397
      %403 = vst.msk [vmem:[#allocation2 + $0x30] sm:$0xff] %vm304, %v399
      %404 = vst.msk [vmem:[#allocation2 + $0x38] sm:$0xff] %vm304, %v400
      %405 = vrot.lane.b32.xlu0 %v399, 127
      %v406 = vpop.permute.xlu0 %405
      %407 = vrot.lane.b32.xlu0 %v400, 127
      %v408 = vpop.permute.xlu0 %407
      %411 = vst.msk [vmem:[#allocation2 + $0x50] sm:$0xff] %vm304, %v406
      %412 = vst.msk [vmem:[#allocation2 + $0x58] sm:$0xff] %vm304, %v408
      %s413 = scalar_lea.vmem %s269, 48
      %v414 = vld [vmem:[%s413] sm:$0xf]
      %v415 = vld [vmem:[%s413 + $0x4] sm:$0xf]
      %v416 = vld [vmem:[%s413 + $0x8] sm:$0xf]
      %v417 = vld [vmem:[%s413 + $0xc] sm:$0xf]
      %v422 = vunpack.c.l.b16 %v414
      %v423 = vunpack.c.l.b16 %v415
      %v424 = vunpack.c.l.b16 %v416
      %v425 = vunpack.c.l.b16 %v417
      %v426 = vpack.c.b16 %v423, %v422
      %v427 = vpack.c.b16 %v425, %v424
      %430 = vst.msk [vmem:[#allocation2 + $0x40] sm:$0xff] %vm304, %v426
      %431 = vst.msk [vmem:[#allocation2 + $0x48] sm:$0xff] %vm304, %v427
      %v432 = vld [vmem:[%s1] sm:$0xff]
      %v433 = vld [vmem:[%s1 + $0x8] sm:$0xf]
      %v434 = vld [vmem:[%s1 + $0xc] sm:$0xff]
      %v435 = vld [vmem:[%s1 + $0x14] sm:$0xf]
      %v436 = vld [vmem:[%s1 + $0x18] sm:$0xff]
      %v437 = vld [vmem:[%s1 + $0x20] sm:$0xf]
      %v438 = vld [vmem:[%s1 + $0x24] sm:$0xff]
      %v439 = vld [vmem:[%s1 + $0x2c] sm:$0xf]
      %v440 = vld [vmem:[#allocation2] sm:$0xff]
      %v441 = vld [vmem:[#allocation2 + $0x8] sm:$0xff]
      %v442 = vld [vmem:[#allocation2 + $0x10] sm:$0xff]
      %v443 = vld [vmem:[#allocation2 + $0x18] sm:$0xff]
      %v444 = vld [vmem:[#allocation2 + $0x20] sm:$0xff]
      %v445 = vld [vmem:[#allocation2 + $0x28] sm:$0xff]
      %v446 = vld [vmem:[#allocation2 + $0x30] sm:$0xff]
      %v447 = vld [vmem:[#allocation2 + $0x38] sm:$0xff]
      %v448 = vld [vmem:[#allocation2 + $0x40] sm:$0xff]
      %v449 = vld [vmem:[#allocation2 + $0x48] sm:$0xff]
      %v450 = vld [vmem:[#allocation2 + $0x50] sm:$0xff]
      %v451 = vld [vmem:[#allocation2 + $0x58] sm:$0xff]
      %v452 = vld [vmem:[#allocation2 + $0x60] sm:$0xff]
      %v453 = vld [vmem:[#allocation2 + $0x68] sm:$0xff]
      %v454 = vld [vmem:[#allocation2 + $0x70] sm:$0xff]
      %v455 = vld [vmem:[#allocation2 + $0x78] sm:$0xff]
      %v456 = vld [vmem:[#allocation2 + $0x80] sm:$0xff]
      %v457 = vld [vmem:[#allocation2 + $0x88] sm:$0xff]
      %v466 = vunpack.c.l.b16 %v432
      %v467 = vunpack.c.h.b16 %v432
      %v468 = vunpack.c.l.b16 %v433
      %v469 = vunpack.c.l.b16 %v434
      %v470 = vunpack.c.h.b16 %v434
      %v471 = vunpack.c.l.b16 %v435
      %v472 = vunpack.c.l.b16 %v436
      %v473 = vunpack.c.h.b16 %v436
      %v474 = vunpack.c.l.b16 %v437
      %v475 = vunpack.c.l.b16 %v438
      %v476 = vunpack.c.h.b16 %v438
      %v477 = vunpack.c.l.b16 %v439
      %v478 = vpack.c.b16 %v469, %v466
      %v479 = vpack.c.b16 %v470, %v467
      %v480 = vpack.c.b16 %v471, %v468
      %v481 = vpack.c.b16 %v475, %v472
      %v482 = vpack.c.b16 %v476, %v473
      %v483 = vpack.c.b16 %v477, %v474
      %v489 = vsel %vm304, %v480, 0
      %v492 = vsel %vm304, %v483, 0
      %494 = vmatprep.subr.bf16.mxu0 0
      %495 = vmatpush1.bf16.msra.mxu0 %v440
      %496 = vmatprep.subr.bf16.mxu0 0
      %497 = vmatpush1.bf16.msra.mxu0 %v441
      %498 = vmatprep.subr.bf16.mxu0 0
      %499 = vmatpush1.bf16.msra.mxu0 %v442
      %500 = vmatprep.subr.bf16.mxu0 0
      %501 = vmatpush1.bf16.msra.mxu0 %v443
      %502 = vmatprep.subr.bf16.mxu0 0
      %503 = vmatpush1.bf16.msra.mxu0 %v444
      %504 = vmatprep.subr.bf16.mxu0 0
      %505 = vmatpush1.bf16.msra.mxu0 %v445
      %506 = vmatprep.subr.bf16.mxu0 0
      %507 = vmatpush1.bf16.msra.mxu0 %v446
      %508 = vmatprep.subr.bf16.mxu0 0
      %509 = vmatpush1.bf16.msra.mxu0 %v447
      %510 = vmatprep.subr.bf16.mxu0 0
      %511 = vmatpush1.bf16.msra.mxu0 %v448
      %512 = vmatprep.subr.bf16.mxu0 0
      %513 = vmatpush1.bf16.msra.mxu0 %v449
      %514 = vmatprep.subr.bf16.mxu0 0
      %515 = vmatpush1.bf16.msra.mxu0 %v450
      %516 = vmatprep.subr.bf16.mxu0 0
      %517 = vmatpush1.bf16.msra.mxu0 %v451
      %518 = vmatprep.subr.bf16.mxu0 0
      %519 = vmatpush1.bf16.msra.mxu0 %v452
      %520 = vmatprep.subr.bf16.mxu0 0
      %521 = vmatpush1.bf16.msra.mxu0 %v453
      %522 = vmatprep.subr.bf16.mxu0 0
      %523 = vmatpush1.bf16.msra.mxu0 %v454
      %524 = vmatprep.subr.bf16.mxu0 0
      %525 = vmatpush1.bf16.msra.mxu0 %v455
      %526 = vmatprep.mubr.bf16.mxu0 %v479
      %527 = vmatmul.mubr.bf16.gmra.mrb[0].mxu0 %v478
      %v528 = vpop.f32.mrb[0].mxu0
      %v529 = vadd.f32 0.0, %v528
      %v530 = vpop.f32.mrb[0].mxu0
      %v531 = vpop.f32.mrb[0].mxu0
      %v532 = vadd.f32 0.0, %v531
      %v533 = vpop.f32.mrb[0].mxu0
      %534 = vmatprep.mubr.bf16.mxu0 %v482
      %535 = vmatmul.mubr.bf16.gmra.mrb[0].mxu0 %v481
      %v536 = vpop.f32.mrb[0].mxu0
      %v537 = vadd.f32 0.0, %v536
      %v538 = vpop.f32.mrb[0].mxu0
      %v539 = vpop.f32.mrb[0].mxu0
      %v540 = vadd.f32 0.0, %v539
      %v541 = vpop.f32.mrb[0].mxu0
      %542 = vdwg.mxu0
      %543 = vmatprep.subr.bf16.mxu0 0
      %544 = vmatpush1.bf16.msra.mxu0 %v456
      %545 = vmatprep.subr.bf16.mxu0 0
      %546 = vmatpush1.bf16.msra.mxu0 %v457
      %547 = vmatprep.subr.bf16.mxu0 0
      %548 = vmatpush1.bf16.msra.mxu0 0
      %549 = vmatprep.subr.bf16.mxu0 0
      %550 = vmatpush1.bf16.msra.mxu0 0
      %551 = vmatprep.subr.bf16.mxu0 0
      %552 = vmatpush1.bf16.msra.mxu0 0
      %553 = vmatprep.subr.bf16.mxu0 0
      %554 = vmatpush1.bf16.msra.mxu0 0
      %555 = vmatprep.subr.bf16.mxu0 0
      %556 = vmatpush1.bf16.msra.mxu0 0
      %557 = vmatprep.subr.bf16.mxu0 0
      %558 = vmatpush1.bf16.msra.mxu0 0
      %559 = vmatprep.subr.bf16.mxu0 0
      %560 = vmatpush1.bf16.msra.mxu0 0
      %561 = vmatprep.subr.bf16.mxu0 0
      %562 = vmatpush1.bf16.msra.mxu0 0
      %563 = vmatprep.subr.bf16.mxu0 0
      %564 = vmatpush1.bf16.msra.mxu0 0
      %565 = vmatprep.subr.bf16.mxu0 0
      %566 = vmatpush1.bf16.msra.mxu0 0
      %567 = vmatprep.subr.bf16.mxu0 0
      %568 = vmatpush1.bf16.msra.mxu0 0
      %569 = vmatprep.subr.bf16.mxu0 0
      %570 = vmatpush1.bf16.msra.mxu0 0
      %571 = vmatprep.subr.bf16.mxu0 0
      %572 = vmatpush1.bf16.msra.mxu0 0
      %573 = vmatprep.subr.bf16.mxu0 0
      %574 = vmatpush1.bf16.msra.mxu0 0
      %575 = vmatprep.mubr.bf16.mxu0 0
      %576 = vmatmul.mubr.bf16.gmra.mrb[0].mxu0 %v489
      %v577 = vpop.f32.mrb[0].mxu0
      %v578 = vadd.f32 %v529, %v577
      %v579 = vpop.f32.mrb[0].mxu0
      %v580 = vpop.f32.mrb[0].mxu0
      %v581 = vadd.f32 %v532, %v580
      %v582 = vpop.f32.mrb[0].mxu0
      %583 = vmatprep.mubr.bf16.mxu0 0
      %584 = vmatmul.mubr.bf16.gmra.mrb[0].mxu0 %v492
      %v585 = vpop.f32.mrb[0].mxu0
      %v586 = vadd.f32 %v537, %v585
      %v587 = vpop.f32.mrb[0].mxu0
      %v588 = vpop.f32.mrb[0].mxu0
      %v589 = vadd.f32 %v540, %v588
      %v590 = vpop.f32.mrb[0].mxu0
      %591 = vdwg.mxu0
      %593 = vset.pattern.permute.xlu0 0
      %594 = vperm.xlu0 %593, %v280
      %v595 = vpop.permute.xlu0 %594
      %598 = vset.pattern.permute.xlu0 0
      %599 = vperm.xlu0 %598, %v281
      %v600 = vpop.permute.xlu0 %599
      %603 = vset.pattern.permute.xlu0 0
      %604 = vperm.xlu0 %603, %v282
      %v605 = vpop.permute.xlu0 %604
      %608 = vset.pattern.permute.xlu0 0
      %609 = vperm.xlu0 %608, %v283
      %v610 = vpop.permute.xlu0 %609
      %v612 = vmul.f32 %v578, %v595
      %v613 = vmul.f32 %v581, %v600
      %v614 = vmul.f32 %v586, %v605
      %v615 = vmul.f32 %v589, %v610
      %617 = vset.pattern.permute.xlu0 0
      %618 = vperm.xlu0 %617, %v284
      %v619 = vpop.permute.xlu0 %618
      %622 = vset.pattern.permute.xlu0 0
      %623 = vperm.xlu0 %622, %v285
      %v624 = vpop.permute.xlu0 %623
      %627 = vset.pattern.permute.xlu0 0
      %628 = vperm.xlu0 %627, %v286
      %v629 = vpop.permute.xlu0 %628
      %632 = vset.pattern.permute.xlu0 0
      %633 = vperm.xlu0 %632, %v287
      %v634 = vpop.permute.xlu0 %633
      %v636 = vadd.f32 %v612, %v619
      %v637 = vadd.f32 %v613, %v624
      %v638 = vadd.f32 %v614, %v629
      %v639 = vadd.f32 %v615, %v634
      %v640 = vsel %vm304, %v636, 0.0
      %v641 = vsel %vm304, %v637, 0.0
      %v642 = vadd.f32 %v640, %v641
      %v643 = vsel %vm304, %v638, 0.0
      %v644 = vadd.f32 %v642, %v643
      %v645 = vsel %vm304, %v639, 0.0
      %v646 = vadd.f32 %v644, %v645
      %v647 = vrot.slane %v646, 4
      %v648 = vadd.f32 %v646, %v647
      %v649 = vrot.slane %v648, 2
      %v650 = vadd.f32 %v648, %v649
      %v651 = vrot.slane %v650, 1
      %v652 = vadd.f32 %v650, %v651
      %v653 = vmul.f32 %v652, 0.03125
      %v654 = vmul.f32 %v636, %v636
      %v655 = vmul.f32 %v637, %v637
      %v656 = vmul.f32 %v638, %v638
      %v657 = vmul.f32 %v639, %v639
      %v658 = vsel %vm304, %v654, 0.0
      %v659 = vsel %vm304, %v655, 0.0
      %v660 = vadd.f32 %v658, %v659
      %v661 = vsel %vm304, %v656, 0.0
      %v662 = vadd.f32 %v660, %v661
      %v663 = vsel %vm304, %v657, 0.0
      %v664 = vadd.f32 %v662, %v663
      %v665 = vrot.slane %v664, 4
      %v666 = vadd.f32 %v664, %v665
      %v667 = vrot.slane %v666, 2
      %v668 = vadd.f32 %v666, %v667
      %v669 = vrot.slane %v668, 1
      %v670 = vadd.f32 %v668, %v669
      %v671 = vmul.f32 %v670, 0.03125
      %v672 = vmul.f32 %v653, %v653
      %v673 = vsub.f32 %v671, %v672
      %v674 = vsub.f32 %v636, %v653
      %v675 = vsub.f32 %v637, %v653
      %v676 = vsub.f32 %v638, %v653
      %v677 = vsub.f32 %v639, %v653
      %v678 = vadd.f32 %v673, 1e-05
      %v679 = vrsqrt.pop %v678
      %v680 = vmul.f32 %v674, %v679
      %v681 = vmul.f32 %v675, %v679
      %v682 = vmul.f32 %v676, %v679
      %v683 = vmul.f32 %v677, %v679
      %v684 = vld [vmem:[%s4] sm:$0xff]
      %v685 = vld [vmem:[%s4 + $0x8] sm:$0xff]
      %v686 = vld [vmem:[%s4 + $0x10] sm:$0xff]
      %v687 = vld [vmem:[%s4 + $0x18] sm:$0xff]
      %689 = vset.pattern.permute.xlu0 0
      %690 = vperm.xlu0 %689, %v684
      %v691 = vpop.permute.xlu0 %690
      %694 = vset.pattern.permute.xlu0 0
      %695 = vperm.xlu0 %694, %v685
      %v696 = vpop.permute.xlu0 %695
      %699 = vset.pattern.permute.xlu0 0
      %700 = vperm.xlu0 %699, %v686
      %v701 = vpop.permute.xlu0 %700
      %704 = vset.pattern.permute.xlu0 0
      %705 = vperm.xlu0 %704, %v687
      %v706 = vpop.permute.xlu0 %705
      %v708 = vmul.f32 %v680, %v691
      %v709 = vmul.f32 %v681, %v696
      %v710 = vmul.f32 %v682, %v701
      %v711 = vmul.f32 %v683, %v706
      %v712 = vld [vmem:[%s5] sm:$0xff]
      %v713 = vld [vmem:[%s5 + $0x8] sm:$0xff]
      %v714 = vld [vmem:[%s5 + $0x10] sm:$0xff]
      %v715 = vld [vmem:[%s5 + $0x18] sm:$0xff]
      %717 = vset.pattern.permute.xlu0 0
      %718 = vperm.xlu0 %717, %v712
      %v719 = vpop.permute.xlu0 %718
      %722 = vset.pattern.permute.xlu0 0
      %723 = vperm.xlu0 %722, %v713
      %v724 = vpop.permute.xlu0 %723
      %727 = vset.pattern.permute.xlu0 0
      %728 = vperm.xlu0 %727, %v714
      %v729 = vpop.permute.xlu0 %728
      %732 = vset.pattern.permute.xlu0 0
      %733 = vperm.xlu0 %732, %v715
      %v734 = vpop.permute.xlu0 %733
      %v736 = vadd.f32 %v708, %v719
      %v737 = vadd.f32 %v709, %v724
      %v738 = vadd.f32 %v710, %v729
      %v739 = vadd.f32 %v711, %v734
      %740 = vst.msk [vmem:[%s278] sm:$0xff] %vm304, %v736
      %741 = vst.msk [vmem:[%s278 + $0x8] sm:$0xff] %vm304, %v737
      %742 = vst.msk [vmem:[%s278 + $0x10] sm:$0xff] %vm304, %v738
      %743 = vst.msk [vmem:[%s278 + $0x18] sm:$0xff] %vm304, %v739
      %p744 = scmp.lt.s32.totalorder %s21, 1
      %s745 = scalar_select %p744, %s21, 1
      %p746 = scmp.lt.s32.totalorder %s22, 0
      %s747 = scalar_select %p746, %s22, 0
      %s748 = smul.addr %s745, 4
      %s749 = sadd.s32 %s747, %s748
      %s750 = smul.addr %s749, 8
      %s751 = scalar_lea.vmem %s6, %s750
      // Predicated region
      $region45: #{stem_forward.7} parent=43 // pred_check
        %p752 = pneg %p182
      $region46: #{stem_forward.7} parent=43 // pred_check_branch
        %754 = sbr.rel (%p752) target = $region48
      $region47: #{stem_forward.7} parent=43 // pred_region
        _
      $region48: #{stem_forward.7} parent=43 // pred_fallthru
        _
    $region44: #{stem_forward.7} parent=5 // pred_fallthru
      _
    %p755 = scmp.le.s32.totalorder 2, %s12
    // Predicated region
    $region49: #{stem_forward.7} parent=5 // pred_check
      %p756 = pneg %p755
    $region50: #{stem_forward.7} parent=5 // pred_check_branch
      %758 = sbr.rel (%p756) target = $region52
    $region51: #{stem_forward.7} parent=5 // pred_region
      %s759 = ssub.s32 %s12, 2
      // Predicated region
      $region53: #{stem_forward.7} parent=51 // pred_check
        %p760 = pneg %p188
      $region54: #{stem_forward.7} parent=51 // pred_check_branch
        %762 = sbr.rel (%p760) target = $region56
      $region55: #{stem_forward.7} parent=51 // pred_region
        %p763 = scmp.lt.s32.totalorder %s23, 1
        %s764 = scalar_select %p763, %s23, 1
        %p765 = scmp.lt.s32.totalorder %s24, 0
        %s766 = scalar_select %p765, %s24, 0
        %s767 = smul.addr %s764, 4
        %s768 = sadd.s32 %s766, %s767
        %s769 = smul.addr %s768, 8
        %s770 = scalar_lea.vmem %s6, %s769
      $region56: #{stem_forward.7} parent=51 // pred_fallthru
        _
    $region52: #{stem_forward.7} parent=5 // pred_fallthru
      _
  $region6: #{stem_forward.7} parent=0 // loop_footer
    %s16 = sadd.s32 1, %s12
  $region7: #{stem_forward.7} parent=0 // loop_footer_branch
    %11 = sbr.rel target = $region3
  $region8: #{stem_forward.7} parent=0 // loop_exit
    _

</llo_original>
